<compile_context>
chip_gen: v6e
topology: v6e:2x2x1
jax: 0.10.0
libtpu: 0.0.40
codegen_flags: <defaults>
</compile_context>

<pallas_src>
import numpy as np
import jax
import jax.numpy as jnp
from jax import lax
from jax.experimental import pallas as pl
from jax.experimental.pallas import tpu as pltpu

EPS = 1e-5  # nn.BatchNorm2d default eps


def _lane_group_allreduce(v, group, ngroups):
    """Sum over the `ngroups` lane groups of size `group`; result is the
    per-group (per-channel) total broadcast back to every lane.
    v: (rows, ngroups*group).  Pure XLU lane rolls."""
    total = group * ngroups
    if ngroups & (ngroups - 1) == 0:          # log2 doubling tree
        shift = group
        while shift < total:
            v = v + pltpu.roll(v, shift=shift, axis=1)
            shift *= 2
        return v
    out = v
    for k in range(1, ngroups):
        out = out + pltpu.roll(v, shift=k * group, axis=1)
    return out


def _make_kernel(N, H, W, C):
    R, L = N * H, W * C
    inv_cnt = 1.0 / float(N * H * W)          # BN count per channel

    def shifted_taps(v_f32, not_top, not_bot):
        # x[h-1] / x[h+1] via sublane rolls (XLU); h-edge zero padding and
        # image boundaries handled by the row-index masks (VPU select).
        up = jnp.where(not_top, pltpu.roll(v_f32, shift=1, axis=0), 0.0)
        dn = jnp.where(not_bot, pltpu.roll(v_f32, shift=R - 1, axis=0), 0.0)
        return up, dn

    def conv3x3(v_f32, m_ref, not_top, not_bot):
        dt = m_ref.dtype
        up, dn = shifted_taps(v_f32, not_top, not_bot)
        # Three kh-tap dots accumulated in f32 — no (R, 3L) im2col concat copy.
        acc = jnp.dot(up.astype(dt), m_ref[0], preferred_element_type=jnp.float32)
        acc = acc + jnp.dot(v_f32.astype(dt), m_ref[1],
                            preferred_element_type=jnp.float32)
        acc = acc + jnp.dot(dn.astype(dt), m_ref[2],
                            preferred_element_type=jnp.float32)
        return acc

    def batchnorm(acc, g_ref, b_ref):
        # Two-pass batch statistics, all in f32, on the lane-dense slab.
        colsum = jnp.sum(acc, axis=0, keepdims=True)                 # (1, L)
        mean_b = _lane_group_allreduce(colsum, C, W) * inv_cnt       # per-chan mean, bcast
        d = acc - mean_b
        sqsum = jnp.sum(d * d, axis=0, keepdims=True)
        var_b = _lane_group_allreduce(sqsum, C, W) * inv_cnt
        return d * lax.rsqrt(var_b + EPS) * g_ref[...] + b_ref[...]

    def kernel(x_ref, m1_ref, g1_ref, b1_ref, m2_ref, g2_ref, b2_ref, out_ref):
        x = x_ref[...].astype(jnp.float32)                           # (R, L) f32 working copy
        row = lax.broadcasted_iota(jnp.int32, (R, L), 0)
        h = row % H
        not_top = h != 0
        not_bot = h != (H - 1)

        a1 = conv3x3(x, m1_ref, not_top, not_bot)
        y1 = jnp.maximum(batchnorm(a1, g1_ref, b1_ref), 0.0)
        a2 = conv3x3(y1, m2_ref, not_top, not_bot)
        y2 = batchnorm(a2, g2_ref, b2_ref)
        out_ref[...] = jnp.maximum(y2 + x, 0.0).astype(out_ref.dtype)  # lane-dense store

    return kernel


def _band_weight_matrices(w_hwio, W):
    """(3,3,Cin,Cout) HWIO weights -> (3, W*Cin, W*Cout): one banded matrix per
    kh tap so a conv tap is one matmul against the (N*H, W*Cin) slab; the kw
    taps and the SAME zero padding along w are folded into the band."""
    kh, kw, Cin, Cout = w_hwio.shape
    assert (kh, kw) == (3, 3)
    T = np.zeros((3, W, W), np.float32)        # T[j, w_in, w_out]
    for j in range(3):
        for w in range(W):
            wi = w + j - 1
            if 0 <= wi < W:
                T[j, wi, w] = 1.0
    M = jnp.einsum('jvw,ijcd->ivcwd', jnp.asarray(T), w_hwio)  # (3, W, Cin, W, Cout)
    return M.reshape(3, W * Cin, W * Cout)


def residual_block_nchw(x_nchw, w1_oihw, g1, b1, w2_oihw, g2, b2,
                        conv_dtype=jnp.bfloat16):
    """PyTorch-layout in/out (NCHW, OIHW weights).  Returns NCHW in conv_dtype."""
    N, C, H, W = x_nchw.shape
    R, L = N * H, W * C

    # Layout glue (wrapper-side, contiguous reshapes only — no jnp.pad).
    # Activation slab travels HBM<->VMEM in conv_dtype (bf16 default).
    x2 = jnp.transpose(x_nchw, (0, 2, 3, 1)).reshape(R, L).astype(conv_dtype)
    m1 = _band_weight_matrices(jnp.transpose(w1_oihw, (2, 3, 1, 0)), W).astype(conv_dtype)
    m2 = _band_weight_matrices(jnp.transpose(w2_oihw, (2, 3, 1, 0)), W).astype(conv_dtype)

    # gamma/beta tiled W times along lanes (lane l = w*C + c -> param[c]).
    g1b = jnp.tile(g1.astype(jnp.float32), W).reshape(1, L)
    b1b = jnp.tile(b1.astype(jnp.float32), W).reshape(1, L)
    g2b = jnp.tile(g2.astype(jnp.float32), W).reshape(1, L)
    b2b = jnp.tile(b2.astype(jnp.float32), W).reshape(1, L)

    kernel = _make_kernel(N, H, W, C)
    full2 = lambda i: (0, 0)
    full3 = lambda i: (0, 0, 0)

    out2 = pl.pallas_call(
        kernel,
        out_shape=jax.ShapeDtypeStruct((R, L), conv_dtype),
        grid=(1,),
        in_specs=[
            pl.BlockSpec((R, L), full2),          # x, lane-dense bf16 slab
            pl.BlockSpec((3, L, L), full3),       # conv1 banded weights (per kh tap)
            pl.BlockSpec((1, L), full2),          # bn1 gamma (lane-tiled, f32)
            pl.BlockSpec((1, L), full2),          # bn1 beta
            pl.BlockSpec((3, L, L), full3),       # conv2 banded weights
            pl.BlockSpec((1, L), full2),          # bn2 gamma
            pl.BlockSpec((1, L), full2),          # bn2 beta
        ],
        out_specs=pl.BlockSpec((R, L), full2),    # lane-dense output -> unmasked vst
        compiler_params=pltpu.CompilerParams(
            dimension_semantics=("arbitrary",),
            vmem_limit_bytes=48 * 1024 * 1024),   # fits v7x's 64 MiB VMEM
    )(x2, m1, g1b, b1b, m2, g2b, b2b)

    return jnp.transpose(out2.reshape(N, H, W, C), (0, 3, 1, 2))


def _reference_nchw(x_nchw, w1_oihw, g1, b1, w2_oihw, g2, b2):
    """Pure-JAX f32 reference (same semantics) for correctness checking."""
    x = jnp.transpose(x_nchw, (0, 2, 3, 1))
    w1 = jnp.transpose(w1_oihw, (2, 3, 1, 0))
    w2 = jnp.transpose(w2_oihw, (2, 3, 1, 0))

    def conv(v, w):
        return lax.conv_general_dilated(
            v, w, window_strides=(1, 1), padding="SAME",
            dimension_numbers=("NHWC", "HWIO", "NHWC"))

    def bn(v, g, b):
        mean = jnp.mean(v, axis=(0, 1, 2), keepdims=True)
        var = jnp.mean((v - mean) ** 2, axis=(0, 1, 2), keepdims=True)
        return (v - mean) * lax.rsqrt(var + EPS) * g + b

    y = jax.nn.relu(bn(conv(x, w1), g1, b1))
    y = bn(conv(y, w2), g2, b2)
    y = jax.nn.relu(y + x)
    return jnp.transpose(y, (0, 3, 1, 2))


if __name__ == "__main__":
    # W*C == 128 (one full lane slab per row) and N*H == 256 so every conv dot
    # fills the MXU M dimension (256 rows on v6e/v7x, 2x128 on v5e).
    N, C, H, W = 16, 8, 16, 16

    key = jax.random.PRNGKey(0)
    kx, kw1, kw2, kg1, kb1, kg2, kb2 = jax.random.split(key, 7)

    x = jax.random.normal(kx, (N, C, H, W), jnp.float32)          # NCHW like PyTorch
    w1 = jax.random.normal(kw1, (C, C, 3, 3), jnp.float32) * 0.1  # conv1.weight (OIHW)
    w2 = jax.random.normal(kw2, (C, C, 3, 3), jnp.float32) * 0.1  # conv2.weight (OIHW)
    g1 = 1.0 + 0.1 * jax.random.normal(kg1, (C,), jnp.float32)    # bn1.weight
    b1 = 0.1 * jax.random.normal(kb1, (C,), jnp.float32)          # bn1.bias
    g2 = 1.0 + 0.1 * jax.random.normal(kg2, (C,), jnp.float32)    # bn2.weight
    b2 = 0.1 * jax.random.normal(kb2, (C,), jnp.float32)          # bn2.bias

    ref = jax.block_until_ready(_reference_nchw(x, w1, g1, b1, w2, g2, b2))

    # f32 path: exact rolls/masks, f32 MXU -> must match the f32 reference tightly.
    out_f32 = jax.block_until_ready(
        residual_block_nchw(x, w1, g1, b1, w2, g2, b2, conv_dtype=jnp.float32))
    assert out_f32.shape == (N, C, H, W), out_f32.shape
    assert jnp.allclose(out_f32, ref, atol=1e-3, rtol=1e-3), (
        float(jnp.max(jnp.abs(out_f32 - ref))))

    # Default bf16 fast path: bf16 activations at the HBM boundary + bf16 MXU
    # operands, f32 BN/residual math; tolerance sized for bf16 quantization.
    out_bf16 = jax.block_until_ready(
        residual_block_nchw(x, w1, g1, b1, w2, g2, b2))
    assert out_bf16.shape == (N, C, H, W), out_bf16.shape
    assert jnp.allclose(out_bf16.astype(jnp.float32), ref,
                        atol=5e-2, rtol=5e-2), (
        float(jnp.max(jnp.abs(out_bf16.astype(jnp.float32) - ref))))

    print("KERNEL_OK")
</pallas_src>

<mosaic_0001>
module attributes {stable_mosaic.version = 11 : i64} {
  func.func @kernel(%arg0: i32, %arg1: memref<256x128xf32, #tpu.memory_space<vmem>>, %arg2: memref<3x128x128xf32, #tpu.memory_space<vmem>>, %arg3: memref<1x128xf32, #tpu.memory_space<vmem>>, %arg4: memref<1x128xf32, #tpu.memory_space<vmem>>, %arg5: memref<3x128x128xf32, #tpu.memory_space<vmem>>, %arg6: memref<1x128xf32, #tpu.memory_space<vmem>>, %arg7: memref<1x128xf32, #tpu.memory_space<vmem>>, %arg8: memref<256x128xf32, #tpu.memory_space<vmem>>) attributes {dimension_semantics = [#tpu.dimension_semantics<arbitrary>], iteration_bounds = array<i64: 1>, scalar_prefetch = 0 : i64, scratch_operands = 0 : i64, tpu.core_type = #tpu.core_type<tc>, window_params = [{pipeline_mode = #tpu.pipeline_mode<synchronous>, transform_indices = @transform_0, window_bounds = array<i64: 256, 128>}, {pipeline_mode = #tpu.pipeline_mode<synchronous>, transform_indices = @transform_1, window_bounds = array<i64: 3, 128, 128>}, {pipeline_mode = #tpu.pipeline_mode<synchronous>, transform_indices = @transform_2, window_bounds = array<i64: 1, 128>}, {pipeline_mode = #tpu.pipeline_mode<synchronous>, transform_indices = @transform_3, window_bounds = array<i64: 1, 128>}, {pipeline_mode = #tpu.pipeline_mode<synchronous>, transform_indices = @transform_4, window_bounds = array<i64: 3, 128, 128>}, {pipeline_mode = #tpu.pipeline_mode<synchronous>, transform_indices = @transform_5, window_bounds = array<i64: 1, 128>}, {pipeline_mode = #tpu.pipeline_mode<synchronous>, transform_indices = @transform_6, window_bounds = array<i64: 1, 128>}, {pipeline_mode = #tpu.pipeline_mode<synchronous>, transform_indices = @transform_7, window_bounds = array<i64: 256, 128>}]} {
    %c0 = arith.constant 0 : index
    %c0_0 = arith.constant 0 : index
    %0 = vector.load %arg1[%c0, %c0_0] : memref<256x128xf32, #tpu.memory_space<vmem>>, vector<256x128xf32>
    %1 = tpu.iota {dimensions = array<i32: 0>} : vector<256x128xi32>
    %c16_i32 = arith.constant 16 : i32
    %c0_i32 = arith.constant 0 : i32
    %2 = arith.cmpi eq, %c16_i32, %c0_i32 : i32
    %c1_i32 = arith.constant 1 : i32
    %3 = arith.select %2, %c1_i32, %c16_i32 : i32
    %4 = vector.broadcast %3 : i32 to vector<256x128xi32>
    %5 = arith.remsi %1, %4 : vector<256x128xi32>
    %c0_i32_1 = arith.constant 0 : i32
    %6 = vector.broadcast %c0_i32_1 : i32 to vector<256x128xi32>
    %7 = arith.cmpi ne, %5, %6 : vector<256x128xi32>
    %c0_i32_2 = arith.constant 0 : i32
    %8 = vector.broadcast %c0_i32_2 : i32 to vector<256x128xi32>
    %9 = arith.cmpi slt, %5, %8 : vector<256x128xi32>
    %c0_i32_3 = arith.constant 0 : i32
    %10 = arith.cmpi slt, %3, %c0_i32_3 : i32
    %11 = vector.broadcast %10 : i1 to vector<256x128xi1>
    %12 = vector.broadcast %11 : vector<256x128xi1> to vector<256x128xi1>
    %13 = arith.xori %9, %12 : vector<256x128xi1>
    %14 = arith.andi %13, %7 : vector<256x128xi1>
    %15 = vector.broadcast %3 : i32 to vector<256x128xi32>
    %16 = arith.addi %5, %15 : vector<256x128xi32>
    %17 = arith.select %14, %16, %5 : vector<256x128xi1>, vector<256x128xi32>
    %c0_i32_4 = arith.constant 0 : i32
    %18 = vector.broadcast %c0_i32_4 : i32 to vector<256x128xi32>
    %19 = arith.cmpi ne, %17, %18 : vector<256x128xi32>
    %c15_i32 = arith.constant 15 : i32
    %20 = vector.broadcast %c15_i32 : i32 to vector<256x128xi32>
    %21 = arith.cmpi ne, %17, %20 : vector<256x128xi32>
    %c1_i32_5 = arith.constant 1 : i32
    %22 = tpu.dynamic_rotate %0 by %c1_i32_5 dim 0 : vector<256x128xf32>, i32 -> vector<256x128xf32>
    %cst = arith.constant 0.000000e+00 : f32
    %23 = vector.broadcast %cst : f32 to vector<256x128xf32>
    %24 = arith.select %19, %22, %23 : vector<256x128xi1>, vector<256x128xf32>
    %c255_i32 = arith.constant 255 : i32
    %25 = tpu.dynamic_rotate %0 by %c255_i32 dim 0 : vector<256x128xf32>, i32 -> vector<256x128xf32>
    %cst_6 = arith.constant 0.000000e+00 : f32
    %26 = vector.broadcast %cst_6 : f32 to vector<256x128xf32>
    %27 = arith.select %21, %25, %26 : vector<256x128xi1>, vector<256x128xf32>
    %c0_7 = arith.constant 0 : index
    %c0_8 = arith.constant 0 : index
    %c0_9 = arith.constant 0 : index
    %28 = vector.load %arg2[%c0_7, %c0_8, %c0_9] : memref<3x128x128xf32, #tpu.memory_space<vmem>>, vector<1x128x128xf32>
    %29 = vector.shape_cast %28 : vector<1x128x128xf32> to vector<128x128xf32>
    %cst_10 = arith.constant dense<0.000000e+00> : vector<256x128xf32>
    %30 = tpu.matmul %24, %29, %cst_10 {dimension_numbers = #tpu.dot_dimension_numbers<[1], [0], [0], [1], [0, 0, 1, 1], [], []>} : vector<256x128xf32>, vector<128x128xf32>, vector<256x128xf32> -> vector<256x128xf32>
    %c1 = arith.constant 1 : index
    %c0_11 = arith.constant 0 : index
    %c0_12 = arith.constant 0 : index
    %31 = vector.load %arg2[%c1, %c0_11, %c0_12] : memref<3x128x128xf32, #tpu.memory_space<vmem>>, vector<1x128x128xf32>
    %32 = vector.shape_cast %31 : vector<1x128x128xf32> to vector<128x128xf32>
    %cst_13 = arith.constant dense<0.000000e+00> : vector<256x128xf32>
    %33 = tpu.matmul %0, %32, %cst_13 {dimension_numbers = #tpu.dot_dimension_numbers<[1], [0], [0], [1], [0, 0, 1, 1], [], []>} : vector<256x128xf32>, vector<128x128xf32>, vector<256x128xf32> -> vector<256x128xf32>
    %34 = arith.addf %30, %33 : vector<256x128xf32>
    %c2 = arith.constant 2 : index
    %c0_14 = arith.constant 0 : index
    %c0_15 = arith.constant 0 : index
    %35 = vector.load %arg2[%c2, %c0_14, %c0_15] : memref<3x128x128xf32, #tpu.memory_space<vmem>>, vector<1x128x128xf32>
    %36 = vector.shape_cast %35 : vector<1x128x128xf32> to vector<128x128xf32>
    %cst_16 = arith.constant dense<0.000000e+00> : vector<256x128xf32>
    %37 = tpu.matmul %27, %36, %cst_16 {dimension_numbers = #tpu.dot_dimension_numbers<[1], [0], [0], [1], [0, 0, 1, 1], [], []>} : vector<256x128xf32>, vector<128x128xf32>, vector<256x128xf32> -> vector<256x128xf32>
    %38 = arith.addf %34, %37 : vector<256x128xf32>
    %cst_17 = arith.constant dense<0.000000e+00> : vector<128xf32>
    %39 = vector.multi_reduction <add>, %38, %cst_17 [0] : vector<256x128xf32> to vector<128xf32>
    %40 = vector.shape_cast %39 : vector<128xf32> to vector<1x128xf32>
    %c8_i32 = arith.constant 8 : i32
    %41 = tpu.dynamic_rotate %40 by %c8_i32 dim 1 : vector<1x128xf32>, i32 -> vector<1x128xf32>
    %42 = arith.addf %40, %41 : vector<1x128xf32>
    %c16_i32_18 = arith.constant 16 : i32
    %43 = tpu.dynamic_rotate %42 by %c16_i32_18 dim 1 : vector<1x128xf32>, i32 -> vector<1x128xf32>
    %44 = arith.addf %42, %43 : vector<1x128xf32>
    %c32_i32 = arith.constant 32 : i32
    %45 = tpu.dynamic_rotate %44 by %c32_i32 dim 1 : vector<1x128xf32>, i32 -> vector<1x128xf32>
    %46 = arith.addf %44, %45 : vector<1x128xf32>
    %c64_i32 = arith.constant 64 : i32
    %47 = tpu.dynamic_rotate %46 by %c64_i32 dim 1 : vector<1x128xf32>, i32 -> vector<1x128xf32>
    %48 = arith.addf %46, %47 : vector<1x128xf32>
    %cst_19 = arith.constant 2.44140625E-4 : f32
    %49 = vector.broadcast %cst_19 : f32 to vector<1x128xf32>
    %50 = arith.mulf %48, %49 : vector<1x128xf32>
    %51 = vector.broadcast %50 : vector<1x128xf32> to vector<256x128xf32>
    %52 = arith.subf %38, %51 : vector<256x128xf32>
    %53 = arith.mulf %52, %52 : vector<256x128xf32>
    %cst_20 = arith.constant dense<0.000000e+00> : vector<128xf32>
    %54 = vector.multi_reduction <add>, %53, %cst_20 [0] : vector<256x128xf32> to vector<128xf32>
    %55 = vector.shape_cast %54 : vector<128xf32> to vector<1x128xf32>
    %c8_i32_21 = arith.constant 8 : i32
    %56 = tpu.dynamic_rotate %55 by %c8_i32_21 dim 1 : vector<1x128xf32>, i32 -> vector<1x128xf32>
    %57 = arith.addf %55, %56 : vector<1x128xf32>
    %c16_i32_22 = arith.constant 16 : i32
    %58 = tpu.dynamic_rotate %57 by %c16_i32_22 dim 1 : vector<1x128xf32>, i32 -> vector<1x128xf32>
    %59 = arith.addf %57, %58 : vector<1x128xf32>
    %c32_i32_23 = arith.constant 32 : i32
    %60 = tpu.dynamic_rotate %59 by %c32_i32_23 dim 1 : vector<1x128xf32>, i32 -> vector<1x128xf32>
    %61 = arith.addf %59, %60 : vector<1x128xf32>
    %c64_i32_24 = arith.constant 64 : i32
    %62 = tpu.dynamic_rotate %61 by %c64_i32_24 dim 1 : vector<1x128xf32>, i32 -> vector<1x128xf32>
    %63 = arith.addf %61, %62 : vector<1x128xf32>
    %cst_25 = arith.constant 2.44140625E-4 : f32
    %64 = vector.broadcast %cst_25 : f32 to vector<1x128xf32>
    %65 = arith.mulf %63, %64 : vector<1x128xf32>
    %cst_26 = arith.constant 9.99999974E-6 : f32
    %66 = vector.broadcast %cst_26 : f32 to vector<1x128xf32>
    %67 = arith.addf %65, %66 : vector<1x128xf32>
    %68 = math.rsqrt %67 : vector<1x128xf32>
    %69 = vector.broadcast %68 : vector<1x128xf32> to vector<256x128xf32>
    %70 = arith.mulf %52, %69 : vector<256x128xf32>
    %c0_27 = arith.constant 0 : index
    %c0_28 = arith.constant 0 : index
    %71 = vector.load %arg3[%c0_27, %c0_28] : memref<1x128xf32, #tpu.memory_space<vmem>>, vector<1x128xf32>
    %72 = vector.broadcast %71 : vector<1x128xf32> to vector<256x128xf32>
    %73 = arith.mulf %70, %72 : vector<256x128xf32>
    %c0_29 = arith.constant 0 : index
    %c0_30 = arith.constant 0 : index
    %74 = vector.load %arg4[%c0_29, %c0_30] : memref<1x128xf32, #tpu.memory_space<vmem>>, vector<1x128xf32>
    %75 = vector.broadcast %74 : vector<1x128xf32> to vector<256x128xf32>
    %76 = arith.addf %73, %75 : vector<256x128xf32>
    %cst_31 = arith.constant 0.000000e+00 : f32
    %77 = vector.broadcast %cst_31 : f32 to vector<256x128xf32>
    %78 = arith.maximumf %76, %77 : vector<256x128xf32>
    %c1_i32_32 = arith.constant 1 : i32
    %79 = tpu.dynamic_rotate %78 by %c1_i32_32 dim 0 : vector<256x128xf32>, i32 -> vector<256x128xf32>
    %cst_33 = arith.constant 0.000000e+00 : f32
    %80 = vector.broadcast %cst_33 : f32 to vector<256x128xf32>
    %81 = arith.select %19, %79, %80 : vector<256x128xi1>, vector<256x128xf32>
    %c255_i32_34 = arith.constant 255 : i32
    %82 = tpu.dynamic_rotate %78 by %c255_i32_34 dim 0 : vector<256x128xf32>, i32 -> vector<256x128xf32>
    %cst_35 = arith.constant 0.000000e+00 : f32
    %83 = vector.broadcast %cst_35 : f32 to vector<256x128xf32>
    %84 = arith.select %21, %82, %83 : vector<256x128xi1>, vector<256x128xf32>
    %c0_36 = arith.constant 0 : index
    %c0_37 = arith.constant 0 : index
    %c0_38 = arith.constant 0 : index
    %85 = vector.load %arg5[%c0_36, %c0_37, %c0_38] : memref<3x128x128xf32, #tpu.memory_space<vmem>>, vector<1x128x128xf32>
    %86 = vector.shape_cast %85 : vector<1x128x128xf32> to vector<128x128xf32>
    %cst_39 = arith.constant dense<0.000000e+00> : vector<256x128xf32>
    %87 = tpu.matmul %81, %86, %cst_39 {dimension_numbers = #tpu.dot_dimension_numbers<[1], [0], [0], [1], [0, 0, 1, 1], [], []>} : vector<256x128xf32>, vector<128x128xf32>, vector<256x128xf32> -> vector<256x128xf32>
    %c1_40 = arith.constant 1 : index
    %c0_41 = arith.constant 0 : index
    %c0_42 = arith.constant 0 : index
    %88 = vector.load %arg5[%c1_40, %c0_41, %c0_42] : memref<3x128x128xf32, #tpu.memory_space<vmem>>, vector<1x128x128xf32>
    %89 = vector.shape_cast %88 : vector<1x128x128xf32> to vector<128x128xf32>
    %cst_43 = arith.constant dense<0.000000e+00> : vector<256x128xf32>
    %90 = tpu.matmul %78, %89, %cst_43 {dimension_numbers = #tpu.dot_dimension_numbers<[1], [0], [0], [1], [0, 0, 1, 1], [], []>} : vector<256x128xf32>, vector<128x128xf32>, vector<256x128xf32> -> vector<256x128xf32>
    %91 = arith.addf %87, %90 : vector<256x128xf32>
    %c2_44 = arith.constant 2 : index
    %c0_45 = arith.constant 0 : index
    %c0_46 = arith.constant 0 : index
    %92 = vector.load %arg5[%c2_44, %c0_45, %c0_46] : memref<3x128x128xf32, #tpu.memory_space<vmem>>, vector<1x128x128xf32>
    %93 = vector.shape_cast %92 : vector<1x128x128xf32> to vector<128x128xf32>
    %cst_47 = arith.constant dense<0.000000e+00> : vector<256x128xf32>
    %94 = tpu.matmul %84, %93, %cst_47 {dimension_numbers = #tpu.dot_dimension_numbers<[1], [0], [0], [1], [0, 0, 1, 1], [], []>} : vector<256x128xf32>, vector<128x128xf32>, vector<256x128xf32> -> vector<256x128xf32>
    %95 = arith.addf %91, %94 : vector<256x128xf32>
    %cst_48 = arith.constant dense<0.000000e+00> : vector<128xf32>
    %96 = vector.multi_reduction <add>, %95, %cst_48 [0] : vector<256x128xf32> to vector<128xf32>
    %97 = vector.shape_cast %96 : vector<128xf32> to vector<1x128xf32>
    %c8_i32_49 = arith.constant 8 : i32
    %98 = tpu.dynamic_rotate %97 by %c8_i32_49 dim 1 : vector<1x128xf32>, i32 -> vector<1x128xf32>
    %99 = arith.addf %97, %98 : vector<1x128xf32>
    %c16_i32_50 = arith.constant 16 : i32
    %100 = tpu.dynamic_rotate %99 by %c16_i32_50 dim 1 : vector<1x128xf32>, i32 -> vector<1x128xf32>
    %101 = arith.addf %99, %100 : vector<1x128xf32>
    %c32_i32_51 = arith.constant 32 : i32
    %102 = tpu.dynamic_rotate %101 by %c32_i32_51 dim 1 : vector<1x128xf32>, i32 -> vector<1x128xf32>
    %103 = arith.addf %101, %102 : vector<1x128xf32>
    %c64_i32_52 = arith.constant 64 : i32
    %104 = tpu.dynamic_rotate %103 by %c64_i32_52 dim 1 : vector<1x128xf32>, i32 -> vector<1x128xf32>
    %105 = arith.addf %103, %104 : vector<1x128xf32>
    %cst_53 = arith.constant 2.44140625E-4 : f32
    %106 = vector.broadcast %cst_53 : f32 to vector<1x128xf32>
    %107 = arith.mulf %105, %106 : vector<1x128xf32>
    %108 = vector.broadcast %107 : vector<1x128xf32> to vector<256x128xf32>
    %109 = arith.subf %95, %108 : vector<256x128xf32>
    %110 = arith.mulf %109, %109 : vector<256x128xf32>
    %cst_54 = arith.constant dense<0.000000e+00> : vector<128xf32>
    %111 = vector.multi_reduction <add>, %110, %cst_54 [0] : vector<256x128xf32> to vector<128xf32>
    %112 = vector.shape_cast %111 : vector<128xf32> to vector<1x128xf32>
    %c8_i32_55 = arith.constant 8 : i32
    %113 = tpu.dynamic_rotate %112 by %c8_i32_55 dim 1 : vector<1x128xf32>, i32 -> vector<1x128xf32>
    %114 = arith.addf %112, %113 : vector<1x128xf32>
    %c16_i32_56 = arith.constant 16 : i32
    %115 = tpu.dynamic_rotate %114 by %c16_i32_56 dim 1 : vector<1x128xf32>, i32 -> vector<1x128xf32>
    %116 = arith.addf %114, %115 : vector<1x128xf32>
    %c32_i32_57 = arith.constant 32 : i32
    %117 = tpu.dynamic_rotate %116 by %c32_i32_57 dim 1 : vector<1x128xf32>, i32 -> vector<1x128xf32>
    %118 = arith.addf %116, %117 : vector<1x128xf32>
    %c64_i32_58 = arith.constant 64 : i32
    %119 = tpu.dynamic_rotate %118 by %c64_i32_58 dim 1 : vector<1x128xf32>, i32 -> vector<1x128xf32>
    %120 = arith.addf %118, %119 : vector<1x128xf32>
    %cst_59 = arith.constant 2.44140625E-4 : f32
    %121 = vector.broadcast %cst_59 : f32 to vector<1x128xf32>
    %122 = arith.mulf %120, %121 : vector<1x128xf32>
    %cst_60 = arith.constant 9.99999974E-6 : f32
    %123 = vector.broadcast %cst_60 : f32 to vector<1x128xf32>
    %124 = arith.addf %122, %123 : vector<1x128xf32>
    %125 = math.rsqrt %124 : vector<1x128xf32>
    %126 = vector.broadcast %125 : vector<1x128xf32> to vector<256x128xf32>
    %127 = arith.mulf %109, %126 : vector<256x128xf32>
    %c0_61 = arith.constant 0 : index
    %c0_62 = arith.constant 0 : index
    %128 = vector.load %arg6[%c0_61, %c0_62] : memref<1x128xf32, #tpu.memory_space<vmem>>, vector<1x128xf32>
    %129 = vector.broadcast %128 : vector<1x128xf32> to vector<256x128xf32>
    %130 = arith.mulf %127, %129 : vector<256x128xf32>
    %c0_63 = arith.constant 0 : index
    %c0_64 = arith.constant 0 : index
    %131 = vector.load %arg7[%c0_63, %c0_64] : memref<1x128xf32, #tpu.memory_space<vmem>>, vector<1x128xf32>
    %132 = vector.broadcast %131 : vector<1x128xf32> to vector<256x128xf32>
    %133 = arith.addf %130, %132 : vector<256x128xf32>
    %134 = arith.addf %133, %0 : vector<256x128xf32>
    %cst_65 = arith.constant 0.000000e+00 : f32
    %135 = vector.broadcast %cst_65 : f32 to vector<256x128xf32>
    %136 = arith.maximumf %134, %135 : vector<256x128xf32>
    %c0_66 = arith.constant 0 : index
    %c0_67 = arith.constant 0 : index
    %137 = vector.load %arg8[%c0_66, %c0_67] : memref<256x128xf32, #tpu.memory_space<vmem>>, vector<256x128xf32>
    tpu.vector_store %arg8[%c0_66, %c0_67], %136 {strides = array<i32>} : memref<256x128xf32, #tpu.memory_space<vmem>>, vector<256x128xf32>,
    return
  }
  func.func @transform_0(%arg0: i32) -> (i32, i32) {
    %c0_i32 = arith.constant 0 : i32
    %c0_i32_0 = arith.constant 0 : i32
    %c0_i32_1 = arith.constant 0 : i32
    return %c0_i32, %c0_i32_0 : i32, i32
  }
  func.func @transform_1(%arg0: i32) -> (i32, i32, i32) {
    %c0_i32 = arith.constant 0 : i32
    %c0_i32_0 = arith.constant 0 : i32
    %c0_i32_1 = arith.constant 0 : i32
    %c0_i32_2 = arith.constant 0 : i32
    return %c0_i32, %c0_i32_0, %c0_i32_1 : i32, i32, i32
  }
  func.func @transform_2(%arg0: i32) -> (i32, i32) {
    %c0_i32 = arith.constant 0 : i32
    %c0_i32_0 = arith.constant 0 : i32
    %c0_i32_1 = arith.constant 0 : i32
    return %c0_i32, %c0_i32_0 : i32, i32
  }
  func.func @transform_3(%arg0: i32) -> (i32, i32) {
    %c0_i32 = arith.constant 0 : i32
    %c0_i32_0 = arith.constant 0 : i32
    %c0_i32_1 = arith.constant 0 : i32
    return %c0_i32, %c0_i32_0 : i32, i32
  }
  func.func @transform_4(%arg0: i32) -> (i32, i32, i32) {
    %c0_i32 = arith.constant 0 : i32
    %c0_i32_0 = arith.constant 0 : i32
    %c0_i32_1 = arith.constant 0 : i32
    %c0_i32_2 = arith.constant 0 : i32
    return %c0_i32, %c0_i32_0, %c0_i32_1 : i32, i32, i32
  }
  func.func @transform_5(%arg0: i32) -> (i32, i32) {
    %c0_i32 = arith.constant 0 : i32
    %c0_i32_0 = arith.constant 0 : i32
    %c0_i32_1 = arith.constant 0 : i32
    return %c0_i32, %c0_i32_0 : i32, i32
  }
  func.func @transform_6(%arg0: i32) -> (i32, i32) {
    %c0_i32 = arith.constant 0 : i32
    %c0_i32_0 = arith.constant 0 : i32
    %c0_i32_1 = arith.constant 0 : i32
    return %c0_i32, %c0_i32_0 : i32, i32
  }
  func.func @transform_7(%arg0: i32) -> (i32, i32) {
    %c0_i32 = arith.constant 0 : i32
    %c0_i32_0 = arith.constant 0 : i32
    %c0_i32_1 = arith.constant 0 : i32
    return %c0_i32, %c0_i32_0 : i32, i32
  }
}

</mosaic_0001>

<llo_original>
// kernel: tpu_custom_call.1
$region0: #{tpu_custom_call.1}
  #allocation0 [shape = 'u32[]', space=smem, size = 0x4, offset = 0x4, fixed_abs, tag = 'smem constant byte address 0x4 - core index']
  #allocation1 [shape = 'u32[144,128]{1,0:T(1,128)}', space=vmem, size = 0x12000, scoped, tag = 'internal scratch']
  %s0 = inlined_call_operand.hbm [shape: f32[256,128], index: 0, kind: input, shape index: {}]
  %s1 = inlined_call_operand.hbm [shape: f32[3,128,128], index: 1, kind: input, shape index: {}]
  %s2 = inlined_call_operand.vmem [shape: f32[1,128], index: 2, kind: input, shape index: {}]
  %s3 = inlined_call_operand.vmem [shape: f32[1,128], index: 3, kind: input, shape index: {}]
  %s4 = inlined_call_operand.hbm [shape: f32[3,128,128], index: 4, kind: input, shape index: {}]
  %s5 = inlined_call_operand.vmem [shape: f32[1,128], index: 5, kind: input, shape index: {}]
  %s6 = inlined_call_operand.vmem [shape: f32[1,128], index: 6, kind: input, shape index: {}]
  %s7 = inlined_call_operand.hbm [shape: f32[256,128], index: 7, kind: output, shape index: {}]
  %s8 = sld [smem:[#allocation0]]
  $region50: #{tpu_custom_call.1} parent=0
    _
  %s10 = ssub.s32 1, %s8
  %s11 = scalar_select 0, %s10, %s8
  $region1: #{tpu_custom_call.1} parent=0
    #allocation2 [shape = 'u8[131072]{0}', space=vmem, size = 0x20000, scoped, tag = 'input window, operand 0, single buffered']
    #allocation3 [shape = 's32[1]{0}', space=sflag, size = 0x4, scoped, tag = 'scoped memory for tpu_custom_call.1']
    #allocation4 [shape = 's32[1]{0}', space=sflag, size = 0x4, scoped, tag = 'scoped memory for tpu_custom_call.1']
    #allocation5 [shape = 'u8[196608]{0}', space=vmem, size = 0x30000, scoped, tag = 'input window, operand 1, single buffered']
    #allocation6 [shape = 's32[1]{0}', space=sflag, size = 0x4, scoped, tag = 'scoped memory for tpu_custom_call.1']
    #allocation7 [shape = 'u8[196608]{0}', space=vmem, size = 0x30000, scoped, tag = 'input window, operand 4, single buffered']
    #allocation8 [shape = 'u8[131072]{0}', space=vmem, size = 0x20000, scoped, tag = 'output window, operand 0, single buffered']
    %12 = vsyncpa [#allocation3], 0
    %13 = vsyncpa [#allocation6], 0
    %14 = vsyncpa [#allocation4], 0
    // Predicated region
    $region2: #{tpu_custom_call.1} parent=1 // pred_check
      _
    $region3: #{tpu_custom_call.1} parent=1 // pred_check_branch
      %16 = sbr.rel (0) target = $region5
    $region4: #{tpu_custom_call.1} parent=1 // pred_region
      %s18 = ssub.s32 4096, 4096
      %19 = vsyncadd [#allocation3], %s18
      %s20 = sshll.u32 [#allocation2], 4
      %s21 = int_to_ptr.vmem [resolvable:$true] %s20
      %26 = dma.hbm_to_vmem [thread:$0]  %s0, 4096, %s21, [#allocation3], 128, 128, 8
    $region5: #{tpu_custom_call.1} parent=1 // pred_fallthru
      _
    // Predicated region
    $region6: #{tpu_custom_call.1} parent=1 // pred_check
      _
    $region7: #{tpu_custom_call.1} parent=1 // pred_check_branch
      %28 = sbr.rel (0) target = $region9
    $region8: #{tpu_custom_call.1} parent=1 // pred_region
      %s30 = ssub.s32 6144, 6144
      %31 = vsyncadd [#allocation6], %s30
      %s32 = sshll.u32 [#allocation5], 4
      %s33 = int_to_ptr.vmem [resolvable:$true] %s32
      %38 = dma.hbm_to_vmem [thread:$0]  %s1, 6144, %s33, [#allocation6], 128, 128, 8
    $region9: #{tpu_custom_call.1} parent=1 // pred_fallthru
      _
    // Predicated region
    $region10: #{tpu_custom_call.1} parent=1 // pred_check
      _
    $region11: #{tpu_custom_call.1} parent=1 // pred_check_branch
      %40 = sbr.rel (0) target = $region13
    $region12: #{tpu_custom_call.1} parent=1 // pred_region
      _
    $region13: #{tpu_custom_call.1} parent=1 // pred_fallthru
      _
    // Predicated region
    $region14: #{tpu_custom_call.1} parent=1 // pred_check
      _
    $region15: #{tpu_custom_call.1} parent=1 // pred_check_branch
      %42 = sbr.rel (0) target = $region17
    $region16: #{tpu_custom_call.1} parent=1 // pred_region
      _
    $region17: #{tpu_custom_call.1} parent=1 // pred_fallthru
      _
    // Predicated region
    $region18: #{tpu_custom_call.1} parent=1 // pred_check
      _
    $region19: #{tpu_custom_call.1} parent=1 // pred_check_branch
      %44 = sbr.rel (0) target = $region21
    $region20: #{tpu_custom_call.1} parent=1 // pred_region
      %s46 = ssub.s32 6144, 6144
      %47 = vsyncadd [#allocation6], %s46
      %s48 = sshll.u32 [#allocation7], 4
      %s49 = int_to_ptr.vmem [resolvable:$true] %s48
      %54 = dma.hbm_to_vmem [thread:$0]  %s4, 6144, %s49, [#allocation6], 128, 128, 8
    $region21: #{tpu_custom_call.1} parent=1 // pred_fallthru
      _
    // Predicated region
    $region22: #{tpu_custom_call.1} parent=1 // pred_check
      _
    $region23: #{tpu_custom_call.1} parent=1 // pred_check_branch
      %56 = sbr.rel (0) target = $region25
    $region24: #{tpu_custom_call.1} parent=1 // pred_region
      _
    $region25: #{tpu_custom_call.1} parent=1 // pred_fallthru
      _
    // Predicated region
    $region26: #{tpu_custom_call.1} parent=1 // pred_check
      _
    $region27: #{tpu_custom_call.1} parent=1 // pred_check_branch
      %58 = sbr.rel (0) target = $region29
    $region28: #{tpu_custom_call.1} parent=1 // pred_region
      _
    $region29: #{tpu_custom_call.1} parent=1 // pred_fallthru
      _
    // Predicated region
    $region30: #{tpu_custom_call.1} parent=1 // pred_check
      _
    $region31: #{tpu_custom_call.1} parent=1 // pred_check_branch
      %60 = sbr.rel (0) target = $region33
    $region32: #{tpu_custom_call.1} parent=1 // pred_region
      %61 = dma.done [#allocation3], 4096
    $region33: #{tpu_custom_call.1} parent=1 // pred_fallthru
      _
    // Predicated region
    $region34: #{tpu_custom_call.1} parent=1 // pred_check
      _
    $region35: #{tpu_custom_call.1} parent=1 // pred_check_branch
      %63 = sbr.rel (0) target = $region37
    $region36: #{tpu_custom_call.1} parent=1 // pred_region
      %64 = dma.done [#allocation6], 6144
    $region37: #{tpu_custom_call.1} parent=1 // pred_fallthru
      _
    // Predicated region
    $region38: #{tpu_custom_call.1} parent=1 // pred_check
      _
    $region39: #{tpu_custom_call.1} parent=1 // pred_check_branch
      %66 = sbr.rel (0) target = $region41
    $region40: #{tpu_custom_call.1} parent=1 // pred_region
      %67 = dma.done [#allocation6], 6144
    $region41: #{tpu_custom_call.1} parent=1 // pred_fallthru
      _
    %v68 = vld [vmem:[#allocation2] sm:$0xff]
    %v69 = vld [vmem:[#allocation2 + $0x8] sm:$0xff]
    %v70 = vld [vmem:[#allocation2 + $0x10] sm:$0xff]
    %v71 = vld [vmem:[#allocation2 + $0x18] sm:$0xff]
    %v72 = vld [vmem:[#allocation2 + $0x20] sm:$0xff]
    %v73 = vld [vmem:[#allocation2 + $0x28] sm:$0xff]
    %v74 = vld [vmem:[#allocation2 + $0x30] sm:$0xff]
    %v75 = vld [vmem:[#allocation2 + $0x38] sm:$0xff]
    %v76 = vld [vmem:[#allocation2 + $0x40] sm:$0xff]
    %v77 = vld [vmem:[#allocation2 + $0x48] sm:$0xff]
    %v78 = vld [vmem:[#allocation2 + $0x50] sm:$0xff]
    %v79 = vld [vmem:[#allocation2 + $0x58] sm:$0xff]
    %v80 = vld [vmem:[#allocation2 + $0x60] sm:$0xff]
    %v81 = vld [vmem:[#allocation2 + $0x68] sm:$0xff]
    %v82 = vld [vmem:[#allocation2 + $0x70] sm:$0xff]
    %v83 = vld [vmem:[#allocation2 + $0x78] sm:$0xff]
    %v84 = vld [vmem:[#allocation2 + $0x80] sm:$0xff]
    %v85 = vld [vmem:[#allocation2 + $0x88] sm:$0xff]
    %v86 = vld [vmem:[#allocation2 + $0x90] sm:$0xff]
    %v87 = vld [vmem:[#allocation2 + $0x98] sm:$0xff]
    %v88 = vld [vmem:[#allocation2 + $0xa0] sm:$0xff]
    %v89 = vld [vmem:[#allocation2 + $0xa8] sm:$0xff]
    %v90 = vld [vmem:[#allocation2 + $0xb0] sm:$0xff]
    %v91 = vld [vmem:[#allocation2 + $0xb8] sm:$0xff]
    %v92 = vld [vmem:[#allocation2 + $0xc0] sm:$0xff]
    %v93 = vld [vmem:[#allocation2 + $0xc8] sm:$0xff]
    %v94 = vld [vmem:[#allocation2 + $0xd0] sm:$0xff]
    %v95 = vld [vmem:[#allocation2 + $0xd8] sm:$0xff]
    %v96 = vld [vmem:[#allocation2 + $0xe0] sm:$0xff]
    %v97 = vld [vmem:[#allocation2 + $0xe8] sm:$0xff]
    %v98 = vld [vmem:[#allocation2 + $0xf0] sm:$0xff]
    %v99 = vld [vmem:[#allocation2 + $0xf8] sm:$0xff]
    %v100 = vlaneseq
    %v101 = vshrl.u32 %v100, 7
    %v102 = vadd.s32 %v101, 8
    %v103 = vadd.s32 %v101, 16
    %v104 = vadd.s32 %v101, 24
    %v105 = vadd.s32 %v101, 32
    %v106 = vadd.s32 %v101, 40
    %v107 = vadd.s32 %v101, 48
    %v108 = vadd.s32 %v101, 56
    %v109 = vadd.s32 %v101, 64
    %v110 = vadd.s32 %v101, 72
    %v111 = vadd.s32 %v101, 80
    %v112 = vadd.s32 %v101, 88
    %v113 = vadd.s32 %v101, 96
    %v114 = vadd.s32 %v101, 104
    %v115 = vadd.s32 %v101, 112
    %v116 = vadd.s32 %v101, 120
    %v117 = vadd.s32 %v101, 128
    %v118 = vadd.s32 %v101, 136
    %v119 = vadd.s32 %v101, 144
    %v120 = vadd.s32 %v101, 152
    %v121 = vadd.s32 %v101, 160
    %v122 = vadd.s32 %v101, 168
    %v123 = vadd.s32 %v101, 176
    %v124 = vadd.s32 %v101, 184
    %v125 = vadd.s32 %v101, 192
    %v126 = vadd.s32 %v101, 200
    %v127 = vadd.s32 %v101, 208
    %v128 = vadd.s32 %v101, 216
    %v129 = vadd.s32 %v101, 224
    %v130 = vadd.s32 %v101, 232
    %v131 = vadd.s32 %v101, 240
    %v132 = vadd.s32 %v101, 248
    %vm133 = vcmp.lt.s32.totalorder %v101, 0
    %v134 = vsub.s32 0, %v101
    %v135 = vsel %vm133, %v134, %v101
    %v136 = vshrl.u32 %v135, 4
    %v137 = vand.u32 %v135, 15
    %v138 = vsub.s32 0, %v137
    %v139 = vsel %vm133, %v138, %v137
    %vm140 = vcmp.lt.s32.totalorder %v102, 0
    %v141 = vsub.s32 0, %v102
    %v142 = vsel %vm140, %v141, %v102
    %v143 = vshrl.u32 %v142, 4
    %v144 = vand.u32 %v142, 15
    %v145 = vsub.s32 0, %v144
    %v146 = vsel %vm140, %v145, %v144
    %vm147 = vcmp.lt.s32.totalorder %v103, 0
    %v148 = vsub.s32 0, %v103
    %v149 = vsel %vm147, %v148, %v103
    %v150 = vshrl.u32 %v149, 4
    %v151 = vand.u32 %v149, 15
    %v152 = vsub.s32 0, %v151
    %v153 = vsel %vm147, %v152, %v151
    %vm154 = vcmp.lt.s32.totalorder %v104, 0
    %v155 = vsub.s32 0, %v104
    %v156 = vsel %vm154, %v155, %v104
    %v157 = vshrl.u32 %v156, 4
    %v158 = vand.u32 %v156, 15
    %v159 = vsub.s32 0, %v158
    %v160 = vsel %vm154, %v159, %v158
    %vm161 = vcmp.lt.s32.totalorder %v105, 0
    %v162 = vsub.s32 0, %v105
    %v163 = vsel %vm161, %v162, %v105
    %v164 = vshrl.u32 %v163, 4
    %v165 = vand.u32 %v163, 15
    %v166 = vsub.s32 0, %v165
    %v167 = vsel %vm161, %v166, %v165
    %vm168 = vcmp.lt.s32.totalorder %v106, 0
    %v169 = vsub.s32 0, %v106
    %v170 = vsel %vm168, %v169, %v106
    %v171 = vshrl.u32 %v170, 4
    %v172 = vand.u32 %v170, 15
    %v173 = vsub.s32 0, %v172
    %v174 = vsel %vm168, %v173, %v172
    %vm175 = vcmp.lt.s32.totalorder %v107, 0
    %v176 = vsub.s32 0, %v107
    %v177 = vsel %vm175, %v176, %v107
    %v178 = vshrl.u32 %v177, 4
    %v179 = vand.u32 %v177, 15
    %v180 = vsub.s32 0, %v179
    %v181 = vsel %vm175, %v180, %v179
    %vm182 = vcmp.lt.s32.totalorder %v108, 0
    %v183 = vsub.s32 0, %v108
    %v184 = vsel %vm182, %v183, %v108
    %v185 = vshrl.u32 %v184, 4
    %v186 = vand.u32 %v184, 15
    %v187 = vsub.s32 0, %v186
    %v188 = vsel %vm182, %v187, %v186
    %vm189 = vcmp.lt.s32.totalorder %v109, 0
    %v190 = vsub.s32 0, %v109
    %v191 = vsel %vm189, %v190, %v109
    %v192 = vshrl.u32 %v191, 4
    %v193 = vand.u32 %v191, 15
    %v194 = vsub.s32 0, %v193
    %v195 = vsel %vm189, %v194, %v193
    %vm196 = vcmp.lt.s32.totalorder %v110, 0
    %v197 = vsub.s32 0, %v110
    %v198 = vsel %vm196, %v197, %v110
    %v199 = vshrl.u32 %v198, 4
    %v200 = vand.u32 %v198, 15
    %v201 = vsub.s32 0, %v200
    %v202 = vsel %vm196, %v201, %v200
    %vm203 = vcmp.lt.s32.totalorder %v111, 0
    %v204 = vsub.s32 0, %v111
    %v205 = vsel %vm203, %v204, %v111
    %v206 = vshrl.u32 %v205, 4
    %v207 = vand.u32 %v205, 15
    %v208 = vsub.s32 0, %v207
    %v209 = vsel %vm203, %v208, %v207
    %vm210 = vcmp.lt.s32.totalorder %v112, 0
    %v211 = vsub.s32 0, %v112
    %v212 = vsel %vm210, %v211, %v112
    %v213 = vshrl.u32 %v212, 4
    %v214 = vand.u32 %v212, 15
    %v215 = vsub.s32 0, %v214
    %v216 = vsel %vm210, %v215, %v214
    %vm217 = vcmp.lt.s32.totalorder %v113, 0
    %v218 = vsub.s32 0, %v113
    %v219 = vsel %vm217, %v218, %v113
    %v220 = vshrl.u32 %v219, 4
    %v221 = vand.u32 %v219, 15
    %v222 = vsub.s32 0, %v221
    %v223 = vsel %vm217, %v222, %v221
    %vm224 = vcmp.lt.s32.totalorder %v114, 0
    %v225 = vsub.s32 0, %v114
    %v226 = vsel %vm224, %v225, %v114
    %v227 = vshrl.u32 %v226, 4
    %v228 = vand.u32 %v226, 15
    %v229 = vsub.s32 0, %v228
    %v230 = vsel %vm224, %v229, %v228
    %vm231 = vcmp.lt.s32.totalorder %v115, 0
    %v232 = vsub.s32 0, %v115
    %v233 = vsel %vm231, %v232, %v115
    %v234 = vshrl.u32 %v233, 4
    %v235 = vand.u32 %v233, 15
    %v236 = vsub.s32 0, %v235
    %v237 = vsel %vm231, %v236, %v235
    %vm238 = vcmp.lt.s32.totalorder %v116, 0
    %v239 = vsub.s32 0, %v116
    %v240 = vsel %vm238, %v239, %v116
    %v241 = vshrl.u32 %v240, 4
    %v242 = vand.u32 %v240, 15
    %v243 = vsub.s32 0, %v242
    %v244 = vsel %vm238, %v243, %v242
    %vm245 = vcmp.lt.s32.totalorder %v117, 0
    %v246 = vsub.s32 0, %v117
    %v247 = vsel %vm245, %v246, %v117
    %v248 = vshrl.u32 %v247, 4
    %v249 = vand.u32 %v247, 15
    %v250 = vsub.s32 0, %v249
    %v251 = vsel %vm245, %v250, %v249
    %vm252 = vcmp.lt.s32.totalorder %v118, 0
    %v253 = vsub.s32 0, %v118
    %v254 = vsel %vm252, %v253, %v118
    %v255 = vshrl.u32 %v254, 4
    %v256 = vand.u32 %v254, 15
    %v257 = vsub.s32 0, %v256
    %v258 = vsel %vm252, %v257, %v256
    %vm259 = vcmp.lt.s32.totalorder %v119, 0
    %v260 = vsub.s32 0, %v119
    %v261 = vsel %vm259, %v260, %v119
    %v262 = vshrl.u32 %v261, 4
    %v263 = vand.u32 %v261, 15
    %v264 = vsub.s32 0, %v263
    %v265 = vsel %vm259, %v264, %v263
    %vm266 = vcmp.lt.s32.totalorder %v120, 0
    %v267 = vsub.s32 0, %v120
    %v268 = vsel %vm266, %v267, %v120
    %v269 = vshrl.u32 %v268, 4
    %v270 = vand.u32 %v268, 15
    %v271 = vsub.s32 0, %v270
    %v272 = vsel %vm266, %v271, %v270
    %vm273 = vcmp.lt.s32.totalorder %v121, 0
    %v274 = vsub.s32 0, %v121
    %v275 = vsel %vm273, %v274, %v121
    %v276 = vshrl.u32 %v275, 4
    %v277 = vand.u32 %v275, 15
    %v278 = vsub.s32 0, %v277
    %v279 = vsel %vm273, %v278, %v277
    %vm280 = vcmp.lt.s32.totalorder %v122, 0
    %v281 = vsub.s32 0, %v122
    %v282 = vsel %vm280, %v281, %v122
    %v283 = vshrl.u32 %v282, 4
    %v284 = vand.u32 %v282, 15
    %v285 = vsub.s32 0, %v284
    %v286 = vsel %vm280, %v285, %v284
    %vm287 = vcmp.lt.s32.totalorder %v123, 0
    %v288 = vsub.s32 0, %v123
    %v289 = vsel %vm287, %v288, %v123
    %v290 = vshrl.u32 %v289, 4
    %v291 = vand.u32 %v289, 15
    %v292 = vsub.s32 0, %v291
    %v293 = vsel %vm287, %v292, %v291
    %vm294 = vcmp.lt.s32.totalorder %v124, 0
    %v295 = vsub.s32 0, %v124
    %v296 = vsel %vm294, %v295, %v124
    %v297 = vshrl.u32 %v296, 4
    %v298 = vand.u32 %v296, 15
    %v299 = vsub.s32 0, %v298
    %v300 = vsel %vm294, %v299, %v298
    %vm301 = vcmp.lt.s32.totalorder %v125, 0
    %v302 = vsub.s32 0, %v125
    %v303 = vsel %vm301, %v302, %v125
    %v304 = vshrl.u32 %v303, 4
    %v305 = vand.u32 %v303, 15
    %v306 = vsub.s32 0, %v305
    %v307 = vsel %vm301, %v306, %v305
    %vm308 = vcmp.lt.s32.totalorder %v126, 0
    %v309 = vsub.s32 0, %v126
    %v310 = vsel %vm308, %v309, %v126
    %v311 = vshrl.u32 %v310, 4
    %v312 = vand.u32 %v310, 15
    %v313 = vsub.s32 0, %v312
    %v314 = vsel %vm308, %v313, %v312
    %vm315 = vcmp.lt.s32.totalorder %v127, 0
    %v316 = vsub.s32 0, %v127
    %v317 = vsel %vm315, %v316, %v127
    %v318 = vshrl.u32 %v317, 4
    %v319 = vand.u32 %v317, 15
    %v320 = vsub.s32 0, %v319
    %v321 = vsel %vm315, %v320, %v319
    %vm322 = vcmp.lt.s32.totalorder %v128, 0
    %v323 = vsub.s32 0, %v128
    %v324 = vsel %vm322, %v323, %v128
    %v325 = vshrl.u32 %v324, 4
    %v326 = vand.u32 %v324, 15
    %v327 = vsub.s32 0, %v326
    %v328 = vsel %vm322, %v327, %v326
    %vm329 = vcmp.lt.s32.totalorder %v129, 0
    %v330 = vsub.s32 0, %v129
    %v331 = vsel %vm329, %v330, %v129
    %v332 = vshrl.u32 %v331, 4
    %v333 = vand.u32 %v331, 15
    %v334 = vsub.s32 0, %v333
    %v335 = vsel %vm329, %v334, %v333
    %vm336 = vcmp.lt.s32.totalorder %v130, 0
    %v337 = vsub.s32 0, %v130
    %v338 = vsel %vm336, %v337, %v130
    %v339 = vshrl.u32 %v338, 4
    %v340 = vand.u32 %v338, 15
    %v341 = vsub.s32 0, %v340
    %v342 = vsel %vm336, %v341, %v340
    %vm343 = vcmp.lt.s32.totalorder %v131, 0
    %v344 = vsub.s32 0, %v131
    %v345 = vsel %vm343, %v344, %v131
    %v346 = vshrl.u32 %v345, 4
    %v347 = vand.u32 %v345, 15
    %v348 = vsub.s32 0, %v347
    %v349 = vsel %vm343, %v348, %v347
    %vm350 = vcmp.lt.s32.totalorder %v132, 0
    %v351 = vsub.s32 0, %v132
    %v352 = vsel %vm350, %v351, %v132
    %v353 = vshrl.u32 %v352, 4
    %v354 = vand.u32 %v352, 15
    %v355 = vsub.s32 0, %v354
    %v356 = vsel %vm350, %v355, %v354
    %vm357 = vcmp.ne.s32.totalorder %v139, 0
    %vm358 = vcmp.ne.s32.totalorder %v146, 0
    %vm359 = vcmp.ne.s32.totalorder %v153, 0
    %vm360 = vcmp.ne.s32.totalorder %v160, 0
    %vm361 = vcmp.ne.s32.totalorder %v167, 0
    %vm362 = vcmp.ne.s32.totalorder %v174, 0
    %vm363 = vcmp.ne.s32.totalorder %v181, 0
    %vm364 = vcmp.ne.s32.totalorder %v188, 0
    %vm365 = vcmp.ne.s32.totalorder %v195, 0
    %vm366 = vcmp.ne.s32.totalorder %v202, 0
    %vm367 = vcmp.ne.s32.totalorder %v209, 0
    %vm368 = vcmp.ne.s32.totalorder %v216, 0
    %vm369 = vcmp.ne.s32.totalorder %v223, 0
    %vm370 = vcmp.ne.s32.totalorder %v230, 0
    %vm371 = vcmp.ne.s32.totalorder %v237, 0
    %vm372 = vcmp.ne.s32.totalorder %v244, 0
    %vm373 = vcmp.ne.s32.totalorder %v251, 0
    %vm374 = vcmp.ne.s32.totalorder %v258, 0
    %vm375 = vcmp.ne.s32.totalorder %v265, 0
    %vm376 = vcmp.ne.s32.totalorder %v272, 0
    %vm377 = vcmp.ne.s32.totalorder %v279, 0
    %vm378 = vcmp.ne.s32.totalorder %v286, 0
    %vm379 = vcmp.ne.s32.totalorder %v293, 0
    %vm380 = vcmp.ne.s32.totalorder %v300, 0
    %vm381 = vcmp.ne.s32.totalorder %v307, 0
    %vm382 = vcmp.ne.s32.totalorder %v314, 0
    %vm383 = vcmp.ne.s32.totalorder %v321, 0
    %vm384 = vcmp.ne.s32.totalorder %v328, 0
    %vm385 = vcmp.ne.s32.totalorder %v335, 0
    %vm386 = vcmp.ne.s32.totalorder %v342, 0
    %vm387 = vcmp.ne.s32.totalorder %v349, 0
    %vm388 = vcmp.ne.s32.totalorder %v356, 0
    %vm389 = vcmp.lt.s32.totalorder %v139, 0
    %vm390 = vcmp.lt.s32.totalorder %v146, 0
    %vm391 = vcmp.lt.s32.totalorder %v153, 0
    %vm392 = vcmp.lt.s32.totalorder %v160, 0
    %vm393 = vcmp.lt.s32.totalorder %v167, 0
    %vm394 = vcmp.lt.s32.totalorder %v174, 0
    %vm395 = vcmp.lt.s32.totalorder %v181, 0
    %vm396 = vcmp.lt.s32.totalorder %v188, 0
    %vm397 = vcmp.lt.s32.totalorder %v195, 0
    %vm398 = vcmp.lt.s32.totalorder %v202, 0
    %vm399 = vcmp.lt.s32.totalorder %v209, 0
    %vm400 = vcmp.lt.s32.totalorder %v216, 0
    %vm401 = vcmp.lt.s32.totalorder %v223, 0
    %vm402 = vcmp.lt.s32.totalorder %v230, 0
    %vm403 = vcmp.lt.s32.totalorder %v237, 0
    %vm404 = vcmp.lt.s32.totalorder %v244, 0
    %vm405 = vcmp.lt.s32.totalorder %v251, 0
    %vm406 = vcmp.lt.s32.totalorder %v258, 0
    %vm407 = vcmp.lt.s32.totalorder %v265, 0
    %vm408 = vcmp.lt.s32.totalorder %v272, 0
    %vm409 = vcmp.lt.s32.totalorder %v279, 0
    %vm410 = vcmp.lt.s32.totalorder %v286, 0
    %vm411 = vcmp.lt.s32.totalorder %v293, 0
    %vm412 = vcmp.lt.s32.totalorder %v300, 0
    %vm413 = vcmp.lt.s32.totalorder %v307, 0
    %vm414 = vcmp.lt.s32.totalorder %v314, 0
    %vm415 = vcmp.lt.s32.totalorder %v321, 0
    %vm416 = vcmp.lt.s32.totalorder %v328, 0
    %vm417 = vcmp.lt.s32.totalorder %v335, 0
    %vm418 = vcmp.lt.s32.totalorder %v342, 0
    %vm419 = vcmp.lt.s32.totalorder %v349, 0
    %vm420 = vcmp.lt.s32.totalorder %v356, 0
    %vm421 = vmand %vm389, %vm357
    %vm422 = vmand %vm390, %vm358
    %vm423 = vmand %vm391, %vm359
    %vm424 = vmand %vm392, %vm360
    %vm425 = vmand %vm393, %vm361
    %vm426 = vmand %vm394, %vm362
    %vm427 = vmand %vm395, %vm363
    %vm428 = vmand %vm396, %vm364
    %vm429 = vmand %vm397, %vm365
    %vm430 = vmand %vm398, %vm366
    %vm431 = vmand %vm399, %vm367
    %vm432 = vmand %vm400, %vm368
    %vm433 = vmand %vm401, %vm369
    %vm434 = vmand %vm402, %vm370
    %vm435 = vmand %vm403, %vm371
    %vm436 = vmand %vm404, %vm372
    %vm437 = vmand %vm405, %vm373
    %vm438 = vmand %vm406, %vm374
    %vm439 = vmand %vm407, %vm375
    %vm440 = vmand %vm408, %vm376
    %vm441 = vmand %vm409, %vm377
    %vm442 = vmand %vm410, %vm378
    %vm443 = vmand %vm411, %vm379
    %vm444 = vmand %vm412, %vm380
    %vm445 = vmand %vm413, %vm381
    %vm446 = vmand %vm414, %vm382
    %vm447 = vmand %vm415, %vm383
    %vm448 = vmand %vm416, %vm384
    %vm449 = vmand %vm417, %vm385
    %vm450 = vmand %vm418, %vm386
    %vm451 = vmand %vm419, %vm387
    %vm452 = vmand %vm420, %vm388
    %v453 = vadd.s32 %v139, 16
    %v454 = vadd.s32 %v146, 16
    %v455 = vadd.s32 %v153, 16
    %v456 = vadd.s32 %v160, 16
    %v457 = vadd.s32 %v167, 16
    %v458 = vadd.s32 %v174, 16
    %v459 = vadd.s32 %v181, 16
    %v460 = vadd.s32 %v188, 16
    %v461 = vadd.s32 %v195, 16
    %v462 = vadd.s32 %v202, 16
    %v463 = vadd.s32 %v209, 16
    %v464 = vadd.s32 %v216, 16
    %v465 = vadd.s32 %v223, 16
    %v466 = vadd.s32 %v230, 16
    %v467 = vadd.s32 %v237, 16
    %v468 = vadd.s32 %v244, 16
    %v469 = vadd.s32 %v251, 16
    %v470 = vadd.s32 %v258, 16
    %v471 = vadd.s32 %v265, 16
    %v472 = vadd.s32 %v272, 16
    %v473 = vadd.s32 %v279, 16
    %v474 = vadd.s32 %v286, 16
    %v475 = vadd.s32 %v293, 16
    %v476 = vadd.s32 %v300, 16
    %v477 = vadd.s32 %v307, 16
    %v478 = vadd.s32 %v314, 16
    %v479 = vadd.s32 %v321, 16
    %v480 = vadd.s32 %v328, 16
    %v481 = vadd.s32 %v335, 16
    %v482 = vadd.s32 %v342, 16
    %v483 = vadd.s32 %v349, 16
    %v484 = vadd.s32 %v356, 16
    %v485 = vsel %vm421, %v453, %v139
    %v486 = vsel %vm422, %v454, %v146
    %v487 = vsel %vm423, %v455, %v153
    %v488 = vsel %vm424, %v456, %v160
    %v489 = vsel %vm425, %v457, %v167
    %v490 = vsel %vm426, %v458, %v174
    %v491 = vsel %vm427, %v459, %v181
    %v492 = vsel %vm428, %v460, %v188
    %v493 = vsel %vm429, %v461, %v195
    %v494 = vsel %vm430, %v462, %v202
    %v495 = vsel %vm431, %v463, %v209
    %v496 = vsel %vm432, %v464, %v216
    %v497 = vsel %vm433, %v465, %v223
    %v498 = vsel %vm434, %v466, %v230
    %v499 = vsel %vm435, %v467, %v237
    %v500 = vsel %vm436, %v468, %v244
    %v501 = vsel %vm437, %v469, %v251
    %v502 = vsel %vm438, %v470, %v258
    %v503 = vsel %vm439, %v471, %v265
    %v504 = vsel %vm440, %v472, %v272
    %v505 = vsel %vm441, %v473, %v279
    %v506 = vsel %vm442, %v474, %v286
    %v507 = vsel %vm443, %v475, %v293
    %v508 = vsel %vm444, %v476, %v300
    %v509 = vsel %vm445, %v477, %v307
    %v510 = vsel %vm446, %v478, %v314
    %v511 = vsel %vm447, %v479, %v321
    %v512 = vsel %vm448, %v480, %v328
    %v513 = vsel %vm449, %v481, %v335
    %v514 = vsel %vm450, %v482, %v342
    %v515 = vsel %vm451, %v483, %v349
    %v516 = vsel %vm452, %v484, %v356
    %vm517 = vcmp.ne.s32.totalorder %v485, 0
    %vm518 = vcmp.ne.s32.totalorder %v486, 0
    %vm519 = vcmp.ne.s32.totalorder %v487, 0
    %vm520 = vcmp.ne.s32.totalorder %v488, 0
    %vm521 = vcmp.ne.s32.totalorder %v489, 0
    %vm522 = vcmp.ne.s32.totalorder %v490, 0
    %vm523 = vcmp.ne.s32.totalorder %v491, 0
    %vm524 = vcmp.ne.s32.totalorder %v492, 0
    %vm525 = vcmp.ne.s32.totalorder %v493, 0
    %vm526 = vcmp.ne.s32.totalorder %v494, 0
    %vm527 = vcmp.ne.s32.totalorder %v495, 0
    %vm528 = vcmp.ne.s32.totalorder %v496, 0
    %vm529 = vcmp.ne.s32.totalorder %v497, 0
    %vm530 = vcmp.ne.s32.totalorder %v498, 0
    %vm531 = vcmp.ne.s32.totalorder %v499, 0
    %vm532 = vcmp.ne.s32.totalorder %v500, 0
    %vm533 = vcmp.ne.s32.totalorder %v501, 0
    %vm534 = vcmp.ne.s32.totalorder %v502, 0
    %vm535 = vcmp.ne.s32.totalorder %v503, 0
    %vm536 = vcmp.ne.s32.totalorder %v504, 0
    %vm537 = vcmp.ne.s32.totalorder %v505, 0
    %vm538 = vcmp.ne.s32.totalorder %v506, 0
    %vm539 = vcmp.ne.s32.totalorder %v507, 0
    %vm540 = vcmp.ne.s32.totalorder %v508, 0
    %vm541 = vcmp.ne.s32.totalorder %v509, 0
    %vm542 = vcmp.ne.s32.totalorder %v510, 0
    %vm543 = vcmp.ne.s32.totalorder %v511, 0
    %vm544 = vcmp.ne.s32.totalorder %v512, 0
    %vm545 = vcmp.ne.s32.totalorder %v513, 0
    %vm546 = vcmp.ne.s32.totalorder %v514, 0
    %vm547 = vcmp.ne.s32.totalorder %v515, 0
    %vm548 = vcmp.ne.s32.totalorder %v516, 0
    %vm549 = vcmp.ne.s32.totalorder %v485, 15
    %vm550 = vcmp.ne.s32.totalorder %v486, 15
    %vm551 = vcmp.ne.s32.totalorder %v487, 15
    %vm552 = vcmp.ne.s32.totalorder %v488, 15
    %vm553 = vcmp.ne.s32.totalorder %v489, 15
    %vm554 = vcmp.ne.s32.totalorder %v490, 15
    %vm555 = vcmp.ne.s32.totalorder %v491, 15
    %vm556 = vcmp.ne.s32.totalorder %v492, 15
    %vm557 = vcmp.ne.s32.totalorder %v493, 15
    %vm558 = vcmp.ne.s32.totalorder %v494, 15
    %vm559 = vcmp.ne.s32.totalorder %v495, 15
    %vm560 = vcmp.ne.s32.totalorder %v496, 15
    %vm561 = vcmp.ne.s32.totalorder %v497, 15
    %vm562 = vcmp.ne.s32.totalorder %v498, 15
    %vm563 = vcmp.ne.s32.totalorder %v499, 15
    %vm564 = vcmp.ne.s32.totalorder %v500, 15
    %vm565 = vcmp.ne.s32.totalorder %v501, 15
    %vm566 = vcmp.ne.s32.totalorder %v502, 15
    %vm567 = vcmp.ne.s32.totalorder %v503, 15
    %vm568 = vcmp.ne.s32.totalorder %v504, 15
    %vm569 = vcmp.ne.s32.totalorder %v505, 15
    %vm570 = vcmp.ne.s32.totalorder %v506, 15
    %vm571 = vcmp.ne.s32.totalorder %v507, 15
    %vm572 = vcmp.ne.s32.totalorder %v508, 15
    %vm573 = vcmp.ne.s32.totalorder %v509, 15
    %vm574 = vcmp.ne.s32.totalorder %v510, 15
    %vm575 = vcmp.ne.s32.totalorder %v511, 15
    %vm576 = vcmp.ne.s32.totalorder %v512, 15
    %vm577 = vcmp.ne.s32.totalorder %v513, 15
    %vm578 = vcmp.ne.s32.totalorder %v514, 15
    %vm579 = vcmp.ne.s32.totalorder %v515, 15
    %vm580 = vcmp.ne.s32.totalorder %v516, 15
    %v581 = vrot.slane %v68, 7
    %v582 = vrot.slane %v69, 7
    %v583 = vrot.slane %v70, 7
    %v584 = vrot.slane %v71, 7
    %v585 = vrot.slane %v72, 7
    %v586 = vrot.slane %v73, 7
    %v587 = vrot.slane %v74, 7
    %v588 = vrot.slane %v75, 7
    %v589 = vrot.slane %v76, 7
    %v590 = vrot.slane %v77, 7
    %v591 = vrot.slane %v78, 7
    %v592 = vrot.slane %v79, 7
    %v593 = vrot.slane %v80, 7
    %v594 = vrot.slane %v81, 7
    %v595 = vrot.slane %v82, 7
    %v596 = vrot.slane %v83, 7
    %v597 = vrot.slane %v84, 7
    %v598 = vrot.slane %v85, 7
    %v599 = vrot.slane %v86, 7
    %v600 = vrot.slane %v87, 7
    %v601 = vrot.slane %v88, 7
    %v602 = vrot.slane %v89, 7
    %v603 = vrot.slane %v90, 7
    %v604 = vrot.slane %v91, 7
    %v605 = vrot.slane %v92, 7
    %v606 = vrot.slane %v93, 7
    %v607 = vrot.slane %v94, 7
    %v608 = vrot.slane %v95, 7
    %v609 = vrot.slane %v96, 7
    %v610 = vrot.slane %v97, 7
    %v611 = vrot.slane %v98, 7
    %v612 = vrot.slane %v99, 7
    %vm613 = vcmp.lt.s32.totalorder %v101, 1
    %v614 = vsel %vm613, %v611, %v612
    %v615 = vsel %vm613, %v610, %v611
    %v616 = vsel %vm613, %v609, %v610
    %v617 = vsel %vm613, %v608, %v609
    %v618 = vsel %vm613, %v607, %v608
    %v619 = vsel %vm613, %v606, %v607
    %v620 = vsel %vm613, %v605, %v606
    %v621 = vsel %vm613, %v604, %v605
    %v622 = vsel %vm613, %v603, %v604
    %v623 = vsel %vm613, %v602, %v603
    %v624 = vsel %vm613, %v601, %v602
    %v625 = vsel %vm613, %v600, %v601
    %v626 = vsel %vm613, %v599, %v600
    %v627 = vsel %vm613, %v598, %v599
    %v628 = vsel %vm613, %v597, %v598
    %v629 = vsel %vm613, %v596, %v597
    %v630 = vsel %vm613, %v595, %v596
    %v631 = vsel %vm613, %v594, %v595
    %v632 = vsel %vm613, %v593, %v594
    %v633 = vsel %vm613, %v592, %v593
    %v634 = vsel %vm613, %v591, %v592
    %v635 = vsel %vm613, %v590, %v591
    %v636 = vsel %vm613, %v589, %v590
    %v637 = vsel %vm613, %v588, %v589
    %v638 = vsel %vm613, %v587, %v588
    %v639 = vsel %vm613, %v586, %v587
    %v640 = vsel %vm613, %v585, %v586
    %v641 = vsel %vm613, %v584, %v585
    %v642 = vsel %vm613, %v583, %v584
    %v643 = vsel %vm613, %v582, %v583
    %v644 = vsel %vm613, %v581, %v582
    %v645 = vsel %vm613, %v612, %v581
    %v646 = vsel %vm517, %v645, 0.0
    %v647 = vsel %vm518, %v644, 0.0
    %v648 = vsel %vm519, %v643, 0.0
    %v649 = vsel %vm520, %v642, 0.0
    %v650 = vsel %vm521, %v641, 0.0
    %v651 = vsel %vm522, %v640, 0.0
    %v652 = vsel %vm523, %v639, 0.0
    %v653 = vsel %vm524, %v638, 0.0
    %v654 = vsel %vm525, %v637, 0.0
    %v655 = vsel %vm526, %v636, 0.0
    %v656 = vsel %vm527, %v635, 0.0
    %v657 = vsel %vm528, %v634, 0.0
    %v658 = vsel %vm529, %v633, 0.0
    %v659 = vsel %vm530, %v632, 0.0
    %v660 = vsel %vm531, %v631, 0.0
    %v661 = vsel %vm532, %v630, 0.0
    %v662 = vsel %vm533, %v629, 0.0
    %v663 = vsel %vm534, %v628, 0.0
    %v664 = vsel %vm535, %v627, 0.0
    %v665 = vsel %vm536, %v626, 0.0
    %v666 = vsel %vm537, %v625, 0.0
    %v667 = vsel %vm538, %v624, 0.0
    %v668 = vsel %vm539, %v623, 0.0
    %v669 = vsel %vm540, %v622, 0.0
    %v670 = vsel %vm541, %v621, 0.0
    %v671 = vsel %vm542, %v620, 0.0
    %v672 = vsel %vm543, %v619, 0.0
    %v673 = vsel %vm544, %v618, 0.0
    %v674 = vsel %vm545, %v617, 0.0
    %v675 = vsel %vm546, %v616, 0.0
    %v676 = vsel %vm547, %v615, 0.0
    %v677 = vsel %vm548, %v614, 0.0
    %v678 = vrot.slane %v68, 1
    %v679 = vrot.slane %v69, 1
    %v680 = vrot.slane %v70, 1
    %v681 = vrot.slane %v71, 1
    %v682 = vrot.slane %v72, 1
    %v683 = vrot.slane %v73, 1
    %v684 = vrot.slane %v74, 1
    %v685 = vrot.slane %v75, 1
    %v686 = vrot.slane %v76, 1
    %v687 = vrot.slane %v77, 1
    %v688 = vrot.slane %v78, 1
    %v689 = vrot.slane %v79, 1
    %v690 = vrot.slane %v80, 1
    %v691 = vrot.slane %v81, 1
    %v692 = vrot.slane %v82, 1
    %v693 = vrot.slane %v83, 1
    %v694 = vrot.slane %v84, 1
    %v695 = vrot.slane %v85, 1
    %v696 = vrot.slane %v86, 1
    %v697 = vrot.slane %v87, 1
    %v698 = vrot.slane %v88, 1
    %v699 = vrot.slane %v89, 1
    %v700 = vrot.slane %v90, 1
    %v701 = vrot.slane %v91, 1
    %v702 = vrot.slane %v92, 1
    %v703 = vrot.slane %v93, 1
    %v704 = vrot.slane %v94, 1
    %v705 = vrot.slane %v95, 1
    %v706 = vrot.slane %v96, 1
    %v707 = vrot.slane %v97, 1
    %v708 = vrot.slane %v98, 1
    %v709 = vrot.slane %v99, 1
    %vm710 = vcmp.lt.s32.totalorder %v101, 7
    %v711 = vsel %vm710, %v708, %v709
    %v712 = vsel %vm710, %v707, %v708
    %v713 = vsel %vm710, %v706, %v707
    %v714 = vsel %vm710, %v705, %v706
    %v715 = vsel %vm710, %v704, %v705
    %v716 = vsel %vm710, %v703, %v704
    %v717 = vsel %vm710, %v702, %v703
    %v718 = vsel %vm710, %v701, %v702
    %v719 = vsel %vm710, %v700, %v701
    %v720 = vsel %vm710, %v699, %v700
    %v721 = vsel %vm710, %v698, %v699
    %v722 = vsel %vm710, %v697, %v698
    %v723 = vsel %vm710, %v696, %v697
    %v724 = vsel %vm710, %v695, %v696
    %v725 = vsel %vm710, %v694, %v695
    %v726 = vsel %vm710, %v693, %v694
    %v727 = vsel %vm710, %v692, %v693
    %v728 = vsel %vm710, %v691, %v692
    %v729 = vsel %vm710, %v690, %v691
    %v730 = vsel %vm710, %v689, %v690
    %v731 = vsel %vm710, %v688, %v689
    %v732 = vsel %vm710, %v687, %v688
    %v733 = vsel %vm710, %v686, %v687
    %v734 = vsel %vm710, %v685, %v686
    %v735 = vsel %vm710, %v684, %v685
    %v736 = vsel %vm710, %v683, %v684
    %v737 = vsel %vm710, %v682, %v683
    %v738 = vsel %vm710, %v681, %v682
    %v739 = vsel %vm710, %v680, %v681
    %v740 = vsel %vm710, %v679, %v680
    %v741 = vsel %vm710, %v678, %v679
    %v742 = vsel %vm710, %v709, %v678
    %v743 = vsel %vm549, %v741, 0.0
    %v744 = vsel %vm550, %v740, 0.0
    %v745 = vsel %vm551, %v739, 0.0
    %v746 = vsel %vm552, %v738, 0.0
    %v747 = vsel %vm553, %v737, 0.0
    %v748 = vsel %vm554, %v736, 0.0
    %v749 = vsel %vm555, %v735, 0.0
    %v750 = vsel %vm556, %v734, 0.0
    %v751 = vsel %vm557, %v733, 0.0
    %v752 = vsel %vm558, %v732, 0.0
    %v753 = vsel %vm559, %v731, 0.0
    %v754 = vsel %vm560, %v730, 0.0
    %v755 = vsel %vm561, %v729, 0.0
    %v756 = vsel %vm562, %v728, 0.0
    %v757 = vsel %vm563, %v727, 0.0
    %v758 = vsel %vm564, %v726, 0.0
    %v759 = vsel %vm565, %v725, 0.0
    %v760 = vsel %vm566, %v724, 0.0
    %v761 = vsel %vm567, %v723, 0.0
    %v762 = vsel %vm568, %v722, 0.0
    %v763 = vsel %vm569, %v721, 0.0
    %v764 = vsel %vm570, %v720, 0.0
    %v765 = vsel %vm571, %v719, 0.0
    %v766 = vsel %vm572, %v718, 0.0
    %v767 = vsel %vm573, %v717, 0.0
    %v768 = vsel %vm574, %v716, 0.0
    %v769 = vsel %vm575, %v715, 0.0
    %v770 = vsel %vm576, %v714, 0.0
    %v771 = vsel %vm577, %v713, 0.0
    %v772 = vsel %vm578, %v712, 0.0
    %v773 = vsel %vm579, %v711, 0.0
    %v774 = vsel %vm580, %v742, 0.0
    %v775 = vld [vmem:[#allocation5] sm:$0xff]
    %v776 = vld [vmem:[#allocation5 + $0x8] sm:$0xff]
    %v777 = vld [vmem:[#allocation5 + $0x10] sm:$0xff]
    %v778 = vld [vmem:[#allocation5 + $0x18] sm:$0xff]
    %v779 = vld [vmem:[#allocation5 + $0x20] sm:$0xff]
    %v780 = vld [vmem:[#allocation5 + $0x28] sm:$0xff]
    %v781 = vld [vmem:[#allocation5 + $0x30] sm:$0xff]
    %v782 = vld [vmem:[#allocation5 + $0x38] sm:$0xff]
    %v783 = vld [vmem:[#allocation5 + $0x40] sm:$0xff]
    %v784 = vld [vmem:[#allocation5 + $0x48] sm:$0xff]
    %v785 = vld [vmem:[#allocation5 + $0x50] sm:$0xff]
    %v786 = vld [vmem:[#allocation5 + $0x58] sm:$0xff]
    %v787 = vld [vmem:[#allocation5 + $0x60] sm:$0xff]
    %v788 = vld [vmem:[#allocation5 + $0x68] sm:$0xff]
    %v789 = vld [vmem:[#allocation5 + $0x70] sm:$0xff]
    %v790 = vld [vmem:[#allocation5 + $0x78] sm:$0xff]
    %s791 = scalar_lea.vmem [#allocation5], 128
    %v792 = vld [vmem:[%s791] sm:$0xff]
    %v793 = vld [vmem:[%s791 + $0x8] sm:$0xff]
    %v794 = vld [vmem:[%s791 + $0x10] sm:$0xff]
    %v795 = vld [vmem:[%s791 + $0x18] sm:$0xff]
    %v796 = vld [vmem:[%s791 + $0x20] sm:$0xff]
    %v797 = vld [vmem:[%s791 + $0x28] sm:$0xff]
    %v798 = vld [vmem:[%s791 + $0x30] sm:$0xff]
    %v799 = vld [vmem:[%s791 + $0x38] sm:$0xff]
    %v800 = vld [vmem:[%s791 + $0x40] sm:$0xff]
    %v801 = vld [vmem:[%s791 + $0x48] sm:$0xff]
    %v802 = vld [vmem:[%s791 + $0x50] sm:$0xff]
    %v803 = vld [vmem:[%s791 + $0x58] sm:$0xff]
    %v804 = vld [vmem:[%s791 + $0x60] sm:$0xff]
    %v805 = vld [vmem:[%s791 + $0x68] sm:$0xff]
    %v806 = vld [vmem:[%s791 + $0x70] sm:$0xff]
    %v807 = vld [vmem:[%s791 + $0x78] sm:$0xff]
    %808 = vmatprep.subr.mxu0 0.0
    %809 = vmatpush1.msra.mxu0 %v807
    %810 = vmatprep.subr.mxu0 0.0
    %811 = vmatpush1.msra.mxu0 %v806
    %812 = vmatprep.subr.mxu0 0.0
    %813 = vmatpush1.msra.mxu0 %v805
    %814 = vmatprep.subr.mxu0 0.0
    %815 = vmatpush1.msra.mxu0 %v804
    %816 = vmatprep.subr.mxu0 0.0
    %817 = vmatpush1.msra.mxu0 %v803
    %818 = vmatprep.subr.mxu0 0.0
    %819 = vmatpush1.msra.mxu0 %v802
    %820 = vmatprep.subr.mxu0 0.0
    %821 = vmatpush1.msra.mxu0 %v801
    %822 = vmatprep.subr.mxu0 0.0
    %823 = vmatpush1.msra.mxu0 %v800
    %824 = vmatprep.subr.mxu0 0.0
    %825 = vmatpush1.msra.mxu0 %v799
    %826 = vmatprep.subr.mxu0 0.0
    %827 = vmatpush1.msra.mxu0 %v798
    %828 = vmatprep.subr.mxu0 0.0
    %829 = vmatpush1.msra.mxu0 %v797
    %830 = vmatprep.subr.mxu0 0.0
    %831 = vmatpush1.msra.mxu0 %v796
    %832 = vmatprep.subr.mxu0 0.0
    %833 = vmatpush1.msra.mxu0 %v795
    %834 = vmatprep.subr.mxu0 0.0
    %835 = vmatpush1.msra.mxu0 %v794
    %836 = vmatprep.subr.mxu0 0.0
    %837 = vmatpush1.msra.mxu0 %v793
    %838 = vmatprep.subr.mxu0 0.0
    %839 = vmatpush1.msra.mxu0 %v792
    %840 = vmatprep.subr.mxu0 0.0
    %841 = vmatpush2.msra.mxu0 0.0
    %842 = vmatprep.subr.mxu0 0.0
    %843 = vmatpush2.msra.mxu0 0.0
    %844 = vmatprep.subr.mxu0 0.0
    %845 = vmatpush2.msra.mxu0 0.0
    %846 = vmatprep.subr.mxu0 0.0
    %847 = vmatpush2.msra.mxu0 0.0
    %848 = vmatprep.subr.mxu0 0.0
    %849 = vmatpush2.msra.mxu0 0.0
    %850 = vmatprep.subr.mxu0 0.0
    %851 = vmatpush2.msra.mxu0 0.0
    %852 = vmatprep.subr.mxu0 0.0
    %853 = vmatpush2.msra.mxu0 0.0
    %854 = vmatprep.subr.mxu0 0.0
    %855 = vmatpush2.msra.mxu0 0.0
    %856 = vmatprep.subr.mxu0 0.0
    %857 = vmatpush2.msra.mxu0 0.0
    %858 = vmatprep.subr.mxu0 0.0
    %859 = vmatpush2.msra.mxu0 0.0
    %860 = vmatprep.subr.mxu0 0.0
    %861 = vmatpush2.msra.mxu0 0.0
    %862 = vmatprep.subr.mxu0 0.0
    %863 = vmatpush2.msra.mxu0 0.0
    %864 = vmatprep.subr.mxu0 0.0
    %865 = vmatpush2.msra.mxu0 0.0
    %866 = vmatprep.subr.mxu0 0.0
    %867 = vmatpush2.msra.mxu0 0.0
    %868 = vmatprep.subr.mxu0 0.0
    %869 = vmatpush2.msra.mxu0 0.0
    %870 = vmatprep.subr.mxu0 0.0
    %871 = vmatpush2.msra.mxu0 0.0
    %872 = vmatprep.mubr.f32.mxu0 0.0
    %873 = vmatmul.mubr.f32.gmra.mxu0 %v68
    %v874 = vpop.f32.mrf.mxu0
    %v875 = vadd.f32 0.0, %v874
    %v876 = vpop.f32.mrf.mxu0
    %877 = vmatprep.mubr.f32.mxu0 0.0
    %878 = vmatmul.mubr.f32.gmra.mxu0 %v69
    %v879 = vpop.f32.mrf.mxu0
    %v880 = vadd.f32 0.0, %v879
    %v881 = vpop.f32.mrf.mxu0
    %882 = vmatprep.mubr.f32.mxu0 0.0
    %883 = vmatmul.mubr.f32.gmra.mxu0 %v70
    %v884 = vpop.f32.mrf.mxu0
    %v885 = vadd.f32 0.0, %v884
    %v886 = vpop.f32.mrf.mxu0
    %887 = vmatprep.mubr.f32.mxu0 0.0
    %888 = vmatmul.mubr.f32.gmra.mxu0 %v71
    %v889 = vpop.f32.mrf.mxu0
    %v890 = vadd.f32 0.0, %v889
    %v891 = vpop.f32.mrf.mxu0
    %892 = vmatprep.mubr.f32.mxu0 0.0
    %893 = vmatmul.mubr.f32.gmra.mxu0 %v72
    %v894 = vpop.f32.mrf.mxu0
    %v895 = vadd.f32 0.0, %v894
    %v896 = vpop.f32.mrf.mxu0
    %897 = vmatprep.mubr.f32.mxu0 0.0
    %898 = vmatmul.mubr.f32.gmra.mxu0 %v73
    %v899 = vpop.f32.mrf.mxu0
    %v900 = vadd.f32 0.0, %v899
    %v901 = vpop.f32.mrf.mxu0
    %902 = vmatprep.mubr.f32.mxu0 0.0
    %903 = vmatmul.mubr.f32.gmra.mxu0 %v74
    %v904 = vpop.f32.mrf.mxu0
    %v905 = vadd.f32 0.0, %v904
    %v906 = vpop.f32.mrf.mxu0
    %907 = vmatprep.mubr.f32.mxu0 0.0
    %908 = vmatmul.mubr.f32.gmra.mxu0 %v75
    %v909 = vpop.f32.mrf.mxu0
    %v910 = vadd.f32 0.0, %v909
    %v911 = vpop.f32.mrf.mxu0
    %912 = vmatprep.mubr.f32.mxu0 0.0
    %913 = vmatmul.mubr.f32.gmra.mxu0 %v76
    %v914 = vpop.f32.mrf.mxu0
    %v915 = vadd.f32 0.0, %v914
    %v916 = vpop.f32.mrf.mxu0
    %917 = vmatprep.mubr.f32.mxu0 0.0
    %918 = vmatmul.mubr.f32.gmra.mxu0 %v77
    %v919 = vpop.f32.mrf.mxu0
    %v920 = vadd.f32 0.0, %v919
    %v921 = vpop.f32.mrf.mxu0
    %922 = vmatprep.mubr.f32.mxu0 0.0
    %923 = vmatmul.mubr.f32.gmra.mxu0 %v78
    %v924 = vpop.f32.mrf.mxu0
    %v925 = vadd.f32 0.0, %v924
    %v926 = vpop.f32.mrf.mxu0
    %927 = vmatprep.mubr.f32.mxu0 0.0
    %928 = vmatmul.mubr.f32.gmra.mxu0 %v79
    %v929 = vpop.f32.mrf.mxu0
    %v930 = vadd.f32 0.0, %v929
    %v931 = vpop.f32.mrf.mxu0
    %932 = vmatprep.mubr.f32.mxu0 0.0
    %933 = vmatmul.mubr.f32.gmra.mxu0 %v80
    %v934 = vpop.f32.mrf.mxu0
    %v935 = vadd.f32 0.0, %v934
    %v936 = vpop.f32.mrf.mxu0
    %937 = vmatprep.mubr.f32.mxu0 0.0
    %938 = vmatmul.mubr.f32.gmra.mxu0 %v81
    %v939 = vpop.f32.mrf.mxu0
    %v940 = vadd.f32 0.0, %v939
    %v941 = vpop.f32.mrf.mxu0
    %942 = vmatprep.mubr.f32.mxu0 0.0
    %943 = vmatmul.mubr.f32.gmra.mxu0 %v82
    %v944 = vpop.f32.mrf.mxu0
    %v945 = vadd.f32 0.0, %v944
    %v946 = vpop.f32.mrf.mxu0
    %947 = vmatprep.mubr.f32.mxu0 0.0
    %948 = vmatmul.mubr.f32.gmra.mxu0 %v83
    %v949 = vpop.f32.mrf.mxu0
    %v950 = vadd.f32 0.0, %v949
    %v951 = vpop.f32.mrf.mxu0
    %952 = vmatprep.mubr.f32.mxu0 0.0
    %953 = vmatmul.mubr.f32.gmra.mxu0 %v84
    %v954 = vpop.f32.mrf.mxu0
    %v955 = vadd.f32 0.0, %v954
    %v956 = vpop.f32.mrf.mxu0
    %957 = vmatprep.mubr.f32.mxu0 0.0
    %958 = vmatmul.mubr.f32.gmra.mxu0 %v85
    %v959 = vpop.f32.mrf.mxu0
    %v960 = vadd.f32 0.0, %v959
    %v961 = vpop.f32.mrf.mxu0
    %962 = vmatprep.mubr.f32.mxu0 0.0
    %963 = vmatmul.mubr.f32.gmra.mxu0 %v86
    %v964 = vpop.f32.mrf.mxu0
    %v965 = vadd.f32 0.0, %v964
    %v966 = vpop.f32.mrf.mxu0
    %967 = vmatprep.mubr.f32.mxu0 0.0
    %968 = vmatmul.mubr.f32.gmra.mxu0 %v87
    %v969 = vpop.f32.mrf.mxu0
    %v970 = vadd.f32 0.0, %v969
    %v971 = vpop.f32.mrf.mxu0
    %972 = vmatprep.mubr.f32.mxu0 0.0
    %973 = vmatmul.mubr.f32.gmra.mxu0 %v88
    %v974 = vpop.f32.mrf.mxu0
    %v975 = vadd.f32 0.0, %v974
    %v976 = vpop.f32.mrf.mxu0
    %977 = vmatprep.mubr.f32.mxu0 0.0
    %978 = vmatmul.mubr.f32.gmra.mxu0 %v89
    %v979 = vpop.f32.mrf.mxu0
    %v980 = vadd.f32 0.0, %v979
    %v981 = vpop.f32.mrf.mxu0
    %982 = vmatprep.mubr.f32.mxu0 0.0
    %983 = vmatmul.mubr.f32.gmra.mxu0 %v90
    %v984 = vpop.f32.mrf.mxu0
    %v985 = vadd.f32 0.0, %v984
    %v986 = vpop.f32.mrf.mxu0
    %987 = vmatprep.mubr.f32.mxu0 0.0
    %988 = vmatmul.mubr.f32.gmra.mxu0 %v91
    %v989 = vpop.f32.mrf.mxu0
    %v990 = vadd.f32 0.0, %v989
    %v991 = vpop.f32.mrf.mxu0
    %992 = vmatprep.mubr.f32.mxu0 0.0
    %993 = vmatmul.mubr.f32.gmra.mxu0 %v92
    %v994 = vpop.f32.mrf.mxu0
    %v995 = vadd.f32 0.0, %v994
    %v996 = vpop.f32.mrf.mxu0
    %997 = vmatprep.mubr.f32.mxu0 0.0
    %998 = vmatmul.mubr.f32.gmra.mxu0 %v93
    %v999 = vpop.f32.mrf.mxu0
    %v1000 = vadd.f32 0.0, %v999
    %v1001 = vpop.f32.mrf.mxu0
    %1002 = vmatprep.mubr.f32.mxu0 0.0
    %1003 = vmatmul.mubr.f32.gmra.mxu0 %v94
    %v1004 = vpop.f32.mrf.mxu0
    %v1005 = vadd.f32 0.0, %v1004
    %v1006 = vpop.f32.mrf.mxu0
    %1007 = vmatprep.mubr.f32.mxu0 0.0
    %1008 = vmatmul.mubr.f32.gmra.mxu0 %v95
    %v1009 = vpop.f32.mrf.mxu0
    %v1010 = vadd.f32 0.0, %v1009
    %v1011 = vpop.f32.mrf.mxu0
    %1012 = vmatprep.mubr.f32.mxu0 0.0
    %1013 = vmatmul.mubr.f32.gmra.mxu0 %v96
    %v1014 = vpop.f32.mrf.mxu0
    %v1015 = vadd.f32 0.0, %v1014
    %v1016 = vpop.f32.mrf.mxu0
    %1017 = vmatprep.mubr.f32.mxu0 0.0
    %1018 = vmatmul.mubr.f32.gmra.mxu0 %v97
    %v1019 = vpop.f32.mrf.mxu0
    %v1020 = vadd.f32 0.0, %v1019
    %v1021 = vpop.f32.mrf.mxu0
    %1022 = vmatprep.mubr.f32.mxu0 0.0
    %1023 = vmatmul.mubr.f32.gmra.mxu0 %v98
    %v1024 = vpop.f32.mrf.mxu0
    %v1025 = vadd.f32 0.0, %v1024
    %v1026 = vpop.f32.mrf.mxu0
    %1027 = vmatprep.mubr.f32.mxu0 0.0
    %1028 = vmatmul.mubr.f32.gmra.mxu0 %v99
    %v1029 = vpop.f32.mrf.mxu0
    %v1030 = vadd.f32 0.0, %v1029
    %v1031 = vpop.f32.mrf.mxu0
    %1032 = vdwg.mxu0
    %1033 = vmatprep.subr.mxu0 0.0
    %1034 = vmatpush1.msra.mxu0 %v790
    %1035 = vmatprep.subr.mxu0 0.0
    %1036 = vmatpush1.msra.mxu0 %v789
    %1037 = vmatprep.subr.mxu0 0.0
    %1038 = vmatpush1.msra.mxu0 %v788
    %1039 = vmatprep.subr.mxu0 0.0
    %1040 = vmatpush1.msra.mxu0 %v787
    %1041 = vmatprep.subr.mxu0 0.0
    %1042 = vmatpush1.msra.mxu0 %v786
    %1043 = vmatprep.subr.mxu0 0.0
    %1044 = vmatpush1.msra.mxu0 %v785
    %1045 = vmatprep.subr.mxu0 0.0
    %1046 = vmatpush1.msra.mxu0 %v784
    %1047 = vmatprep.subr.mxu0 0.0
    %1048 = vmatpush1.msra.mxu0 %v783
    %1049 = vmatprep.subr.mxu0 0.0
    %1050 = vmatpush1.msra.mxu0 %v782
    %1051 = vmatprep.subr.mxu0 0.0
    %1052 = vmatpush1.msra.mxu0 %v781
    %1053 = vmatprep.subr.mxu0 0.0
    %1054 = vmatpush1.msra.mxu0 %v780
    %1055 = vmatprep.subr.mxu0 0.0
    %1056 = vmatpush1.msra.mxu0 %v779
    %1057 = vmatprep.subr.mxu0 0.0
    %1058 = vmatpush1.msra.mxu0 %v778
    %1059 = vmatprep.subr.mxu0 0.0
    %1060 = vmatpush1.msra.mxu0 %v777
    %1061 = vmatprep.subr.mxu0 0.0
    %1062 = vmatpush1.msra.mxu0 %v776
    %1063 = vmatprep.subr.mxu0 0.0
    %1064 = vmatpush1.msra.mxu0 %v775
    %1065 = vmatprep.subr.mxu0 0.0
    %1066 = vmatpush2.msra.mxu0 0.0
    %1067 = vmatprep.subr.mxu0 0.0
    %1068 = vmatpush2.msra.mxu0 0.0
    %1069 = vmatprep.subr.mxu0 0.0
    %1070 = vmatpush2.msra.mxu0 0.0
    %1071 = vmatprep.subr.mxu0 0.0
    %1072 = vmatpush2.msra.mxu0 0.0
    %1073 = vmatprep.subr.mxu0 0.0
    %1074 = vmatpush2.msra.mxu0 0.0
    %1075 = vmatprep.subr.mxu0 0.0
    %1076 = vmatpush2.msra.mxu0 0.0
    %1077 = vmatprep.subr.mxu0 0.0
    %1078 = vmatpush2.msra.mxu0 0.0
    %1079 = vmatprep.subr.mxu0 0.0
    %1080 = vmatpush2.msra.mxu0 0.0
    %1081 = vmatprep.subr.mxu0 0.0
    %1082 = vmatpush2.msra.mxu0 0.0
    %1083 = vmatprep.subr.mxu0 0.0
    %1084 = vmatpush2.msra.mxu0 0.0
    %1085 = vmatprep.subr.mxu0 0.0
    %1086 = vmatpush2.msra.mxu0 0.0
    %1087 = vmatprep.subr.mxu0 0.0
    %1088 = vmatpush2.msra.mxu0 0.0
    %1089 = vmatprep.subr.mxu0 0.0
    %1090 = vmatpush2.msra.mxu0 0.0
    %1091 = vmatprep.subr.mxu0 0.0
    %1092 = vmatpush2.msra.mxu0 0.0
    %1093 = vmatprep.subr.mxu0 0.0
    %1094 = vmatpush2.msra.mxu0 0.0
    %1095 = vmatprep.subr.mxu0 0.0
    %1096 = vmatpush2.msra.mxu0 0.0
    %1097 = vmatprep.mubr.f32.mxu0 0.0
    %1098 = vmatmul.mubr.f32.gmra.mxu0 %v646
    %v1099 = vpop.f32.mrf.mxu0
    %v1100 = vadd.f32 %v875, %v1099
    %v1101 = vpop.f32.mrf.mxu0
    %1102 = vmatprep.mubr.f32.mxu0 0.0
    %1103 = vmatmul.mubr.f32.gmra.mxu0 %v647
    %v1104 = vpop.f32.mrf.mxu0
    %v1105 = vadd.f32 %v880, %v1104
    %v1106 = vpop.f32.mrf.mxu0
    %1107 = vmatprep.mubr.f32.mxu0 0.0
    %1108 = vmatmul.mubr.f32.gmra.mxu0 %v648
    %v1109 = vpop.f32.mrf.mxu0
    %v1110 = vadd.f32 %v885, %v1109
    %v1111 = vpop.f32.mrf.mxu0
    %1112 = vmatprep.mubr.f32.mxu0 0.0
    %1113 = vmatmul.mubr.f32.gmra.mxu0 %v649
    %v1114 = vpop.f32.mrf.mxu0
    %v1115 = vadd.f32 %v890, %v1114
    %v1116 = vpop.f32.mrf.mxu0
    %1117 = vmatprep.mubr.f32.mxu0 0.0
    %1118 = vmatmul.mubr.f32.gmra.mxu0 %v650
    %v1119 = vpop.f32.mrf.mxu0
    %v1120 = vadd.f32 %v895, %v1119
    %v1121 = vpop.f32.mrf.mxu0
    %1122 = vmatprep.mubr.f32.mxu0 0.0
    %1123 = vmatmul.mubr.f32.gmra.mxu0 %v651
    %v1124 = vpop.f32.mrf.mxu0
    %v1125 = vadd.f32 %v900, %v1124
    %v1126 = vpop.f32.mrf.mxu0
    %1127 = vmatprep.mubr.f32.mxu0 0.0
    %1128 = vmatmul.mubr.f32.gmra.mxu0 %v652
    %v1129 = vpop.f32.mrf.mxu0
    %v1130 = vadd.f32 %v905, %v1129
    %v1131 = vpop.f32.mrf.mxu0
    %1132 = vmatprep.mubr.f32.mxu0 0.0
    %1133 = vmatmul.mubr.f32.gmra.mxu0 %v653
    %v1134 = vpop.f32.mrf.mxu0
    %v1135 = vadd.f32 %v910, %v1134
    %v1136 = vpop.f32.mrf.mxu0
    %1137 = vmatprep.mubr.f32.mxu0 0.0
    %1138 = vmatmul.mubr.f32.gmra.mxu0 %v654
    %v1139 = vpop.f32.mrf.mxu0
    %v1140 = vadd.f32 %v915, %v1139
    %v1141 = vpop.f32.mrf.mxu0
    %1142 = vmatprep.mubr.f32.mxu0 0.0
    %1143 = vmatmul.mubr.f32.gmra.mxu0 %v655
    %v1144 = vpop.f32.mrf.mxu0
    %v1145 = vadd.f32 %v920, %v1144
    %v1146 = vpop.f32.mrf.mxu0
    %1147 = vmatprep.mubr.f32.mxu0 0.0
    %1148 = vmatmul.mubr.f32.gmra.mxu0 %v656
    %v1149 = vpop.f32.mrf.mxu0
    %v1150 = vadd.f32 %v925, %v1149
    %v1151 = vpop.f32.mrf.mxu0
    %1152 = vmatprep.mubr.f32.mxu0 0.0
    %1153 = vmatmul.mubr.f32.gmra.mxu0 %v657
    %v1154 = vpop.f32.mrf.mxu0
    %v1155 = vadd.f32 %v930, %v1154
    %v1156 = vpop.f32.mrf.mxu0
    %1157 = vmatprep.mubr.f32.mxu0 0.0
    %1158 = vmatmul.mubr.f32.gmra.mxu0 %v658
    %v1159 = vpop.f32.mrf.mxu0
    %v1160 = vadd.f32 %v935, %v1159
    %v1161 = vpop.f32.mrf.mxu0
    %1162 = vmatprep.mubr.f32.mxu0 0.0
    %1163 = vmatmul.mubr.f32.gmra.mxu0 %v659
    %v1164 = vpop.f32.mrf.mxu0
    %v1165 = vadd.f32 %v940, %v1164
    %v1166 = vpop.f32.mrf.mxu0
    %1167 = vmatprep.mubr.f32.mxu0 0.0
    %1168 = vmatmul.mubr.f32.gmra.mxu0 %v660
    %v1169 = vpop.f32.mrf.mxu0
    %v1170 = vadd.f32 %v945, %v1169
    %v1171 = vpop.f32.mrf.mxu0
    %1172 = vmatprep.mubr.f32.mxu0 0.0
    %1173 = vmatmul.mubr.f32.gmra.mxu0 %v661
    %v1174 = vpop.f32.mrf.mxu0
    %v1175 = vadd.f32 %v950, %v1174
    %v1176 = vpop.f32.mrf.mxu0
    %1177 = vmatprep.mubr.f32.mxu0 0.0
    %1178 = vmatmul.mubr.f32.gmra.mxu0 %v662
    %v1179 = vpop.f32.mrf.mxu0
    %v1180 = vadd.f32 %v955, %v1179
    %v1181 = vpop.f32.mrf.mxu0
    %1182 = vmatprep.mubr.f32.mxu0 0.0
    %1183 = vmatmul.mubr.f32.gmra.mxu0 %v663
    %v1184 = vpop.f32.mrf.mxu0
    %v1185 = vadd.f32 %v960, %v1184
    %v1186 = vpop.f32.mrf.mxu0
    %1187 = vmatprep.mubr.f32.mxu0 0.0
    %1188 = vmatmul.mubr.f32.gmra.mxu0 %v664
    %v1189 = vpop.f32.mrf.mxu0
    %v1190 = vadd.f32 %v965, %v1189
    %v1191 = vpop.f32.mrf.mxu0
    %1192 = vmatprep.mubr.f32.mxu0 0.0
    %1193 = vmatmul.mubr.f32.gmra.mxu0 %v665
    %v1194 = vpop.f32.mrf.mxu0
    %v1195 = vadd.f32 %v970, %v1194
    %v1196 = vpop.f32.mrf.mxu0
    %1197 = vmatprep.mubr.f32.mxu0 0.0
    %1198 = vmatmul.mubr.f32.gmra.mxu0 %v666
    %v1199 = vpop.f32.mrf.mxu0
    %v1200 = vadd.f32 %v975, %v1199
    %v1201 = vpop.f32.mrf.mxu0
    %1202 = vmatprep.mubr.f32.mxu0 0.0
    %1203 = vmatmul.mubr.f32.gmra.mxu0 %v667
    %v1204 = vpop.f32.mrf.mxu0
    %v1205 = vadd.f32 %v980, %v1204
    %v1206 = vpop.f32.mrf.mxu0
    %1207 = vmatprep.mubr.f32.mxu0 0.0
    %1208 = vmatmul.mubr.f32.gmra.mxu0 %v668
    %v1209 = vpop.f32.mrf.mxu0
    %v1210 = vadd.f32 %v985, %v1209
    %v1211 = vpop.f32.mrf.mxu0
    %1212 = vmatprep.mubr.f32.mxu0 0.0
    %1213 = vmatmul.mubr.f32.gmra.mxu0 %v669
    %v1214 = vpop.f32.mrf.mxu0
    %v1215 = vadd.f32 %v990, %v1214
    %v1216 = vpop.f32.mrf.mxu0
    %1217 = vmatprep.mubr.f32.mxu0 0.0
    %1218 = vmatmul.mubr.f32.gmra.mxu0 %v670
    %v1219 = vpop.f32.mrf.mxu0
    %v1220 = vadd.f32 %v995, %v1219
    %v1221 = vpop.f32.mrf.mxu0
    %1222 = vmatprep.mubr.f32.mxu0 0.0
    %1223 = vmatmul.mubr.f32.gmra.mxu0 %v671
    %v1224 = vpop.f32.mrf.mxu0
    %v1225 = vadd.f32 %v1000, %v1224
    %v1226 = vpop.f32.mrf.mxu0
    %1227 = vmatprep.mubr.f32.mxu0 0.0
    %1228 = vmatmul.mubr.f32.gmra.mxu0 %v672
    %v1229 = vpop.f32.mrf.mxu0
    %v1230 = vadd.f32 %v1005, %v1229
    %v1231 = vpop.f32.mrf.mxu0
    %1232 = vmatprep.mubr.f32.mxu0 0.0
    %1233 = vmatmul.mubr.f32.gmra.mxu0 %v673
    %v1234 = vpop.f32.mrf.mxu0
    %v1235 = vadd.f32 %v1010, %v1234
    %v1236 = vpop.f32.mrf.mxu0
    %1237 = vmatprep.mubr.f32.mxu0 0.0
    %1238 = vmatmul.mubr.f32.gmra.mxu0 %v674
    %v1239 = vpop.f32.mrf.mxu0
    %v1240 = vadd.f32 %v1015, %v1239
    %v1241 = vpop.f32.mrf.mxu0
    %1242 = vmatprep.mubr.f32.mxu0 0.0
    %1243 = vmatmul.mubr.f32.gmra.mxu0 %v675
    %v1244 = vpop.f32.mrf.mxu0
    %v1245 = vadd.f32 %v1020, %v1244
    %v1246 = vpop.f32.mrf.mxu0
    %1247 = vmatprep.mubr.f32.mxu0 0.0
    %1248 = vmatmul.mubr.f32.gmra.mxu0 %v676
    %v1249 = vpop.f32.mrf.mxu0
    %v1250 = vadd.f32 %v1025, %v1249
    %v1251 = vpop.f32.mrf.mxu0
    %1252 = vmatprep.mubr.f32.mxu0 0.0
    %1253 = vmatmul.mubr.f32.gmra.mxu0 %v677
    %v1254 = vpop.f32.mrf.mxu0
    %v1255 = vadd.f32 %v1030, %v1254
    %v1256 = vpop.f32.mrf.mxu0
    %1257 = vdwg.mxu0
    %s1258 = scalar_lea.vmem [#allocation5], 256
    %v1259 = vld [vmem:[%s1258] sm:$0xff]
    %v1260 = vld [vmem:[%s1258 + $0x8] sm:$0xff]
    %v1261 = vld [vmem:[%s1258 + $0x10] sm:$0xff]
    %v1262 = vld [vmem:[%s1258 + $0x18] sm:$0xff]
    %v1263 = vld [vmem:[%s1258 + $0x20] sm:$0xff]
    %v1264 = vld [vmem:[%s1258 + $0x28] sm:$0xff]
    %v1265 = vld [vmem:[%s1258 + $0x30] sm:$0xff]
    %v1266 = vld [vmem:[%s1258 + $0x38] sm:$0xff]
    %v1267 = vld [vmem:[%s1258 + $0x40] sm:$0xff]
    %v1268 = vld [vmem:[%s1258 + $0x48] sm:$0xff]
    %v1269 = vld [vmem:[%s1258 + $0x50] sm:$0xff]
    %v1270 = vld [vmem:[%s1258 + $0x58] sm:$0xff]
    %v1271 = vld [vmem:[%s1258 + $0x60] sm:$0xff]
    %v1272 = vld [vmem:[%s1258 + $0x68] sm:$0xff]
    %v1273 = vld [vmem:[%s1258 + $0x70] sm:$0xff]
    %v1274 = vld [vmem:[%s1258 + $0x78] sm:$0xff]
    %1275 = vmatprep.subr.mxu0 0.0
    %1276 = vmatpush1.msra.mxu0 %v1274
    %1277 = vmatprep.subr.mxu0 0.0
    %1278 = vmatpush1.msra.mxu0 %v1273
    %1279 = vmatprep.subr.mxu0 0.0
    %1280 = vmatpush1.msra.mxu0 %v1272
    %1281 = vmatprep.subr.mxu0 0.0
    %1282 = vmatpush1.msra.mxu0 %v1271
    %1283 = vmatprep.subr.mxu0 0.0
    %1284 = vmatpush1.msra.mxu0 %v1270
    %1285 = vmatprep.subr.mxu0 0.0
    %1286 = vmatpush1.msra.mxu0 %v1269
    %1287 = vmatprep.subr.mxu0 0.0
    %1288 = vmatpush1.msra.mxu0 %v1268
    %1289 = vmatprep.subr.mxu0 0.0
    %1290 = vmatpush1.msra.mxu0 %v1267
    %1291 = vmatprep.subr.mxu0 0.0
    %1292 = vmatpush1.msra.mxu0 %v1266
    %1293 = vmatprep.subr.mxu0 0.0
    %1294 = vmatpush1.msra.mxu0 %v1265
    %1295 = vmatprep.subr.mxu0 0.0
    %1296 = vmatpush1.msra.mxu0 %v1264
    %1297 = vmatprep.subr.mxu0 0.0
    %1298 = vmatpush1.msra.mxu0 %v1263
    %1299 = vmatprep.subr.mxu0 0.0
    %1300 = vmatpush1.msra.mxu0 %v1262
    %1301 = vmatprep.subr.mxu0 0.0
    %1302 = vmatpush1.msra.mxu0 %v1261
    %1303 = vmatprep.subr.mxu0 0.0
    %1304 = vmatpush1.msra.mxu0 %v1260
    %1305 = vmatprep.subr.mxu0 0.0
    %1306 = vmatpush1.msra.mxu0 %v1259
    %1307 = vmatprep.subr.mxu0 0.0
    %1308 = vmatpush2.msra.mxu0 0.0
    %1309 = vmatprep.subr.mxu0 0.0
    %1310 = vmatpush2.msra.mxu0 0.0
    %1311 = vmatprep.subr.mxu0 0.0
    %1312 = vmatpush2.msra.mxu0 0.0
    %1313 = vmatprep.subr.mxu0 0.0
    %1314 = vmatpush2.msra.mxu0 0.0
    %1315 = vmatprep.subr.mxu0 0.0
    %1316 = vmatpush2.msra.mxu0 0.0
    %1317 = vmatprep.subr.mxu0 0.0
    %1318 = vmatpush2.msra.mxu0 0.0
    %1319 = vmatprep.subr.mxu0 0.0
    %1320 = vmatpush2.msra.mxu0 0.0
    %1321 = vmatprep.subr.mxu0 0.0
    %1322 = vmatpush2.msra.mxu0 0.0
    %1323 = vmatprep.subr.mxu0 0.0
    %1324 = vmatpush2.msra.mxu0 0.0
    %1325 = vmatprep.subr.mxu0 0.0
    %1326 = vmatpush2.msra.mxu0 0.0
    %1327 = vmatprep.subr.mxu0 0.0
    %1328 = vmatpush2.msra.mxu0 0.0
    %1329 = vmatprep.subr.mxu0 0.0
    %1330 = vmatpush2.msra.mxu0 0.0
    %1331 = vmatprep.subr.mxu0 0.0
    %1332 = vmatpush2.msra.mxu0 0.0
    %1333 = vmatprep.subr.mxu0 0.0
    %1334 = vmatpush2.msra.mxu0 0.0
    %1335 = vmatprep.subr.mxu0 0.0
    %1336 = vmatpush2.msra.mxu0 0.0
    %1337 = vmatprep.subr.mxu0 0.0
    %1338 = vmatpush2.msra.mxu0 0.0
    %1339 = vmatprep.mubr.f32.mxu0 0.0
    %1340 = vmatmul.mubr.f32.gmra.mxu0 %v743
    %v1341 = vpop.f32.mrf.mxu0
    %v1342 = vadd.f32 0.0, %v1341
    %v1343 = vpop.f32.mrf.mxu0
    %1344 = vmatprep.mubr.f32.mxu0 0.0
    %1345 = vmatmul.mubr.f32.gmra.mxu0 %v744
    %v1346 = vpop.f32.mrf.mxu0
    %v1347 = vadd.f32 0.0, %v1346
    %v1348 = vpop.f32.mrf.mxu0
    %1349 = vmatprep.mubr.f32.mxu0 0.0
    %1350 = vmatmul.mubr.f32.gmra.mxu0 %v745
    %v1351 = vpop.f32.mrf.mxu0
    %v1352 = vadd.f32 0.0, %v1351
    %v1353 = vpop.f32.mrf.mxu0
    %1354 = vmatprep.mubr.f32.mxu0 0.0
    %1355 = vmatmul.mubr.f32.gmra.mxu0 %v746
    %v1356 = vpop.f32.mrf.mxu0
    %v1357 = vadd.f32 0.0, %v1356
    %v1358 = vpop.f32.mrf.mxu0
    %1359 = vmatprep.mubr.f32.mxu0 0.0
    %1360 = vmatmul.mubr.f32.gmra.mxu0 %v747
    %v1361 = vpop.f32.mrf.mxu0
    %v1362 = vadd.f32 0.0, %v1361
    %v1363 = vpop.f32.mrf.mxu0
    %1364 = vmatprep.mubr.f32.mxu0 0.0
    %1365 = vmatmul.mubr.f32.gmra.mxu0 %v748
    %v1366 = vpop.f32.mrf.mxu0
    %v1367 = vadd.f32 0.0, %v1366
    %v1368 = vpop.f32.mrf.mxu0
    %1369 = vmatprep.mubr.f32.mxu0 0.0
    %1370 = vmatmul.mubr.f32.gmra.mxu0 %v749
    %v1371 = vpop.f32.mrf.mxu0
    %v1372 = vadd.f32 0.0, %v1371
    %v1373 = vpop.f32.mrf.mxu0
    %1374 = vmatprep.mubr.f32.mxu0 0.0
    %1375 = vmatmul.mubr.f32.gmra.mxu0 %v750
    %v1376 = vpop.f32.mrf.mxu0
    %v1377 = vadd.f32 0.0, %v1376
    %v1378 = vpop.f32.mrf.mxu0
    %1379 = vmatprep.mubr.f32.mxu0 0.0
    %1380 = vmatmul.mubr.f32.gmra.mxu0 %v751
    %v1381 = vpop.f32.mrf.mxu0
    %v1382 = vadd.f32 0.0, %v1381
    %v1383 = vpop.f32.mrf.mxu0
    %1384 = vmatprep.mubr.f32.mxu0 0.0
    %1385 = vmatmul.mubr.f32.gmra.mxu0 %v752
    %v1386 = vpop.f32.mrf.mxu0
    %v1387 = vadd.f32 0.0, %v1386
    %v1388 = vpop.f32.mrf.mxu0
    %1389 = vmatprep.mubr.f32.mxu0 0.0
    %1390 = vmatmul.mubr.f32.gmra.mxu0 %v753
    %v1391 = vpop.f32.mrf.mxu0
    %v1392 = vadd.f32 0.0, %v1391
    %v1393 = vpop.f32.mrf.mxu0
    %1394 = vmatprep.mubr.f32.mxu0 0.0
    %1395 = vmatmul.mubr.f32.gmra.mxu0 %v754
    %v1396 = vpop.f32.mrf.mxu0
    %v1397 = vadd.f32 0.0, %v1396
    %v1398 = vpop.f32.mrf.mxu0
    %1399 = vmatprep.mubr.f32.mxu0 0.0
    %1400 = vmatmul.mubr.f32.gmra.mxu0 %v755
    %v1401 = vpop.f32.mrf.mxu0
    %v1402 = vadd.f32 0.0, %v1401
    %v1403 = vpop.f32.mrf.mxu0
    %1404 = vmatprep.mubr.f32.mxu0 0.0
    %1405 = vmatmul.mubr.f32.gmra.mxu0 %v756
    %v1406 = vpop.f32.mrf.mxu0
    %v1407 = vadd.f32 0.0, %v1406
    %v1408 = vpop.f32.mrf.mxu0
    %1409 = vmatprep.mubr.f32.mxu0 0.0
    %1410 = vmatmul.mubr.f32.gmra.mxu0 %v757
    %v1411 = vpop.f32.mrf.mxu0
    %v1412 = vadd.f32 0.0, %v1411
    %v1413 = vpop.f32.mrf.mxu0
    %1414 = vmatprep.mubr.f32.mxu0 0.0
    %1415 = vmatmul.mubr.f32.gmra.mxu0 %v758
    %v1416 = vpop.f32.mrf.mxu0
    %v1417 = vadd.f32 0.0, %v1416
    %v1418 = vpop.f32.mrf.mxu0
    %1419 = vmatprep.mubr.f32.mxu0 0.0
    %1420 = vmatmul.mubr.f32.gmra.mxu0 %v759
    %v1421 = vpop.f32.mrf.mxu0
    %v1422 = vadd.f32 0.0, %v1421
    %v1423 = vpop.f32.mrf.mxu0
    %1424 = vmatprep.mubr.f32.mxu0 0.0
    %1425 = vmatmul.mubr.f32.gmra.mxu0 %v760
    %v1426 = vpop.f32.mrf.mxu0
    %v1427 = vadd.f32 0.0, %v1426
    %v1428 = vpop.f32.mrf.mxu0
    %1429 = vmatprep.mubr.f32.mxu0 0.0
    %1430 = vmatmul.mubr.f32.gmra.mxu0 %v761
    %v1431 = vpop.f32.mrf.mxu0
    %v1432 = vadd.f32 0.0, %v1431
    %v1433 = vpop.f32.mrf.mxu0
    %1434 = vmatprep.mubr.f32.mxu0 0.0
    %1435 = vmatmul.mubr.f32.gmra.mxu0 %v762
    %v1436 = vpop.f32.mrf.mxu0
    %v1437 = vadd.f32 0.0, %v1436
    %v1438 = vpop.f32.mrf.mxu0
    %1439 = vmatprep.mubr.f32.mxu0 0.0
    %1440 = vmatmul.mubr.f32.gmra.mxu0 %v763
    %v1441 = vpop.f32.mrf.mxu0
    %v1442 = vadd.f32 0.0, %v1441
    %v1443 = vpop.f32.mrf.mxu0
    %1444 = vmatprep.mubr.f32.mxu0 0.0
    %1445 = vmatmul.mubr.f32.gmra.mxu0 %v764
    %v1446 = vpop.f32.mrf.mxu0
    %v1447 = vadd.f32 0.0, %v1446
    %v1448 = vpop.f32.mrf.mxu0
    %1449 = vmatprep.mubr.f32.mxu0 0.0
    %1450 = vmatmul.mubr.f32.gmra.mxu0 %v765
    %v1451 = vpop.f32.mrf.mxu0
    %v1452 = vadd.f32 0.0, %v1451
    %v1453 = vpop.f32.mrf.mxu0
    %1454 = vmatprep.mubr.f32.mxu0 0.0
    %1455 = vmatmul.mubr.f32.gmra.mxu0 %v766
    %v1456 = vpop.f32.mrf.mxu0
    %v1457 = vadd.f32 0.0, %v1456
    %v1458 = vpop.f32.mrf.mxu0
    %1459 = vmatprep.mubr.f32.mxu0 0.0
    %1460 = vmatmul.mubr.f32.gmra.mxu0 %v767
    %v1461 = vpop.f32.mrf.mxu0
    %v1462 = vadd.f32 0.0, %v1461
    %v1463 = vpop.f32.mrf.mxu0
    %1464 = vmatprep.mubr.f32.mxu0 0.0
    %1465 = vmatmul.mubr.f32.gmra.mxu0 %v768
    %v1466 = vpop.f32.mrf.mxu0
    %v1467 = vadd.f32 0.0, %v1466
    %v1468 = vpop.f32.mrf.mxu0
    %1469 = vmatprep.mubr.f32.mxu0 0.0
    %1470 = vmatmul.mubr.f32.gmra.mxu0 %v769
    %v1471 = vpop.f32.mrf.mxu0
    %v1472 = vadd.f32 0.0, %v1471
    %v1473 = vpop.f32.mrf.mxu0
    %1474 = vmatprep.mubr.f32.mxu0 0.0
    %1475 = vmatmul.mubr.f32.gmra.mxu0 %v770
    %v1476 = vpop.f32.mrf.mxu0
    %v1477 = vadd.f32 0.0, %v1476
    %v1478 = vpop.f32.mrf.mxu0
    %1479 = vmatprep.mubr.f32.mxu0 0.0
    %1480 = vmatmul.mubr.f32.gmra.mxu0 %v771
    %v1481 = vpop.f32.mrf.mxu0
    %v1482 = vadd.f32 0.0, %v1481
    %v1483 = vpop.f32.mrf.mxu0
    %1484 = vmatprep.mubr.f32.mxu0 0.0
    %1485 = vmatmul.mubr.f32.gmra.mxu0 %v772
    %v1486 = vpop.f32.mrf.mxu0
    %v1487 = vadd.f32 0.0, %v1486
    %v1488 = vpop.f32.mrf.mxu0
    %1489 = vmatprep.mubr.f32.mxu0 0.0
    %1490 = vmatmul.mubr.f32.gmra.mxu0 %v773
    %v1491 = vpop.f32.mrf.mxu0
    %v1492 = vadd.f32 0.0, %v1491
    %v1493 = vpop.f32.mrf.mxu0
    %1494 = vmatprep.mubr.f32.mxu0 0.0
    %1495 = vmatmul.mubr.f32.gmra.mxu0 %v774
    %v1496 = vpop.f32.mrf.mxu0
    %v1497 = vadd.f32 0.0, %v1496
    %v1498 = vpop.f32.mrf.mxu0
    %1499 = vdwg.mxu0
    %v1500 = vadd.f32 %v1100, %v1342
    %v1501 = vadd.f32 %v1105, %v1347
    %v1502 = vadd.f32 %v1110, %v1352
    %v1503 = vadd.f32 %v1115, %v1357
    %v1504 = vadd.f32 %v1120, %v1362
    %v1505 = vadd.f32 %v1125, %v1367
    %v1506 = vadd.f32 %v1130, %v1372
    %v1507 = vadd.f32 %v1135, %v1377
    %v1508 = vadd.f32 %v1140, %v1382
    %v1509 = vadd.f32 %v1145, %v1387
    %v1510 = vadd.f32 %v1150, %v1392
    %v1511 = vadd.f32 %v1155, %v1397
    %v1512 = vadd.f32 %v1160, %v1402
    %v1513 = vadd.f32 %v1165, %v1407
    %v1514 = vadd.f32 %v1170, %v1412
    %v1515 = vadd.f32 %v1175, %v1417
    %v1516 = vadd.f32 %v1180, %v1422
    %v1517 = vadd.f32 %v1185, %v1427
    %v1518 = vadd.f32 %v1190, %v1432
    %v1519 = vadd.f32 %v1195, %v1437
    %v1520 = vadd.f32 %v1200, %v1442
    %v1521 = vadd.f32 %v1205, %v1447
    %v1522 = vadd.f32 %v1210, %v1452
    %v1523 = vadd.f32 %v1215, %v1457
    %v1524 = vadd.f32 %v1220, %v1462
    %v1525 = vadd.f32 %v1225, %v1467
    %v1526 = vadd.f32 %v1230, %v1472
    %v1527 = vadd.f32 %v1235, %v1477
    %v1528 = vadd.f32 %v1240, %v1482
    %v1529 = vadd.f32 %v1245, %v1487
    %v1530 = vadd.f32 %v1250, %v1492
    %v1531 = vadd.f32 %v1255, %v1497
    %v1532 = vadd.f32 %v1500, %v1501
    %v1533 = vadd.f32 %v1532, %v1502
    %v1534 = vadd.f32 %v1533, %v1503
    %v1535 = vadd.f32 %v1534, %v1504
    %v1536 = vadd.f32 %v1535, %v1505
    %v1537 = vadd.f32 %v1536, %v1506
    %v1538 = vadd.f32 %v1537, %v1507
    %v1539 = vadd.f32 %v1538, %v1508
    %v1540 = vadd.f32 %v1539, %v1509
    %v1541 = vadd.f32 %v1540, %v1510
    %v1542 = vadd.f32 %v1541, %v1511
    %v1543 = vadd.f32 %v1542, %v1512
    %v1544 = vadd.f32 %v1543, %v1513
    %v1545 = vadd.f32 %v1544, %v1514
    %v1546 = vadd.f32 %v1545, %v1515
    %v1547 = vadd.f32 %v1546, %v1516
    %v1548 = vadd.f32 %v1547, %v1517
    %v1549 = vadd.f32 %v1548, %v1518
    %v1550 = vadd.f32 %v1549, %v1519
    %v1551 = vadd.f32 %v1550, %v1520
    %v1552 = vadd.f32 %v1551, %v1521
    %v1553 = vadd.f32 %v1552, %v1522
    %v1554 = vadd.f32 %v1553, %v1523
    %v1555 = vadd.f32 %v1554, %v1524
    %v1556 = vadd.f32 %v1555, %v1525
    %v1557 = vadd.f32 %v1556, %v1526
    %v1558 = vadd.f32 %v1557, %v1527
    %v1559 = vadd.f32 %v1558, %v1528
    %v1560 = vadd.f32 %v1559, %v1529
    %v1561 = vadd.f32 %v1560, %v1530
    %v1562 = vadd.f32 %v1561, %v1531
    %v1563 = vrot.slane %v1562, 4
    %v1564 = vadd.f32 %v1562, %v1563
    %v1565 = vrot.slane %v1564, 2
    %v1566 = vadd.f32 %v1564, %v1565
    %v1567 = vrot.slane %v1566, 1
    %v1568 = vadd.f32 %v1566, %v1567
    %1569 = vrot.lane.b32.xlu0 %v1568, 8
    %v1570 = vpop.permute.xlu0 %1569
    %v1571 = vadd.f32 %v1568, %v1570
    %1572 = vrot.lane.b32.xlu0 %v1571, 16
    %v1573 = vpop.permute.xlu0 %1572
    %v1574 = vadd.f32 %v1571, %v1573
    %1575 = vrot.lane.b32.xlu0 %v1574, 32
    %v1576 = vpop.permute.xlu0 %1575
    %v1577 = vadd.f32 %v1574, %v1576
    %1578 = vrot.lane.b32.xlu0 %v1577, 64
    %v1579 = vpop.permute.xlu0 %1578
    %v1580 = vadd.f32 %v1577, %v1579
    %v1581 = vmul.f32 %v1580, 0.00024414063
    %v1582 = vlaneseq
    %v1583 = vshrl.u32 %v1582, 7
    %v1584 = vsub.s32 0, %v1583
    %v1585 = vrot.slane %v1581, %v1584
    %v1586 = vsub.f32 %v1500, %v1585
    %v1587 = vsub.f32 %v1501, %v1585
    %v1588 = vsub.f32 %v1502, %v1585
    %v1589 = vsub.f32 %v1503, %v1585
    %v1590 = vsub.f32 %v1504, %v1585
    %v1591 = vsub.f32 %v1505, %v1585
    %v1592 = vsub.f32 %v1506, %v1585
    %v1593 = vsub.f32 %v1507, %v1585
    %v1594 = vsub.f32 %v1508, %v1585
    %v1595 = vsub.f32 %v1509, %v1585
    %v1596 = vsub.f32 %v1510, %v1585
    %v1597 = vsub.f32 %v1511, %v1585
    %v1598 = vsub.f32 %v1512, %v1585
    %v1599 = vsub.f32 %v1513, %v1585
    %v1600 = vsub.f32 %v1514, %v1585
    %v1601 = vsub.f32 %v1515, %v1585
    %v1602 = vsub.f32 %v1516, %v1585
    %v1603 = vsub.f32 %v1517, %v1585
    %v1604 = vsub.f32 %v1518, %v1585
    %v1605 = vsub.f32 %v1519, %v1585
    %v1606 = vsub.f32 %v1520, %v1585
    %v1607 = vsub.f32 %v1521, %v1585
    %v1608 = vsub.f32 %v1522, %v1585
    %v1609 = vsub.f32 %v1523, %v1585
    %v1610 = vsub.f32 %v1524, %v1585
    %v1611 = vsub.f32 %v1525, %v1585
    %v1612 = vsub.f32 %v1526, %v1585
    %v1613 = vsub.f32 %v1527, %v1585
    %v1614 = vsub.f32 %v1528, %v1585
    %v1615 = vsub.f32 %v1529, %v1585
    %v1616 = vsub.f32 %v1530, %v1585
    %v1617 = vsub.f32 %v1531, %v1585
    %v1618 = vmul.f32 %v1586, %v1586
    %v1619 = vmul.f32 %v1587, %v1587
    %v1620 = vmul.f32 %v1588, %v1588
    %v1621 = vmul.f32 %v1589, %v1589
    %v1622 = vmul.f32 %v1590, %v1590
    %v1623 = vmul.f32 %v1591, %v1591
    %v1624 = vmul.f32 %v1592, %v1592
    %v1625 = vmul.f32 %v1593, %v1593
    %v1626 = vmul.f32 %v1594, %v1594
    %v1627 = vmul.f32 %v1595, %v1595
    %v1628 = vmul.f32 %v1596, %v1596
    %v1629 = vmul.f32 %v1597, %v1597
    %v1630 = vmul.f32 %v1598, %v1598
    %v1631 = vmul.f32 %v1599, %v1599
    %v1632 = vmul.f32 %v1600, %v1600
    %v1633 = vmul.f32 %v1601, %v1601
    %v1634 = vmul.f32 %v1602, %v1602
    %v1635 = vmul.f32 %v1603, %v1603
    %v1636 = vmul.f32 %v1604, %v1604
    %v1637 = vmul.f32 %v1605, %v1605
    %v1638 = vmul.f32 %v1606, %v1606
    %v1639 = vmul.f32 %v1607, %v1607
    %v1640 = vmul.f32 %v1608, %v1608
    %v1641 = vmul.f32 %v1609, %v1609
    %v1642 = vmul.f32 %v1610, %v1610
    %v1643 = vmul.f32 %v1611, %v1611
    %v1644 = vmul.f32 %v1612, %v1612
    %v1645 = vmul.f32 %v1613, %v1613
    %v1646 = vmul.f32 %v1614, %v1614
    %v1647 = vmul.f32 %v1615, %v1615
    %v1648 = vmul.f32 %v1616, %v1616
    %v1649 = vmul.f32 %v1617, %v1617
    %v1650 = vadd.f32 %v1618, %v1619
    %v1651 = vadd.f32 %v1650, %v1620
    %v1652 = vadd.f32 %v1651, %v1621
    %v1653 = vadd.f32 %v1652, %v1622
    %v1654 = vadd.f32 %v1653, %v1623
    %v1655 = vadd.f32 %v1654, %v1624
    %v1656 = vadd.f32 %v1655, %v1625
    %v1657 = vadd.f32 %v1656, %v1626
    %v1658 = vadd.f32 %v1657, %v1627
    %v1659 = vadd.f32 %v1658, %v1628
    %v1660 = vadd.f32 %v1659, %v1629
    %v1661 = vadd.f32 %v1660, %v1630
    %v1662 = vadd.f32 %v1661, %v1631
    %v1663 = vadd.f32 %v1662, %v1632
    %v1664 = vadd.f32 %v1663, %v1633
    %v1665 = vadd.f32 %v1664, %v1634
    %v1666 = vadd.f32 %v1665, %v1635
    %v1667 = vadd.f32 %v1666, %v1636
    %v1668 = vadd.f32 %v1667, %v1637
    %v1669 = vadd.f32 %v1668, %v1638
    %v1670 = vadd.f32 %v1669, %v1639
    %v1671 = vadd.f32 %v1670, %v1640
    %v1672 = vadd.f32 %v1671, %v1641
    %v1673 = vadd.f32 %v1672, %v1642
    %v1674 = vadd.f32 %v1673, %v1643
    %v1675 = vadd.f32 %v1674, %v1644
    %v1676 = vadd.f32 %v1675, %v1645
    %v1677 = vadd.f32 %v1676, %v1646
    %v1678 = vadd.f32 %v1677, %v1647
    %v1679 = vadd.f32 %v1678, %v1648
    %v1680 = vadd.f32 %v1679, %v1649
    %v1681 = vrot.slane %v1680, 4
    %v1682 = vadd.f32 %v1680, %v1681
    %v1683 = vrot.slane %v1682, 2
    %v1684 = vadd.f32 %v1682, %v1683
    %v1685 = vrot.slane %v1684, 1
    %v1686 = vadd.f32 %v1684, %v1685
    %1687 = vrot.lane.b32.xlu0 %v1686, 8
    %v1688 = vpop.permute.xlu0 %1687
    %v1689 = vadd.f32 %v1686, %v1688
    %1690 = vrot.lane.b32.xlu0 %v1689, 16
    %v1691 = vpop.permute.xlu0 %1690
    %v1692 = vadd.f32 %v1689, %v1691
    %1693 = vrot.lane.b32.xlu0 %v1692, 32
    %v1694 = vpop.permute.xlu0 %1693
    %v1695 = vadd.f32 %v1692, %v1694
    %1696 = vrot.lane.b32.xlu0 %v1695, 64
    %v1697 = vpop.permute.xlu0 %1696
    %v1698 = vadd.f32 %v1695, %v1697
    %v1699 = vmul.f32 %v1698, 0.00024414063
    %v1700 = vadd.f32 %v1699, 1e-05
    %v1701 = vrsqrt.pop %v1700
    %v1702 = vlaneseq
    %v1703 = vshrl.u32 %v1702, 7
    %v1704 = vsub.s32 0, %v1703
    %v1705 = vrot.slane %v1701, %v1704
    %v1706 = vmul.f32 %v1586, %v1705
    %v1707 = vmul.f32 %v1587, %v1705
    %v1708 = vmul.f32 %v1588, %v1705
    %v1709 = vmul.f32 %v1589, %v1705
    %v1710 = vmul.f32 %v1590, %v1705
    %v1711 = vmul.f32 %v1591, %v1705
    %v1712 = vmul.f32 %v1592, %v1705
    %v1713 = vmul.f32 %v1593, %v1705
    %v1714 = vmul.f32 %v1594, %v1705
    %v1715 = vmul.f32 %v1595, %v1705
    %v1716 = vmul.f32 %v1596, %v1705
    %v1717 = vmul.f32 %v1597, %v1705
    %v1718 = vmul.f32 %v1598, %v1705
    %v1719 = vmul.f32 %v1599, %v1705
    %v1720 = vmul.f32 %v1600, %v1705
    %v1721 = vmul.f32 %v1601, %v1705
    %v1722 = vmul.f32 %v1602, %v1705
    %v1723 = vmul.f32 %v1603, %v1705
    %v1724 = vmul.f32 %v1604, %v1705
    %v1725 = vmul.f32 %v1605, %v1705
    %v1726 = vmul.f32 %v1606, %v1705
    %v1727 = vmul.f32 %v1607, %v1705
    %v1728 = vmul.f32 %v1608, %v1705
    %v1729 = vmul.f32 %v1609, %v1705
    %v1730 = vmul.f32 %v1610, %v1705
    %v1731 = vmul.f32 %v1611, %v1705
    %v1732 = vmul.f32 %v1612, %v1705
    %v1733 = vmul.f32 %v1613, %v1705
    %v1734 = vmul.f32 %v1614, %v1705
    %v1735 = vmul.f32 %v1615, %v1705
    %v1736 = vmul.f32 %v1616, %v1705
    %v1737 = vmul.f32 %v1617, %v1705
    %v1738 = vld [vmem:[%s2] sm:$0x1]
    %v1740 = vlaneseq
    %v1741 = vshrl.u32 %v1740, 7
    %v1742 = vsub.s32 0, %v1741
    %v1743 = vrot.slane %v1738, %v1742
    %v1745 = vmul.f32 %v1706, %v1743
    %v1746 = vmul.f32 %v1707, %v1743
    %v1747 = vmul.f32 %v1708, %v1743
    %v1748 = vmul.f32 %v1709, %v1743
    %v1749 = vmul.f32 %v1710, %v1743
    %v1750 = vmul.f32 %v1711, %v1743
    %v1751 = vmul.f32 %v1712, %v1743
    %v1752 = vmul.f32 %v1713, %v1743
    %v1753 = vmul.f32 %v1714, %v1743
    %v1754 = vmul.f32 %v1715, %v1743
    %v1755 = vmul.f32 %v1716, %v1743
    %v1756 = vmul.f32 %v1717, %v1743
    %v1757 = vmul.f32 %v1718, %v1743
    %v1758 = vmul.f32 %v1719, %v1743
    %v1759 = vmul.f32 %v1720, %v1743
    %v1760 = vmul.f32 %v1721, %v1743
    %v1761 = vmul.f32 %v1722, %v1743
    %v1762 = vmul.f32 %v1723, %v1743
    %v1763 = vmul.f32 %v1724, %v1743
    %v1764 = vmul.f32 %v1725, %v1743
    %v1765 = vmul.f32 %v1726, %v1743
    %v1766 = vmul.f32 %v1727, %v1743
    %v1767 = vmul.f32 %v1728, %v1743
    %v1768 = vmul.f32 %v1729, %v1743
    %v1769 = vmul.f32 %v1730, %v1743
    %v1770 = vmul.f32 %v1731, %v1743
    %v1771 = vmul.f32 %v1732, %v1743
    %v1772 = vmul.f32 %v1733, %v1743
    %v1773 = vmul.f32 %v1734, %v1743
    %v1774 = vmul.f32 %v1735, %v1743
    %v1775 = vmul.f32 %v1736, %v1743
    %v1776 = vmul.f32 %v1737, %v1743
    %v1777 = vld [vmem:[%s3] sm:$0x1]
    %v1779 = vlaneseq
    %v1780 = vshrl.u32 %v1779, 7
    %v1781 = vsub.s32 0, %v1780
    %v1782 = vrot.slane %v1777, %v1781
    %v1784 = vadd.f32 %v1745, %v1782
    %v1785 = vadd.f32 %v1746, %v1782
    %v1786 = vadd.f32 %v1747, %v1782
    %v1787 = vadd.f32 %v1748, %v1782
    %v1788 = vadd.f32 %v1749, %v1782
    %v1789 = vadd.f32 %v1750, %v1782
    %v1790 = vadd.f32 %v1751, %v1782
    %v1791 = vadd.f32 %v1752, %v1782
    %v1792 = vadd.f32 %v1753, %v1782
    %v1793 = vadd.f32 %v1754, %v1782
    %v1794 = vadd.f32 %v1755, %v1782
    %v1795 = vadd.f32 %v1756, %v1782
    %v1796 = vadd.f32 %v1757, %v1782
    %v1797 = vadd.f32 %v1758, %v1782
    %v1798 = vadd.f32 %v1759, %v1782
    %v1799 = vadd.f32 %v1760, %v1782
    %v1800 = vadd.f32 %v1761, %v1782
    %v1801 = vadd.f32 %v1762, %v1782
    %v1802 = vadd.f32 %v1763, %v1782
    %v1803 = vadd.f32 %v1764, %v1782
    %v1804 = vadd.f32 %v1765, %v1782
    %v1805 = vadd.f32 %v1766, %v1782
    %v1806 = vadd.f32 %v1767, %v1782
    %v1807 = vadd.f32 %v1768, %v1782
    %v1808 = vadd.f32 %v1769, %v1782
    %v1809 = vadd.f32 %v1770, %v1782
    %v1810 = vadd.f32 %v1771, %v1782
    %v1811 = vadd.f32 %v1772, %v1782
    %v1812 = vadd.f32 %v1773, %v1782
    %v1813 = vadd.f32 %v1774, %v1782
    %v1814 = vadd.f32 %v1775, %v1782
    %v1815 = vadd.f32 %v1776, %v1782
    %v1816 = vmax.f32 %v1784, 0.0
    %v1817 = vmax.f32 %v1785, 0.0
    %v1818 = vmax.f32 %v1786, 0.0
    %v1819 = vmax.f32 %v1787, 0.0
    %v1820 = vmax.f32 %v1788, 0.0
    %v1821 = vmax.f32 %v1789, 0.0
    %v1822 = vmax.f32 %v1790, 0.0
    %v1823 = vmax.f32 %v1791, 0.0
    %v1824 = vmax.f32 %v1792, 0.0
    %v1825 = vmax.f32 %v1793, 0.0
    %v1826 = vmax.f32 %v1794, 0.0
    %v1827 = vmax.f32 %v1795, 0.0
    %v1828 = vmax.f32 %v1796, 0.0
    %v1829 = vmax.f32 %v1797, 0.0
    %v1830 = vmax.f32 %v1798, 0.0
    %v1831 = vmax.f32 %v1799, 0.0
    %v1832 = vmax.f32 %v1800, 0.0
    %v1833 = vmax.f32 %v1801, 0.0
    %v1834 = vmax.f32 %v1802, 0.0
    %v1835 = vmax.f32 %v1803, 0.0
    %v1836 = vmax.f32 %v1804, 0.0
    %v1837 = vmax.f32 %v1805, 0.0
    %v1838 = vmax.f32 %v1806, 0.0
    %v1839 = vmax.f32 %v1807, 0.0
    %v1840 = vmax.f32 %v1808, 0.0
    %v1841 = vmax.f32 %v1809, 0.0
    %v1842 = vmax.f32 %v1810, 0.0
    %v1843 = vmax.f32 %v1811, 0.0
    %v1844 = vmax.f32 %v1812, 0.0
    %v1845 = vmax.f32 %v1813, 0.0
    %v1846 = vmax.f32 %v1814, 0.0
    %v1847 = vmax.f32 %v1815, 0.0
    %v1848 = vrot.slane %v1816, 7
    %v1849 = vrot.slane %v1817, 7
    %v1850 = vrot.slane %v1818, 7
    %v1851 = vrot.slane %v1819, 7
    %v1852 = vrot.slane %v1820, 7
    %v1853 = vrot.slane %v1821, 7
    %v1854 = vrot.slane %v1822, 7
    %v1855 = vrot.slane %v1823, 7
    %v1856 = vrot.slane %v1824, 7
    %v1857 = vrot.slane %v1825, 7
    %v1858 = vrot.slane %v1826, 7
    %v1859 = vrot.slane %v1827, 7
    %v1860 = vrot.slane %v1828, 7
    %v1861 = vrot.slane %v1829, 7
    %v1862 = vrot.slane %v1830, 7
    %v1863 = vrot.slane %v1831, 7
    %v1864 = vrot.slane %v1832, 7
    %v1865 = vrot.slane %v1833, 7
    %v1866 = vrot.slane %v1834, 7
    %v1867 = vrot.slane %v1835, 7
    %v1868 = vrot.slane %v1836, 7
    %v1869 = vrot.slane %v1837, 7
    %v1870 = vrot.slane %v1838, 7
    %v1871 = vrot.slane %v1839, 7
    %v1872 = vrot.slane %v1840, 7
    %v1873 = vrot.slane %v1841, 7
    %v1874 = vrot.slane %v1842, 7
    %v1875 = vrot.slane %v1843, 7
    %v1876 = vrot.slane %v1844, 7
    %v1877 = vrot.slane %v1845, 7
    %v1878 = vrot.slane %v1846, 7
    %v1879 = vrot.slane %v1847, 7
    %v1880 = vsel %vm613, %v1878, %v1879
    %v1881 = vsel %vm613, %v1877, %v1878
    %v1882 = vsel %vm613, %v1876, %v1877
    %v1883 = vsel %vm613, %v1875, %v1876
    %v1884 = vsel %vm613, %v1874, %v1875
    %v1885 = vsel %vm613, %v1873, %v1874
    %v1886 = vsel %vm613, %v1872, %v1873
    %v1887 = vsel %vm613, %v1871, %v1872
    %v1888 = vsel %vm613, %v1870, %v1871
    %v1889 = vsel %vm613, %v1869, %v1870
    %v1890 = vsel %vm613, %v1868, %v1869
    %v1891 = vsel %vm613, %v1867, %v1868
    %v1892 = vsel %vm613, %v1866, %v1867
    %v1893 = vsel %vm613, %v1865, %v1866
    %v1894 = vsel %vm613, %v1864, %v1865
    %v1895 = vsel %vm613, %v1863, %v1864
    %v1896 = vsel %vm613, %v1862, %v1863
    %v1897 = vsel %vm613, %v1861, %v1862
    %v1898 = vsel %vm613, %v1860, %v1861
    %v1899 = vsel %vm613, %v1859, %v1860
    %v1900 = vsel %vm613, %v1858, %v1859
    %v1901 = vsel %vm613, %v1857, %v1858
    %v1902 = vsel %vm613, %v1856, %v1857
    %v1903 = vsel %vm613, %v1855, %v1856
    %v1904 = vsel %vm613, %v1854, %v1855
    %v1905 = vsel %vm613, %v1853, %v1854
    %v1906 = vsel %vm613, %v1852, %v1853
    %v1907 = vsel %vm613, %v1851, %v1852
    %v1908 = vsel %vm613, %v1850, %v1851
    %v1909 = vsel %vm613, %v1849, %v1850
    %v1910 = vsel %vm613, %v1848, %v1849
    %v1911 = vsel %vm613, %v1879, %v1848
    %v1912 = vsel %vm517, %v1911, 0.0
    %v1913 = vsel %vm518, %v1910, 0.0
    %v1914 = vsel %vm519, %v1909, 0.0
    %v1915 = vsel %vm520, %v1908, 0.0
    %v1916 = vsel %vm521, %v1907, 0.0
    %v1917 = vsel %vm522, %v1906, 0.0
    %v1918 = vsel %vm523, %v1905, 0.0
    %v1919 = vsel %vm524, %v1904, 0.0
    %v1920 = vsel %vm525, %v1903, 0.0
    %v1921 = vsel %vm526, %v1902, 0.0
    %v1922 = vsel %vm527, %v1901, 0.0
    %v1923 = vsel %vm528, %v1900, 0.0
    %v1924 = vsel %vm529, %v1899, 0.0
    %v1925 = vsel %vm530, %v1898, 0.0
    %v1926 = vsel %vm531, %v1897, 0.0
    %v1927 = vsel %vm532, %v1896, 0.0
    %v1928 = vsel %vm533, %v1895, 0.0
    %v1929 = vsel %vm534, %v1894, 0.0
    %v1930 = vsel %vm535, %v1893, 0.0
    %v1931 = vsel %vm536, %v1892, 0.0
    %v1932 = vsel %vm537, %v1891, 0.0
    %v1933 = vsel %vm538, %v1890, 0.0
    %v1934 = vsel %vm539, %v1889, 0.0
    %v1935 = vsel %vm540, %v1888, 0.0
    %v1936 = vsel %vm541, %v1887, 0.0
    %v1937 = vsel %vm542, %v1886, 0.0
    %v1938 = vsel %vm543, %v1885, 0.0
    %v1939 = vsel %vm544, %v1884, 0.0
    %v1940 = vsel %vm545, %v1883, 0.0
    %v1941 = vsel %vm546, %v1882, 0.0
    %v1942 = vsel %vm547, %v1881, 0.0
    %v1943 = vsel %vm548, %v1880, 0.0
    %v1944 = vrot.slane %v1816, 1
    %v1945 = vrot.slane %v1817, 1
    %v1946 = vrot.slane %v1818, 1
    %v1947 = vrot.slane %v1819, 1
    %v1948 = vrot.slane %v1820, 1
    %v1949 = vrot.slane %v1821, 1
    %v1950 = vrot.slane %v1822, 1
    %v1951 = vrot.slane %v1823, 1
    %v1952 = vrot.slane %v1824, 1
    %v1953 = vrot.slane %v1825, 1
    %v1954 = vrot.slane %v1826, 1
    %v1955 = vrot.slane %v1827, 1
    %v1956 = vrot.slane %v1828, 1
    %v1957 = vrot.slane %v1829, 1
    %v1958 = vrot.slane %v1830, 1
    %v1959 = vrot.slane %v1831, 1
    %v1960 = vrot.slane %v1832, 1
    %v1961 = vrot.slane %v1833, 1
    %v1962 = vrot.slane %v1834, 1
    %v1963 = vrot.slane %v1835, 1
    %v1964 = vrot.slane %v1836, 1
    %v1965 = vrot.slane %v1837, 1
    %v1966 = vrot.slane %v1838, 1
    %v1967 = vrot.slane %v1839, 1
    %v1968 = vrot.slane %v1840, 1
    %v1969 = vrot.slane %v1841, 1
    %v1970 = vrot.slane %v1842, 1
    %v1971 = vrot.slane %v1843, 1
    %v1972 = vrot.slane %v1844, 1
    %v1973 = vrot.slane %v1845, 1
    %v1974 = vrot.slane %v1846, 1
    %v1975 = vrot.slane %v1847, 1
    %v1976 = vsel %vm710, %v1974, %v1975
    %v1977 = vsel %vm710, %v1973, %v1974
    %v1978 = vsel %vm710, %v1972, %v1973
    %v1979 = vsel %vm710, %v1971, %v1972
    %v1980 = vsel %vm710, %v1970, %v1971
    %v1981 = vsel %vm710, %v1969, %v1970
    %v1982 = vsel %vm710, %v1968, %v1969
    %v1983 = vsel %vm710, %v1967, %v1968
    %v1984 = vsel %vm710, %v1966, %v1967
    %v1985 = vsel %vm710, %v1965, %v1966
    %v1986 = vsel %vm710, %v1964, %v1965
    %v1987 = vsel %vm710, %v1963, %v1964
    %v1988 = vsel %vm710, %v1962, %v1963
    %v1989 = vsel %vm710, %v1961, %v1962
    %v1990 = vsel %vm710, %v1960, %v1961
    %v1991 = vsel %vm710, %v1959, %v1960
    %v1992 = vsel %vm710, %v1958, %v1959
    %v1993 = vsel %vm710, %v1957, %v1958
    %v1994 = vsel %vm710, %v1956, %v1957
    %v1995 = vsel %vm710, %v1955, %v1956
    %v1996 = vsel %vm710, %v1954, %v1955
    %v1997 = vsel %vm710, %v1953, %v1954
    %v1998 = vsel %vm710, %v1952, %v1953
    %v1999 = vsel %vm710, %v1951, %v1952
    %v2000 = vsel %vm710, %v1950, %v1951
    %v2001 = vsel %vm710, %v1949, %v1950
    %v2002 = vsel %vm710, %v1948, %v1949
    %v2003 = vsel %vm710, %v1947, %v1948
    %v2004 = vsel %vm710, %v1946, %v1947
    %v2005 = vsel %vm710, %v1945, %v1946
    %v2006 = vsel %vm710, %v1944, %v1945
    %v2007 = vsel %vm710, %v1975, %v1944
    %v2008 = vsel %vm549, %v2006, 0.0
    %v2009 = vsel %vm550, %v2005, 0.0
    %v2010 = vsel %vm551, %v2004, 0.0
    %v2011 = vsel %vm552, %v2003, 0.0
    %v2012 = vsel %vm553, %v2002, 0.0
    %v2013 = vsel %vm554, %v2001, 0.0
    %v2014 = vsel %vm555, %v2000, 0.0
    %v2015 = vsel %vm556, %v1999, 0.0
    %v2016 = vsel %vm557, %v1998, 0.0
    %v2017 = vsel %vm558, %v1997, 0.0
    %v2018 = vsel %vm559, %v1996, 0.0
    %v2019 = vsel %vm560, %v1995, 0.0
    %v2020 = vsel %vm561, %v1994, 0.0
    %v2021 = vsel %vm562, %v1993, 0.0
    %v2022 = vsel %vm563, %v1992, 0.0
    %v2023 = vsel %vm564, %v1991, 0.0
    %v2024 = vsel %vm565, %v1990, 0.0
    %v2025 = vsel %vm566, %v1989, 0.0
    %v2026 = vsel %vm567, %v1988, 0.0
    %v2027 = vsel %vm568, %v1987, 0.0
    %v2028 = vsel %vm569, %v1986, 0.0
    %v2029 = vsel %vm570, %v1985, 0.0
    %v2030 = vsel %vm571, %v1984, 0.0
    %v2031 = vsel %vm572, %v1983, 0.0
    %v2032 = vsel %vm573, %v1982, 0.0
    %v2033 = vsel %vm574, %v1981, 0.0
    %v2034 = vsel %vm575, %v1980, 0.0
    %v2035 = vsel %vm576, %v1979, 0.0
    %v2036 = vsel %vm577, %v1978, 0.0
    %v2037 = vsel %vm578, %v1977, 0.0
    %v2038 = vsel %vm579, %v1976, 0.0
    %v2039 = vsel %vm580, %v2007, 0.0
    %v2040 = vld [vmem:[#allocation7] sm:$0xff]
    %v2041 = vld [vmem:[#allocation7 + $0x8] sm:$0xff]
    %v2042 = vld [vmem:[#allocation7 + $0x10] sm:$0xff]
    %v2043 = vld [vmem:[#allocation7 + $0x18] sm:$0xff]
    %v2044 = vld [vmem:[#allocation7 + $0x20] sm:$0xff]
    %v2045 = vld [vmem:[#allocation7 + $0x28] sm:$0xff]
    %v2046 = vld [vmem:[#allocation7 + $0x30] sm:$0xff]
    %v2047 = vld [vmem:[#allocation7 + $0x38] sm:$0xff]
    %v2048 = vld [vmem:[#allocation7 + $0x40] sm:$0xff]
    %v2049 = vld [vmem:[#allocation7 + $0x48] sm:$0xff]
    %v2050 = vld [vmem:[#allocation7 + $0x50] sm:$0xff]
    %v2051 = vld [vmem:[#allocation7 + $0x58] sm:$0xff]
    %v2052 = vld [vmem:[#allocation7 + $0x60] sm:$0xff]
    %v2053 = vld [vmem:[#allocation7 + $0x68] sm:$0xff]
    %v2054 = vld [vmem:[#allocation7 + $0x70] sm:$0xff]
    %v2055 = vld [vmem:[#allocation7 + $0x78] sm:$0xff]
    %s2056 = scalar_lea.vmem [#allocation7], 128
    %v2057 = vld [vmem:[%s2056] sm:$0xff]
    %v2058 = vld [vmem:[%s2056 + $0x8] sm:$0xff]
    %v2059 = vld [vmem:[%s2056 + $0x10] sm:$0xff]
    %v2060 = vld [vmem:[%s2056 + $0x18] sm:$0xff]
    %v2061 = vld [vmem:[%s2056 + $0x20] sm:$0xff]
    %v2062 = vld [vmem:[%s2056 + $0x28] sm:$0xff]
    %v2063 = vld [vmem:[%s2056 + $0x30] sm:$0xff]
    %v2064 = vld [vmem:[%s2056 + $0x38] sm:$0xff]
    %v2065 = vld [vmem:[%s2056 + $0x40] sm:$0xff]
    %v2066 = vld [vmem:[%s2056 + $0x48] sm:$0xff]
    %v2067 = vld [vmem:[%s2056 + $0x50] sm:$0xff]
    %v2068 = vld [vmem:[%s2056 + $0x58] sm:$0xff]
    %v2069 = vld [vmem:[%s2056 + $0x60] sm:$0xff]
    %v2070 = vld [vmem:[%s2056 + $0x68] sm:$0xff]
    %v2071 = vld [vmem:[%s2056 + $0x70] sm:$0xff]
    %v2072 = vld [vmem:[%s2056 + $0x78] sm:$0xff]
    %2073 = vmatprep.subr.mxu0 0.0
    %2074 = vmatpush1.msra.mxu0 %v2072
    %2075 = vmatprep.subr.mxu0 0.0
    %2076 = vmatpush1.msra.mxu0 %v2071
    %2077 = vmatprep.subr.mxu0 0.0
    %2078 = vmatpush1.msra.mxu0 %v2070
    %2079 = vmatprep.subr.mxu0 0.0
    %2080 = vmatpush1.msra.mxu0 %v2069
    %2081 = vmatprep.subr.mxu0 0.0
    %2082 = vmatpush1.msra.mxu0 %v2068
    %2083 = vmatprep.subr.mxu0 0.0
    %2084 = vmatpush1.msra.mxu0 %v2067
    %2085 = vmatprep.subr.mxu0 0.0
    %2086 = vmatpush1.msra.mxu0 %v2066
    %2087 = vmatprep.subr.mxu0 0.0
    %2088 = vmatpush1.msra.mxu0 %v2065
    %2089 = vmatprep.subr.mxu0 0.0
    %2090 = vmatpush1.msra.mxu0 %v2064
    %2091 = vmatprep.subr.mxu0 0.0
    %2092 = vmatpush1.msra.mxu0 %v2063
    %2093 = vmatprep.subr.mxu0 0.0
    %2094 = vmatpush1.msra.mxu0 %v2062
    %2095 = vmatprep.subr.mxu0 0.0
    %2096 = vmatpush1.msra.mxu0 %v2061
    %2097 = vmatprep.subr.mxu0 0.0
    %2098 = vmatpush1.msra.mxu0 %v2060
    %2099 = vmatprep.subr.mxu0 0.0
    %2100 = vmatpush1.msra.mxu0 %v2059
    %2101 = vmatprep.subr.mxu0 0.0
    %2102 = vmatpush1.msra.mxu0 %v2058
    %2103 = vmatprep.subr.mxu0 0.0
    %2104 = vmatpush1.msra.mxu0 %v2057
    %2105 = vmatprep.subr.mxu0 0.0
    %2106 = vmatpush2.msra.mxu0 0.0
    %2107 = vmatprep.subr.mxu0 0.0
    %2108 = vmatpush2.msra.mxu0 0.0
    %2109 = vmatprep.subr.mxu0 0.0
    %2110 = vmatpush2.msra.mxu0 0.0
    %2111 = vmatprep.subr.mxu0 0.0
    %2112 = vmatpush2.msra.mxu0 0.0
    %2113 = vmatprep.subr.mxu0 0.0
    %2114 = vmatpush2.msra.mxu0 0.0
    %2115 = vmatprep.subr.mxu0 0.0
    %2116 = vmatpush2.msra.mxu0 0.0
    %2117 = vmatprep.subr.mxu0 0.0
    %2118 = vmatpush2.msra.mxu0 0.0
    %2119 = vmatprep.subr.mxu0 0.0
    %2120 = vmatpush2.msra.mxu0 0.0
    %2121 = vmatprep.subr.mxu0 0.0
    %2122 = vmatpush2.msra.mxu0 0.0
    %2123 = vmatprep.subr.mxu0 0.0
    %2124 = vmatpush2.msra.mxu0 0.0
    %2125 = vmatprep.subr.mxu0 0.0
    %2126 = vmatpush2.msra.mxu0 0.0
    %2127 = vmatprep.subr.mxu0 0.0
    %2128 = vmatpush2.msra.mxu0 0.0
    %2129 = vmatprep.subr.mxu0 0.0
    %2130 = vmatpush2.msra.mxu0 0.0
    %2131 = vmatprep.subr.mxu0 0.0
    %2132 = vmatpush2.msra.mxu0 0.0
    %2133 = vmatprep.subr.mxu0 0.0
    %2134 = vmatpush2.msra.mxu0 0.0
    %2135 = vmatprep.subr.mxu0 0.0
    %2136 = vmatpush2.msra.mxu0 0.0
    %2137 = vmatprep.mubr.f32.mxu0 0.0
    %2138 = vmatmul.mubr.f32.gmra.mxu0 %v1816
    %v2139 = vpop.f32.mrf.mxu0
    %v2140 = vadd.f32 0.0, %v2139
    %v2141 = vpop.f32.mrf.mxu0
    %2142 = vmatprep.mubr.f32.mxu0 0.0
    %2143 = vmatmul.mubr.f32.gmra.mxu0 %v1817
    %v2144 = vpop.f32.mrf.mxu0
    %v2145 = vadd.f32 0.0, %v2144
    %v2146 = vpop.f32.mrf.mxu0
    %2147 = vmatprep.mubr.f32.mxu0 0.0
    %2148 = vmatmul.mubr.f32.gmra.mxu0 %v1818
    %v2149 = vpop.f32.mrf.mxu0
    %v2150 = vadd.f32 0.0, %v2149
    %v2151 = vpop.f32.mrf.mxu0
    %2152 = vmatprep.mubr.f32.mxu0 0.0
    %2153 = vmatmul.mubr.f32.gmra.mxu0 %v1819
    %v2154 = vpop.f32.mrf.mxu0
    %v2155 = vadd.f32 0.0, %v2154
    %v2156 = vpop.f32.mrf.mxu0
    %2157 = vmatprep.mubr.f32.mxu0 0.0
    %2158 = vmatmul.mubr.f32.gmra.mxu0 %v1820
    %v2159 = vpop.f32.mrf.mxu0
    %v2160 = vadd.f32 0.0, %v2159
    %v2161 = vpop.f32.mrf.mxu0
    %2162 = vmatprep.mubr.f32.mxu0 0.0
    %2163 = vmatmul.mubr.f32.gmra.mxu0 %v1821
    %v2164 = vpop.f32.mrf.mxu0
    %v2165 = vadd.f32 0.0, %v2164
    %v2166 = vpop.f32.mrf.mxu0
    %2167 = vmatprep.mubr.f32.mxu0 0.0
    %2168 = vmatmul.mubr.f32.gmra.mxu0 %v1822
    %v2169 = vpop.f32.mrf.mxu0
    %v2170 = vadd.f32 0.0, %v2169
    %v2171 = vpop.f32.mrf.mxu0
    %2172 = vmatprep.mubr.f32.mxu0 0.0
    %2173 = vmatmul.mubr.f32.gmra.mxu0 %v1823
    %v2174 = vpop.f32.mrf.mxu0
    %v2175 = vadd.f32 0.0, %v2174
    %v2176 = vpop.f32.mrf.mxu0
    %2177 = vmatprep.mubr.f32.mxu0 0.0
    %2178 = vmatmul.mubr.f32.gmra.mxu0 %v1824
    %v2179 = vpop.f32.mrf.mxu0
    %v2180 = vadd.f32 0.0, %v2179
    %v2181 = vpop.f32.mrf.mxu0
    %2182 = vmatprep.mubr.f32.mxu0 0.0
    %2183 = vmatmul.mubr.f32.gmra.mxu0 %v1825
    %v2184 = vpop.f32.mrf.mxu0
    %v2185 = vadd.f32 0.0, %v2184
    %v2186 = vpop.f32.mrf.mxu0
    %2187 = vmatprep.mubr.f32.mxu0 0.0
    %2188 = vmatmul.mubr.f32.gmra.mxu0 %v1826
    %v2189 = vpop.f32.mrf.mxu0
    %v2190 = vadd.f32 0.0, %v2189
    %v2191 = vpop.f32.mrf.mxu0
    %2192 = vmatprep.mubr.f32.mxu0 0.0
    %2193 = vmatmul.mubr.f32.gmra.mxu0 %v1827
    %v2194 = vpop.f32.mrf.mxu0
    %v2195 = vadd.f32 0.0, %v2194
    %v2196 = vpop.f32.mrf.mxu0
    %2197 = vmatprep.mubr.f32.mxu0 0.0
    %2198 = vmatmul.mubr.f32.gmra.mxu0 %v1828
    %v2199 = vpop.f32.mrf.mxu0
    %v2200 = vadd.f32 0.0, %v2199
    %v2201 = vpop.f32.mrf.mxu0
    %2202 = vmatprep.mubr.f32.mxu0 0.0
    %2203 = vmatmul.mubr.f32.gmra.mxu0 %v1829
    %v2204 = vpop.f32.mrf.mxu0
    %v2205 = vadd.f32 0.0, %v2204
    %v2206 = vpop.f32.mrf.mxu0
    %2207 = vmatprep.mubr.f32.mxu0 0.0
    %2208 = vmatmul.mubr.f32.gmra.mxu0 %v1830
    %v2209 = vpop.f32.mrf.mxu0
    %v2210 = vadd.f32 0.0, %v2209
    %v2211 = vpop.f32.mrf.mxu0
    %2212 = vmatprep.mubr.f32.mxu0 0.0
    %2213 = vmatmul.mubr.f32.gmra.mxu0 %v1831
    %v2214 = vpop.f32.mrf.mxu0
    %v2215 = vadd.f32 0.0, %v2214
    %v2216 = vpop.f32.mrf.mxu0
    %2217 = vmatprep.mubr.f32.mxu0 0.0
    %2218 = vmatmul.mubr.f32.gmra.mxu0 %v1832
    %v2219 = vpop.f32.mrf.mxu0
    %v2220 = vadd.f32 0.0, %v2219
    %v2221 = vpop.f32.mrf.mxu0
    %2222 = vmatprep.mubr.f32.mxu0 0.0
    %2223 = vmatmul.mubr.f32.gmra.mxu0 %v1833
    %v2224 = vpop.f32.mrf.mxu0
    %v2225 = vadd.f32 0.0, %v2224
    %v2226 = vpop.f32.mrf.mxu0
    %2227 = vmatprep.mubr.f32.mxu0 0.0
    %2228 = vmatmul.mubr.f32.gmra.mxu0 %v1834
    %v2229 = vpop.f32.mrf.mxu0
    %v2230 = vadd.f32 0.0, %v2229
    %v2231 = vpop.f32.mrf.mxu0
    %2232 = vmatprep.mubr.f32.mxu0 0.0
    %2233 = vmatmul.mubr.f32.gmra.mxu0 %v1835
    %v2234 = vpop.f32.mrf.mxu0
    %v2235 = vadd.f32 0.0, %v2234
    %v2236 = vpop.f32.mrf.mxu0
    %2237 = vmatprep.mubr.f32.mxu0 0.0
    %2238 = vmatmul.mubr.f32.gmra.mxu0 %v1836
    %v2239 = vpop.f32.mrf.mxu0
    %v2240 = vadd.f32 0.0, %v2239
    %v2241 = vpop.f32.mrf.mxu0
    %2242 = vmatprep.mubr.f32.mxu0 0.0
    %2243 = vmatmul.mubr.f32.gmra.mxu0 %v1837
    %v2244 = vpop.f32.mrf.mxu0
    %v2245 = vadd.f32 0.0, %v2244
    %v2246 = vpop.f32.mrf.mxu0
    %2247 = vmatprep.mubr.f32.mxu0 0.0
    %2248 = vmatmul.mubr.f32.gmra.mxu0 %v1838
    %v2249 = vpop.f32.mrf.mxu0
    %v2250 = vadd.f32 0.0, %v2249
    %v2251 = vpop.f32.mrf.mxu0
    %2252 = vmatprep.mubr.f32.mxu0 0.0
    %2253 = vmatmul.mubr.f32.gmra.mxu0 %v1839
    %v2254 = vpop.f32.mrf.mxu0
    %v2255 = vadd.f32 0.0, %v2254
    %v2256 = vpop.f32.mrf.mxu0
    %2257 = vmatprep.mubr.f32.mxu0 0.0
    %2258 = vmatmul.mubr.f32.gmra.mxu0 %v1840
    %v2259 = vpop.f32.mrf.mxu0
    %v2260 = vadd.f32 0.0, %v2259
    %v2261 = vpop.f32.mrf.mxu0
    %2262 = vmatprep.mubr.f32.mxu0 0.0
    %2263 = vmatmul.mubr.f32.gmra.mxu0 %v1841
    %v2264 = vpop.f32.mrf.mxu0
    %v2265 = vadd.f32 0.0, %v2264
    %v2266 = vpop.f32.mrf.mxu0
    %2267 = vmatprep.mubr.f32.mxu0 0.0
    %2268 = vmatmul.mubr.f32.gmra.mxu0 %v1842
    %v2269 = vpop.f32.mrf.mxu0
    %v2270 = vadd.f32 0.0, %v2269
    %v2271 = vpop.f32.mrf.mxu0
    %2272 = vmatprep.mubr.f32.mxu0 0.0
    %2273 = vmatmul.mubr.f32.gmra.mxu0 %v1843
    %v2274 = vpop.f32.mrf.mxu0
    %v2275 = vadd.f32 0.0, %v2274
    %v2276 = vpop.f32.mrf.mxu0
    %2277 = vmatprep.mubr.f32.mxu0 0.0
    %2278 = vmatmul.mubr.f32.gmra.mxu0 %v1844
    %v2279 = vpop.f32.mrf.mxu0
    %v2280 = vadd.f32 0.0, %v2279
    %v2281 = vpop.f32.mrf.mxu0
    %2282 = vmatprep.mubr.f32.mxu0 0.0
    %2283 = vmatmul.mubr.f32.gmra.mxu0 %v1845
    %v2284 = vpop.f32.mrf.mxu0
    %v2285 = vadd.f32 0.0, %v2284
    %v2286 = vpop.f32.mrf.mxu0
    %2287 = vmatprep.mubr.f32.mxu0 0.0
    %2288 = vmatmul.mubr.f32.gmra.mxu0 %v1846
    %v2289 = vpop.f32.mrf.mxu0
    %v2290 = vadd.f32 0.0, %v2289
    %v2291 = vpop.f32.mrf.mxu0
    %2292 = vmatprep.mubr.f32.mxu0 0.0
    %2293 = vmatmul.mubr.f32.gmra.mxu0 %v1847
    %v2294 = vpop.f32.mrf.mxu0
    %v2295 = vadd.f32 0.0, %v2294
    %v2296 = vpop.f32.mrf.mxu0
    %2297 = vdwg.mxu0
    %2298 = vmatprep.subr.mxu0 0.0
    %2299 = vmatpush1.msra.mxu0 %v2055
    %2300 = vmatprep.subr.mxu0 0.0
    %2301 = vmatpush1.msra.mxu0 %v2054
    %2302 = vmatprep.subr.mxu0 0.0
    %2303 = vmatpush1.msra.mxu0 %v2053
    %2304 = vmatprep.subr.mxu0 0.0
    %2305 = vmatpush1.msra.mxu0 %v2052
    %2306 = vmatprep.subr.mxu0 0.0
    %2307 = vmatpush1.msra.mxu0 %v2051
    %2308 = vmatprep.subr.mxu0 0.0
    %2309 = vmatpush1.msra.mxu0 %v2050
    %2310 = vmatprep.subr.mxu0 0.0
    %2311 = vmatpush1.msra.mxu0 %v2049
    %2312 = vmatprep.subr.mxu0 0.0
    %2313 = vmatpush1.msra.mxu0 %v2048
    %2314 = vmatprep.subr.mxu0 0.0
    %2315 = vmatpush1.msra.mxu0 %v2047
    %2316 = vmatprep.subr.mxu0 0.0
    %2317 = vmatpush1.msra.mxu0 %v2046
    %2318 = vmatprep.subr.mxu0 0.0
    %2319 = vmatpush1.msra.mxu0 %v2045
    %2320 = vmatprep.subr.mxu0 0.0
    %2321 = vmatpush1.msra.mxu0 %v2044
    %2322 = vmatprep.subr.mxu0 0.0
    %2323 = vmatpush1.msra.mxu0 %v2043
    %2324 = vmatprep.subr.mxu0 0.0
    %2325 = vmatpush1.msra.mxu0 %v2042
    %2326 = vmatprep.subr.mxu0 0.0
    %2327 = vmatpush1.msra.mxu0 %v2041
    %2328 = vmatprep.subr.mxu0 0.0
    %2329 = vmatpush1.msra.mxu0 %v2040
    %2330 = vmatprep.subr.mxu0 0.0
    %2331 = vmatpush2.msra.mxu0 0.0
    %2332 = vmatprep.subr.mxu0 0.0
    %2333 = vmatpush2.msra.mxu0 0.0
    %2334 = vmatprep.subr.mxu0 0.0
    %2335 = vmatpush2.msra.mxu0 0.0
    %2336 = vmatprep.subr.mxu0 0.0
    %2337 = vmatpush2.msra.mxu0 0.0
    %2338 = vmatprep.subr.mxu0 0.0
    %2339 = vmatpush2.msra.mxu0 0.0
    %2340 = vmatprep.subr.mxu0 0.0
    %2341 = vmatpush2.msra.mxu0 0.0
    %2342 = vmatprep.subr.mxu0 0.0
    %2343 = vmatpush2.msra.mxu0 0.0
    %2344 = vmatprep.subr.mxu0 0.0
    %2345 = vmatpush2.msra.mxu0 0.0
    %2346 = vmatprep.subr.mxu0 0.0
    %2347 = vmatpush2.msra.mxu0 0.0
    %2348 = vmatprep.subr.mxu0 0.0
    %2349 = vmatpush2.msra.mxu0 0.0
    %2350 = vmatprep.subr.mxu0 0.0
    %2351 = vmatpush2.msra.mxu0 0.0
    %2352 = vmatprep.subr.mxu0 0.0
    %2353 = vmatpush2.msra.mxu0 0.0
    %2354 = vmatprep.subr.mxu0 0.0
    %2355 = vmatpush2.msra.mxu0 0.0
    %2356 = vmatprep.subr.mxu0 0.0
    %2357 = vmatpush2.msra.mxu0 0.0
    %2358 = vmatprep.subr.mxu0 0.0
    %2359 = vmatpush2.msra.mxu0 0.0
    %2360 = vmatprep.subr.mxu0 0.0
    %2361 = vmatpush2.msra.mxu0 0.0
    %2362 = vmatprep.mubr.f32.mxu0 0.0
    %2363 = vmatmul.mubr.f32.gmra.mxu0 %v1912
    %v2364 = vpop.f32.mrf.mxu0
    %v2365 = vadd.f32 %v2140, %v2364
    %v2366 = vpop.f32.mrf.mxu0
    %2367 = vmatprep.mubr.f32.mxu0 0.0
    %2368 = vmatmul.mubr.f32.gmra.mxu0 %v1913
    %v2369 = vpop.f32.mrf.mxu0
    %v2370 = vadd.f32 %v2145, %v2369
    %v2371 = vpop.f32.mrf.mxu0
    %2372 = vmatprep.mubr.f32.mxu0 0.0
    %2373 = vmatmul.mubr.f32.gmra.mxu0 %v1914
    %v2374 = vpop.f32.mrf.mxu0
    %v2375 = vadd.f32 %v2150, %v2374
    %v2376 = vpop.f32.mrf.mxu0
    %2377 = vmatprep.mubr.f32.mxu0 0.0
    %2378 = vmatmul.mubr.f32.gmra.mxu0 %v1915
    %v2379 = vpop.f32.mrf.mxu0
    %v2380 = vadd.f32 %v2155, %v2379
    %v2381 = vpop.f32.mrf.mxu0
    %2382 = vmatprep.mubr.f32.mxu0 0.0
    %2383 = vmatmul.mubr.f32.gmra.mxu0 %v1916
    %v2384 = vpop.f32.mrf.mxu0
    %v2385 = vadd.f32 %v2160, %v2384
    %v2386 = vpop.f32.mrf.mxu0
    %2387 = vmatprep.mubr.f32.mxu0 0.0
    %2388 = vmatmul.mubr.f32.gmra.mxu0 %v1917
    %v2389 = vpop.f32.mrf.mxu0
    %v2390 = vadd.f32 %v2165, %v2389
    %v2391 = vpop.f32.mrf.mxu0
    %2392 = vmatprep.mubr.f32.mxu0 0.0
    %2393 = vmatmul.mubr.f32.gmra.mxu0 %v1918
    %v2394 = vpop.f32.mrf.mxu0
    %v2395 = vadd.f32 %v2170, %v2394
    %v2396 = vpop.f32.mrf.mxu0
    %2397 = vmatprep.mubr.f32.mxu0 0.0
    %2398 = vmatmul.mubr.f32.gmra.mxu0 %v1919
    %v2399 = vpop.f32.mrf.mxu0
    %v2400 = vadd.f32 %v2175, %v2399
    %v2401 = vpop.f32.mrf.mxu0
    %2402 = vmatprep.mubr.f32.mxu0 0.0
    %2403 = vmatmul.mubr.f32.gmra.mxu0 %v1920
    %v2404 = vpop.f32.mrf.mxu0
    %v2405 = vadd.f32 %v2180, %v2404
    %v2406 = vpop.f32.mrf.mxu0
    %2407 = vmatprep.mubr.f32.mxu0 0.0
    %2408 = vmatmul.mubr.f32.gmra.mxu0 %v1921
    %v2409 = vpop.f32.mrf.mxu0
    %v2410 = vadd.f32 %v2185, %v2409
    %v2411 = vpop.f32.mrf.mxu0
    %2412 = vmatprep.mubr.f32.mxu0 0.0
    %2413 = vmatmul.mubr.f32.gmra.mxu0 %v1922
    %v2414 = vpop.f32.mrf.mxu0
    %v2415 = vadd.f32 %v2190, %v2414
    %v2416 = vpop.f32.mrf.mxu0
    %2417 = vmatprep.mubr.f32.mxu0 0.0
    %2418 = vmatmul.mubr.f32.gmra.mxu0 %v1923
    %v2419 = vpop.f32.mrf.mxu0
    %v2420 = vadd.f32 %v2195, %v2419
    %v2421 = vpop.f32.mrf.mxu0
    %2422 = vmatprep.mubr.f32.mxu0 0.0
    %2423 = vmatmul.mubr.f32.gmra.mxu0 %v1924
    %v2424 = vpop.f32.mrf.mxu0
    %v2425 = vadd.f32 %v2200, %v2424
    %v2426 = vpop.f32.mrf.mxu0
    %2427 = vmatprep.mubr.f32.mxu0 0.0
    %2428 = vmatmul.mubr.f32.gmra.mxu0 %v1925
    %v2429 = vpop.f32.mrf.mxu0
    %v2430 = vadd.f32 %v2205, %v2429
    %v2431 = vpop.f32.mrf.mxu0
    %2432 = vmatprep.mubr.f32.mxu0 0.0
    %2433 = vmatmul.mubr.f32.gmra.mxu0 %v1926
    %v2434 = vpop.f32.mrf.mxu0
    %v2435 = vadd.f32 %v2210, %v2434
    %v2436 = vpop.f32.mrf.mxu0
    %2437 = vmatprep.mubr.f32.mxu0 0.0
    %2438 = vmatmul.mubr.f32.gmra.mxu0 %v1927
    %v2439 = vpop.f32.mrf.mxu0
    %v2440 = vadd.f32 %v2215, %v2439
    %v2441 = vpop.f32.mrf.mxu0
    %2442 = vmatprep.mubr.f32.mxu0 0.0
    %2443 = vmatmul.mubr.f32.gmra.mxu0 %v1928
    %v2444 = vpop.f32.mrf.mxu0
    %v2445 = vadd.f32 %v2220, %v2444
    %v2446 = vpop.f32.mrf.mxu0
    %2447 = vmatprep.mubr.f32.mxu0 0.0
    %2448 = vmatmul.mubr.f32.gmra.mxu0 %v1929
    %v2449 = vpop.f32.mrf.mxu0
    %v2450 = vadd.f32 %v2225, %v2449
    %v2451 = vpop.f32.mrf.mxu0
    %2452 = vmatprep.mubr.f32.mxu0 0.0
    %2453 = vmatmul.mubr.f32.gmra.mxu0 %v1930
    %v2454 = vpop.f32.mrf.mxu0
    %v2455 = vadd.f32 %v2230, %v2454
    %v2456 = vpop.f32.mrf.mxu0
    %2457 = vmatprep.mubr.f32.mxu0 0.0
    %2458 = vmatmul.mubr.f32.gmra.mxu0 %v1931
    %v2459 = vpop.f32.mrf.mxu0
    %v2460 = vadd.f32 %v2235, %v2459
    %v2461 = vpop.f32.mrf.mxu0
    %2462 = vmatprep.mubr.f32.mxu0 0.0
    %2463 = vmatmul.mubr.f32.gmra.mxu0 %v1932
    %v2464 = vpop.f32.mrf.mxu0
    %v2465 = vadd.f32 %v2240, %v2464
    %v2466 = vpop.f32.mrf.mxu0
    %2467 = vmatprep.mubr.f32.mxu0 0.0
    %2468 = vmatmul.mubr.f32.gmra.mxu0 %v1933
    %v2469 = vpop.f32.mrf.mxu0
    %v2470 = vadd.f32 %v2245, %v2469
    %v2471 = vpop.f32.mrf.mxu0
    %2472 = vmatprep.mubr.f32.mxu0 0.0
    %2473 = vmatmul.mubr.f32.gmra.mxu0 %v1934
    %v2474 = vpop.f32.mrf.mxu0
    %v2475 = vadd.f32 %v2250, %v2474
    %v2476 = vpop.f32.mrf.mxu0
    %2477 = vmatprep.mubr.f32.mxu0 0.0
    %2478 = vmatmul.mubr.f32.gmra.mxu0 %v1935
    %v2479 = vpop.f32.mrf.mxu0
    %v2480 = vadd.f32 %v2255, %v2479
    %v2481 = vpop.f32.mrf.mxu0
    %2482 = vmatprep.mubr.f32.mxu0 0.0
    %2483 = vmatmul.mubr.f32.gmra.mxu0 %v1936
    %v2484 = vpop.f32.mrf.mxu0
    %v2485 = vadd.f32 %v2260, %v2484
    %v2486 = vpop.f32.mrf.mxu0
    %2487 = vmatprep.mubr.f32.mxu0 0.0
    %2488 = vmatmul.mubr.f32.gmra.mxu0 %v1937
    %v2489 = vpop.f32.mrf.mxu0
    %v2490 = vadd.f32 %v2265, %v2489
    %v2491 = vpop.f32.mrf.mxu0
    %2492 = vmatprep.mubr.f32.mxu0 0.0
    %2493 = vmatmul.mubr.f32.gmra.mxu0 %v1938
    %v2494 = vpop.f32.mrf.mxu0
    %v2495 = vadd.f32 %v2270, %v2494
    %v2496 = vpop.f32.mrf.mxu0
    %2497 = vmatprep.mubr.f32.mxu0 0.0
    %2498 = vmatmul.mubr.f32.gmra.mxu0 %v1939
    %v2499 = vpop.f32.mrf.mxu0
    %v2500 = vadd.f32 %v2275, %v2499
    %v2501 = vpop.f32.mrf.mxu0
    %2502 = vmatprep.mubr.f32.mxu0 0.0
    %2503 = vmatmul.mubr.f32.gmra.mxu0 %v1940
    %v2504 = vpop.f32.mrf.mxu0
    %v2505 = vadd.f32 %v2280, %v2504
    %v2506 = vpop.f32.mrf.mxu0
    %2507 = vmatprep.mubr.f32.mxu0 0.0
    %2508 = vmatmul.mubr.f32.gmra.mxu0 %v1941
    %v2509 = vpop.f32.mrf.mxu0
    %v2510 = vadd.f32 %v2285, %v2509
    %v2511 = vpop.f32.mrf.mxu0
    %2512 = vmatprep.mubr.f32.mxu0 0.0
    %2513 = vmatmul.mubr.f32.gmra.mxu0 %v1942
    %v2514 = vpop.f32.mrf.mxu0
    %v2515 = vadd.f32 %v2290, %v2514
    %v2516 = vpop.f32.mrf.mxu0
    %2517 = vmatprep.mubr.f32.mxu0 0.0
    %2518 = vmatmul.mubr.f32.gmra.mxu0 %v1943
    %v2519 = vpop.f32.mrf.mxu0
    %v2520 = vadd.f32 %v2295, %v2519
    %v2521 = vpop.f32.mrf.mxu0
    %2522 = vdwg.mxu0
    %s2523 = scalar_lea.vmem [#allocation7], 256
    %v2524 = vld [vmem:[%s2523] sm:$0xff]
    %v2525 = vld [vmem:[%s2523 + $0x8] sm:$0xff]
    %v2526 = vld [vmem:[%s2523 + $0x10] sm:$0xff]
    %v2527 = vld [vmem:[%s2523 + $0x18] sm:$0xff]
    %v2528 = vld [vmem:[%s2523 + $0x20] sm:$0xff]
    %v2529 = vld [vmem:[%s2523 + $0x28] sm:$0xff]
    %v2530 = vld [vmem:[%s2523 + $0x30] sm:$0xff]
    %v2531 = vld [vmem:[%s2523 + $0x38] sm:$0xff]
    %v2532 = vld [vmem:[%s2523 + $0x40] sm:$0xff]
    %v2533 = vld [vmem:[%s2523 + $0x48] sm:$0xff]
    %v2534 = vld [vmem:[%s2523 + $0x50] sm:$0xff]
    %v2535 = vld [vmem:[%s2523 + $0x58] sm:$0xff]
    %v2536 = vld [vmem:[%s2523 + $0x60] sm:$0xff]
    %v2537 = vld [vmem:[%s2523 + $0x68] sm:$0xff]
    %v2538 = vld [vmem:[%s2523 + $0x70] sm:$0xff]
    %v2539 = vld [vmem:[%s2523 + $0x78] sm:$0xff]
    %2540 = vmatprep.subr.mxu0 0.0
    %2541 = vmatpush1.msra.mxu0 %v2539
    %2542 = vmatprep.subr.mxu0 0.0
    %2543 = vmatpush1.msra.mxu0 %v2538
    %2544 = vmatprep.subr.mxu0 0.0
    %2545 = vmatpush1.msra.mxu0 %v2537
    %2546 = vmatprep.subr.mxu0 0.0
    %2547 = vmatpush1.msra.mxu0 %v2536
    %2548 = vmatprep.subr.mxu0 0.0
    %2549 = vmatpush1.msra.mxu0 %v2535
    %2550 = vmatprep.subr.mxu0 0.0
    %2551 = vmatpush1.msra.mxu0 %v2534
    %2552 = vmatprep.subr.mxu0 0.0
    %2553 = vmatpush1.msra.mxu0 %v2533
    %2554 = vmatprep.subr.mxu0 0.0
    %2555 = vmatpush1.msra.mxu0 %v2532
    %2556 = vmatprep.subr.mxu0 0.0
    %2557 = vmatpush1.msra.mxu0 %v2531
    %2558 = vmatprep.subr.mxu0 0.0
    %2559 = vmatpush1.msra.mxu0 %v2530
    %2560 = vmatprep.subr.mxu0 0.0
    %2561 = vmatpush1.msra.mxu0 %v2529
    %2562 = vmatprep.subr.mxu0 0.0
    %2563 = vmatpush1.msra.mxu0 %v2528
    %2564 = vmatprep.subr.mxu0 0.0
    %2565 = vmatpush1.msra.mxu0 %v2527
    %2566 = vmatprep.subr.mxu0 0.0
    %2567 = vmatpush1.msra.mxu0 %v2526
    %2568 = vmatprep.subr.mxu0 0.0
    %2569 = vmatpush1.msra.mxu0 %v2525
    %2570 = vmatprep.subr.mxu0 0.0
    %2571 = vmatpush1.msra.mxu0 %v2524
    %2572 = vmatprep.subr.mxu0 0.0
    %2573 = vmatpush2.msra.mxu0 0.0
    %2574 = vmatprep.subr.mxu0 0.0
    %2575 = vmatpush2.msra.mxu0 0.0
    %2576 = vmatprep.subr.mxu0 0.0
    %2577 = vmatpush2.msra.mxu0 0.0
    %2578 = vmatprep.subr.mxu0 0.0
    %2579 = vmatpush2.msra.mxu0 0.0
    %2580 = vmatprep.subr.mxu0 0.0
    %2581 = vmatpush2.msra.mxu0 0.0
    %2582 = vmatprep.subr.mxu0 0.0
    %2583 = vmatpush2.msra.mxu0 0.0
    %2584 = vmatprep.subr.mxu0 0.0
    %2585 = vmatpush2.msra.mxu0 0.0
    %2586 = vmatprep.subr.mxu0 0.0
    %2587 = vmatpush2.msra.mxu0 0.0
    %2588 = vmatprep.subr.mxu0 0.0
    %2589 = vmatpush2.msra.mxu0 0.0
    %2590 = vmatprep.subr.mxu0 0.0
    %2591 = vmatpush2.msra.mxu0 0.0
    %2592 = vmatprep.subr.mxu0 0.0
    %2593 = vmatpush2.msra.mxu0 0.0
    %2594 = vmatprep.subr.mxu0 0.0
    %2595 = vmatpush2.msra.mxu0 0.0
    %2596 = vmatprep.subr.mxu0 0.0
    %2597 = vmatpush2.msra.mxu0 0.0
    %2598 = vmatprep.subr.mxu0 0.0
    %2599 = vmatpush2.msra.mxu0 0.0
    %2600 = vmatprep.subr.mxu0 0.0
    %2601 = vmatpush2.msra.mxu0 0.0
    %2602 = vmatprep.subr.mxu0 0.0
    %2603 = vmatpush2.msra.mxu0 0.0
    %2604 = vmatprep.mubr.f32.mxu0 0.0
    %2605 = vmatmul.mubr.f32.gmra.mxu0 %v2008
    %v2606 = vpop.f32.mrf.mxu0
    %v2607 = vadd.f32 0.0, %v2606
    %v2608 = vpop.f32.mrf.mxu0
    %2609 = vmatprep.mubr.f32.mxu0 0.0
    %2610 = vmatmul.mubr.f32.gmra.mxu0 %v2009
    %v2611 = vpop.f32.mrf.mxu0
    %v2612 = vadd.f32 0.0, %v2611
    %v2613 = vpop.f32.mrf.mxu0
    %2614 = vmatprep.mubr.f32.mxu0 0.0
    %2615 = vmatmul.mubr.f32.gmra.mxu0 %v2010
    %v2616 = vpop.f32.mrf.mxu0
    %v2617 = vadd.f32 0.0, %v2616
    %v2618 = vpop.f32.mrf.mxu0
    %2619 = vmatprep.mubr.f32.mxu0 0.0
    %2620 = vmatmul.mubr.f32.gmra.mxu0 %v2011
    %v2621 = vpop.f32.mrf.mxu0
    %v2622 = vadd.f32 0.0, %v2621
    %v2623 = vpop.f32.mrf.mxu0
    %2624 = vmatprep.mubr.f32.mxu0 0.0
    %2625 = vmatmul.mubr.f32.gmra.mxu0 %v2012
    %v2626 = vpop.f32.mrf.mxu0
    %v2627 = vadd.f32 0.0, %v2626
    %v2628 = vpop.f32.mrf.mxu0
    %2629 = vmatprep.mubr.f32.mxu0 0.0
    %2630 = vmatmul.mubr.f32.gmra.mxu0 %v2013
    %v2631 = vpop.f32.mrf.mxu0
    %v2632 = vadd.f32 0.0, %v2631
    %v2633 = vpop.f32.mrf.mxu0
    %2634 = vmatprep.mubr.f32.mxu0 0.0
    %2635 = vmatmul.mubr.f32.gmra.mxu0 %v2014
    %v2636 = vpop.f32.mrf.mxu0
    %v2637 = vadd.f32 0.0, %v2636
    %v2638 = vpop.f32.mrf.mxu0
    %2639 = vmatprep.mubr.f32.mxu0 0.0
    %2640 = vmatmul.mubr.f32.gmra.mxu0 %v2015
    %v2641 = vpop.f32.mrf.mxu0
    %v2642 = vadd.f32 0.0, %v2641
    %v2643 = vpop.f32.mrf.mxu0
    %2644 = vmatprep.mubr.f32.mxu0 0.0
    %2645 = vmatmul.mubr.f32.gmra.mxu0 %v2016
    %v2646 = vpop.f32.mrf.mxu0
    %v2647 = vadd.f32 0.0, %v2646
    %v2648 = vpop.f32.mrf.mxu0
    %2649 = vmatprep.mubr.f32.mxu0 0.0
    %2650 = vmatmul.mubr.f32.gmra.mxu0 %v2017
    %v2651 = vpop.f32.mrf.mxu0
    %v2652 = vadd.f32 0.0, %v2651
    %v2653 = vpop.f32.mrf.mxu0
    %2654 = vmatprep.mubr.f32.mxu0 0.0
    %2655 = vmatmul.mubr.f32.gmra.mxu0 %v2018
    %v2656 = vpop.f32.mrf.mxu0
    %v2657 = vadd.f32 0.0, %v2656
    %v2658 = vpop.f32.mrf.mxu0
    %2659 = vmatprep.mubr.f32.mxu0 0.0
    %2660 = vmatmul.mubr.f32.gmra.mxu0 %v2019
    %v2661 = vpop.f32.mrf.mxu0
    %v2662 = vadd.f32 0.0, %v2661
    %v2663 = vpop.f32.mrf.mxu0
    %2664 = vmatprep.mubr.f32.mxu0 0.0
    %2665 = vmatmul.mubr.f32.gmra.mxu0 %v2020
    %v2666 = vpop.f32.mrf.mxu0
    %v2667 = vadd.f32 0.0, %v2666
    %v2668 = vpop.f32.mrf.mxu0
    %2669 = vmatprep.mubr.f32.mxu0 0.0
    %2670 = vmatmul.mubr.f32.gmra.mxu0 %v2021
    %v2671 = vpop.f32.mrf.mxu0
    %v2672 = vadd.f32 0.0, %v2671
    %v2673 = vpop.f32.mrf.mxu0
    %2674 = vmatprep.mubr.f32.mxu0 0.0
    %2675 = vmatmul.mubr.f32.gmra.mxu0 %v2022
    %v2676 = vpop.f32.mrf.mxu0
    %v2677 = vadd.f32 0.0, %v2676
    %v2678 = vpop.f32.mrf.mxu0
    %2679 = vmatprep.mubr.f32.mxu0 0.0
    %2680 = vmatmul.mubr.f32.gmra.mxu0 %v2023
    %v2681 = vpop.f32.mrf.mxu0
    %v2682 = vadd.f32 0.0, %v2681
    %v2683 = vpop.f32.mrf.mxu0
    %2684 = vmatprep.mubr.f32.mxu0 0.0
    %2685 = vmatmul.mubr.f32.gmra.mxu0 %v2024
    %v2686 = vpop.f32.mrf.mxu0
    %v2687 = vadd.f32 0.0, %v2686
    %v2688 = vpop.f32.mrf.mxu0
    %2689 = vmatprep.mubr.f32.mxu0 0.0
    %2690 = vmatmul.mubr.f32.gmra.mxu0 %v2025
    %v2691 = vpop.f32.mrf.mxu0
    %v2692 = vadd.f32 0.0, %v2691
    %v2693 = vpop.f32.mrf.mxu0
    %2694 = vmatprep.mubr.f32.mxu0 0.0
    %2695 = vmatmul.mubr.f32.gmra.mxu0 %v2026
    %v2696 = vpop.f32.mrf.mxu0
    %v2697 = vadd.f32 0.0, %v2696
    %v2698 = vpop.f32.mrf.mxu0
    %2699 = vmatprep.mubr.f32.mxu0 0.0
    %2700 = vmatmul.mubr.f32.gmra.mxu0 %v2027
    %v2701 = vpop.f32.mrf.mxu0
    %v2702 = vadd.f32 0.0, %v2701
    %v2703 = vpop.f32.mrf.mxu0
    %2704 = vmatprep.mubr.f32.mxu0 0.0
    %2705 = vmatmul.mubr.f32.gmra.mxu0 %v2028
    %v2706 = vpop.f32.mrf.mxu0
    %v2707 = vadd.f32 0.0, %v2706
    %v2708 = vpop.f32.mrf.mxu0
    %2709 = vmatprep.mubr.f32.mxu0 0.0
    %2710 = vmatmul.mubr.f32.gmra.mxu0 %v2029
    %v2711 = vpop.f32.mrf.mxu0
    %v2712 = vadd.f32 0.0, %v2711
    %v2713 = vpop.f32.mrf.mxu0
    %2714 = vmatprep.mubr.f32.mxu0 0.0
    %2715 = vmatmul.mubr.f32.gmra.mxu0 %v2030
    %v2716 = vpop.f32.mrf.mxu0
    %v2717 = vadd.f32 0.0, %v2716
    %v2718 = vpop.f32.mrf.mxu0
    %2719 = vmatprep.mubr.f32.mxu0 0.0
    %2720 = vmatmul.mubr.f32.gmra.mxu0 %v2031
    %v2721 = vpop.f32.mrf.mxu0
    %v2722 = vadd.f32 0.0, %v2721
    %v2723 = vpop.f32.mrf.mxu0
    %2724 = vmatprep.mubr.f32.mxu0 0.0
    %2725 = vmatmul.mubr.f32.gmra.mxu0 %v2032
    %v2726 = vpop.f32.mrf.mxu0
    %v2727 = vadd.f32 0.0, %v2726
    %v2728 = vpop.f32.mrf.mxu0
    %2729 = vmatprep.mubr.f32.mxu0 0.0
    %2730 = vmatmul.mubr.f32.gmra.mxu0 %v2033
    %v2731 = vpop.f32.mrf.mxu0
    %v2732 = vadd.f32 0.0, %v2731
    %v2733 = vpop.f32.mrf.mxu0
    %2734 = vmatprep.mubr.f32.mxu0 0.0
    %2735 = vmatmul.mubr.f32.gmra.mxu0 %v2034
    %v2736 = vpop.f32.mrf.mxu0
    %v2737 = vadd.f32 0.0, %v2736
    %v2738 = vpop.f32.mrf.mxu0
    %2739 = vmatprep.mubr.f32.mxu0 0.0
    %2740 = vmatmul.mubr.f32.gmra.mxu0 %v2035
    %v2741 = vpop.f32.mrf.mxu0
    %v2742 = vadd.f32 0.0, %v2741
    %v2743 = vpop.f32.mrf.mxu0
    %2744 = vmatprep.mubr.f32.mxu0 0.0
    %2745 = vmatmul.mubr.f32.gmra.mxu0 %v2036
    %v2746 = vpop.f32.mrf.mxu0
    %v2747 = vadd.f32 0.0, %v2746
    %v2748 = vpop.f32.mrf.mxu0
    %2749 = vmatprep.mubr.f32.mxu0 0.0
    %2750 = vmatmul.mubr.f32.gmra.mxu0 %v2037
    %v2751 = vpop.f32.mrf.mxu0
    %v2752 = vadd.f32 0.0, %v2751
    %v2753 = vpop.f32.mrf.mxu0
    %2754 = vmatprep.mubr.f32.mxu0 0.0
    %2755 = vmatmul.mubr.f32.gmra.mxu0 %v2038
    %v2756 = vpop.f32.mrf.mxu0
    %v2757 = vadd.f32 0.0, %v2756
    %v2758 = vpop.f32.mrf.mxu0
    %2759 = vmatprep.mubr.f32.mxu0 0.0
    %2760 = vmatmul.mubr.f32.gmra.mxu0 %v2039
    %v2761 = vpop.f32.mrf.mxu0
    %v2762 = vadd.f32 0.0, %v2761
    %v2763 = vpop.f32.mrf.mxu0
    %2764 = vdwg.mxu0
    %v2765 = vadd.f32 %v2365, %v2607
    %v2766 = vadd.f32 %v2370, %v2612
    %v2767 = vadd.f32 %v2375, %v2617
    %v2768 = vadd.f32 %v2380, %v2622
    %v2769 = vadd.f32 %v2385, %v2627
    %v2770 = vadd.f32 %v2390, %v2632
    %v2771 = vadd.f32 %v2395, %v2637
    %v2772 = vadd.f32 %v2400, %v2642
    %v2773 = vadd.f32 %v2405, %v2647
    %v2774 = vadd.f32 %v2410, %v2652
    %v2775 = vadd.f32 %v2415, %v2657
    %v2776 = vadd.f32 %v2420, %v2662
    %v2777 = vadd.f32 %v2425, %v2667
    %v2778 = vadd.f32 %v2430, %v2672
    %v2779 = vadd.f32 %v2435, %v2677
    %v2780 = vadd.f32 %v2440, %v2682
    %v2781 = vadd.f32 %v2445, %v2687
    %v2782 = vadd.f32 %v2450, %v2692
    %v2783 = vadd.f32 %v2455, %v2697
    %v2784 = vadd.f32 %v2460, %v2702
    %v2785 = vadd.f32 %v2465, %v2707
    %v2786 = vadd.f32 %v2470, %v2712
    %v2787 = vadd.f32 %v2475, %v2717
    %v2788 = vadd.f32 %v2480, %v2722
    %v2789 = vadd.f32 %v2485, %v2727
    %v2790 = vadd.f32 %v2490, %v2732
    %v2791 = vadd.f32 %v2495, %v2737
    %v2792 = vadd.f32 %v2500, %v2742
    %v2793 = vadd.f32 %v2505, %v2747
    %v2794 = vadd.f32 %v2510, %v2752
    %v2795 = vadd.f32 %v2515, %v2757
    %v2796 = vadd.f32 %v2520, %v2762
    %v2797 = vadd.f32 %v2765, %v2766
    %v2798 = vadd.f32 %v2797, %v2767
    %v2799 = vadd.f32 %v2798, %v2768
    %v2800 = vadd.f32 %v2799, %v2769
    %v2801 = vadd.f32 %v2800, %v2770
    %v2802 = vadd.f32 %v2801, %v2771
    %v2803 = vadd.f32 %v2802, %v2772
    %v2804 = vadd.f32 %v2803, %v2773
    %v2805 = vadd.f32 %v2804, %v2774
    %v2806 = vadd.f32 %v2805, %v2775
    %v2807 = vadd.f32 %v2806, %v2776
    %v2808 = vadd.f32 %v2807, %v2777
    %v2809 = vadd.f32 %v2808, %v2778
    %v2810 = vadd.f32 %v2809, %v2779
    %v2811 = vadd.f32 %v2810, %v2780
    %v2812 = vadd.f32 %v2811, %v2781
    %v2813 = vadd.f32 %v2812, %v2782
    %v2814 = vadd.f32 %v2813, %v2783
    %v2815 = vadd.f32 %v2814, %v2784
    %v2816 = vadd.f32 %v2815, %v2785
    %v2817 = vadd.f32 %v2816, %v2786
    %v2818 = vadd.f32 %v2817, %v2787
    %v2819 = vadd.f32 %v2818, %v2788
    %v2820 = vadd.f32 %v2819, %v2789
    %v2821 = vadd.f32 %v2820, %v2790
    %v2822 = vadd.f32 %v2821, %v2791
    %v2823 = vadd.f32 %v2822, %v2792
    %v2824 = vadd.f32 %v2823, %v2793
    %v2825 = vadd.f32 %v2824, %v2794
    %v2826 = vadd.f32 %v2825, %v2795
    %v2827 = vadd.f32 %v2826, %v2796
    %v2828 = vrot.slane %v2827, 4
    %v2829 = vadd.f32 %v2827, %v2828
    %v2830 = vrot.slane %v2829, 2
    %v2831 = vadd.f32 %v2829, %v2830
    %v2832 = vrot.slane %v2831, 1
    %v2833 = vadd.f32 %v2831, %v2832
    %2834 = vrot.lane.b32.xlu0 %v2833, 8
    %v2835 = vpop.permute.xlu0 %2834
    %v2836 = vadd.f32 %v2833, %v2835
    %2837 = vrot.lane.b32.xlu0 %v2836, 16
    %v2838 = vpop.permute.xlu0 %2837
    %v2839 = vadd.f32 %v2836, %v2838
    %2840 = vrot.lane.b32.xlu0 %v2839, 32
    %v2841 = vpop.permute.xlu0 %2840
    %v2842 = vadd.f32 %v2839, %v2841
    %2843 = vrot.lane.b32.xlu0 %v2842, 64
    %v2844 = vpop.permute.xlu0 %2843
    %v2845 = vadd.f32 %v2842, %v2844
    %v2846 = vmul.f32 %v2845, 0.00024414063
    %v2847 = vlaneseq
    %v2848 = vshrl.u32 %v2847, 7
    %v2849 = vsub.s32 0, %v2848
    %v2850 = vrot.slane %v2846, %v2849
    %v2851 = vsub.f32 %v2765, %v2850
    %v2852 = vsub.f32 %v2766, %v2850
    %v2853 = vsub.f32 %v2767, %v2850
    %v2854 = vsub.f32 %v2768, %v2850
    %v2855 = vsub.f32 %v2769, %v2850
    %v2856 = vsub.f32 %v2770, %v2850
    %v2857 = vsub.f32 %v2771, %v2850
    %v2858 = vsub.f32 %v2772, %v2850
    %v2859 = vsub.f32 %v2773, %v2850
    %v2860 = vsub.f32 %v2774, %v2850
    %v2861 = vsub.f32 %v2775, %v2850
    %v2862 = vsub.f32 %v2776, %v2850
    %v2863 = vsub.f32 %v2777, %v2850
    %v2864 = vsub.f32 %v2778, %v2850
    %v2865 = vsub.f32 %v2779, %v2850
    %v2866 = vsub.f32 %v2780, %v2850
    %v2867 = vsub.f32 %v2781, %v2850
    %v2868 = vsub.f32 %v2782, %v2850
    %v2869 = vsub.f32 %v2783, %v2850
    %v2870 = vsub.f32 %v2784, %v2850
    %v2871 = vsub.f32 %v2785, %v2850
    %v2872 = vsub.f32 %v2786, %v2850
    %v2873 = vsub.f32 %v2787, %v2850
    %v2874 = vsub.f32 %v2788, %v2850
    %v2875 = vsub.f32 %v2789, %v2850
    %v2876 = vsub.f32 %v2790, %v2850
    %v2877 = vsub.f32 %v2791, %v2850
    %v2878 = vsub.f32 %v2792, %v2850
    %v2879 = vsub.f32 %v2793, %v2850
    %v2880 = vsub.f32 %v2794, %v2850
    %v2881 = vsub.f32 %v2795, %v2850
    %v2882 = vsub.f32 %v2796, %v2850
    %v2883 = vmul.f32 %v2851, %v2851
    %v2884 = vmul.f32 %v2852, %v2852
    %v2885 = vmul.f32 %v2853, %v2853
    %v2886 = vmul.f32 %v2854, %v2854
    %v2887 = vmul.f32 %v2855, %v2855
    %v2888 = vmul.f32 %v2856, %v2856
    %v2889 = vmul.f32 %v2857, %v2857
    %v2890 = vmul.f32 %v2858, %v2858
    %v2891 = vmul.f32 %v2859, %v2859
    %v2892 = vmul.f32 %v2860, %v2860
    %v2893 = vmul.f32 %v2861, %v2861
    %v2894 = vmul.f32 %v2862, %v2862
    %v2895 = vmul.f32 %v2863, %v2863
    %v2896 = vmul.f32 %v2864, %v2864
    %v2897 = vmul.f32 %v2865, %v2865
    %v2898 = vmul.f32 %v2866, %v2866
    %v2899 = vmul.f32 %v2867, %v2867
    %v2900 = vmul.f32 %v2868, %v2868
    %v2901 = vmul.f32 %v2869, %v2869
    %v2902 = vmul.f32 %v2870, %v2870
    %v2903 = vmul.f32 %v2871, %v2871
    %v2904 = vmul.f32 %v2872, %v2872
    %v2905 = vmul.f32 %v2873, %v2873
    %v2906 = vmul.f32 %v2874, %v2874
    %v2907 = vmul.f32 %v2875, %v2875
    %v2908 = vmul.f32 %v2876, %v2876
    %v2909 = vmul.f32 %v2877, %v2877
    %v2910 = vmul.f32 %v2878, %v2878
    %v2911 = vmul.f32 %v2879, %v2879
    %v2912 = vmul.f32 %v2880, %v2880
    %v2913 = vmul.f32 %v2881, %v2881
    %v2914 = vmul.f32 %v2882, %v2882
    %v2915 = vadd.f32 %v2883, %v2884
    %v2916 = vadd.f32 %v2915, %v2885
    %v2917 = vadd.f32 %v2916, %v2886
    %v2918 = vadd.f32 %v2917, %v2887
    %v2919 = vadd.f32 %v2918, %v2888
    %v2920 = vadd.f32 %v2919, %v2889
    %v2921 = vadd.f32 %v2920, %v2890
    %v2922 = vadd.f32 %v2921, %v2891
    %v2923 = vadd.f32 %v2922, %v2892
    %v2924 = vadd.f32 %v2923, %v2893
    %v2925 = vadd.f32 %v2924, %v2894
    %v2926 = vadd.f32 %v2925, %v2895
    %v2927 = vadd.f32 %v2926, %v2896
    %v2928 = vadd.f32 %v2927, %v2897
    %v2929 = vadd.f32 %v2928, %v2898
    %v2930 = vadd.f32 %v2929, %v2899
    %v2931 = vadd.f32 %v2930, %v2900
    %v2932 = vadd.f32 %v2931, %v2901
    %v2933 = vadd.f32 %v2932, %v2902
    %v2934 = vadd.f32 %v2933, %v2903
    %v2935 = vadd.f32 %v2934, %v2904
    %v2936 = vadd.f32 %v2935, %v2905
    %v2937 = vadd.f32 %v2936, %v2906
    %v2938 = vadd.f32 %v2937, %v2907
    %v2939 = vadd.f32 %v2938, %v2908
    %v2940 = vadd.f32 %v2939, %v2909
    %v2941 = vadd.f32 %v2940, %v2910
    %v2942 = vadd.f32 %v2941, %v2911
    %v2943 = vadd.f32 %v2942, %v2912
    %v2944 = vadd.f32 %v2943, %v2913
    %v2945 = vadd.f32 %v2944, %v2914
    %v2946 = vrot.slane %v2945, 4
    %v2947 = vadd.f32 %v2945, %v2946
    %v2948 = vrot.slane %v2947, 2
    %v2949 = vadd.f32 %v2947, %v2948
    %v2950 = vrot.slane %v2949, 1
    %v2951 = vadd.f32 %v2949, %v2950
    %2952 = vrot.lane.b32.xlu0 %v2951, 8
    %v2953 = vpop.permute.xlu0 %2952
    %v2954 = vadd.f32 %v2951, %v2953
    %2955 = vrot.lane.b32.xlu0 %v2954, 16
    %v2956 = vpop.permute.xlu0 %2955
    %v2957 = vadd.f32 %v2954, %v2956
    %2958 = vrot.lane.b32.xlu0 %v2957, 32
    %v2959 = vpop.permute.xlu0 %2958
    %v2960 = vadd.f32 %v2957, %v2959
    %2961 = vrot.lane.b32.xlu0 %v2960, 64
    %v2962 = vpop.permute.xlu0 %2961
    %v2963 = vadd.f32 %v2960, %v2962
    %v2964 = vmul.f32 %v2963, 0.00024414063
    %v2965 = vadd.f32 %v2964, 1e-05
    %v2966 = vrsqrt.pop %v2965
    %v2967 = vlaneseq
    %v2968 = vshrl.u32 %v2967, 7
    %v2969 = vsub.s32 0, %v2968
    %v2970 = vrot.slane %v2966, %v2969
    %v2971 = vmul.f32 %v2851, %v2970
    %v2972 = vmul.f32 %v2852, %v2970
    %v2973 = vmul.f32 %v2853, %v2970
    %v2974 = vmul.f32 %v2854, %v2970
    %v2975 = vmul.f32 %v2855, %v2970
    %v2976 = vmul.f32 %v2856, %v2970
    %v2977 = vmul.f32 %v2857, %v2970
    %v2978 = vmul.f32 %v2858, %v2970
    %v2979 = vmul.f32 %v2859, %v2970
    %v2980 = vmul.f32 %v2860, %v2970
    %v2981 = vmul.f32 %v2861, %v2970
    %v2982 = vmul.f32 %v2862, %v2970
    %v2983 = vmul.f32 %v2863, %v2970
    %v2984 = vmul.f32 %v2864, %v2970
    %v2985 = vmul.f32 %v2865, %v2970
    %v2986 = vmul.f32 %v2866, %v2970
    %v2987 = vmul.f32 %v2867, %v2970
    %v2988 = vmul.f32 %v2868, %v2970
    %v2989 = vmul.f32 %v2869, %v2970
    %v2990 = vmul.f32 %v2870, %v2970
    %v2991 = vmul.f32 %v2871, %v2970
    %v2992 = vmul.f32 %v2872, %v2970
    %v2993 = vmul.f32 %v2873, %v2970
    %v2994 = vmul.f32 %v2874, %v2970
    %v2995 = vmul.f32 %v2875, %v2970
    %v2996 = vmul.f32 %v2876, %v2970
    %v2997 = vmul.f32 %v2877, %v2970
    %v2998 = vmul.f32 %v2878, %v2970
    %v2999 = vmul.f32 %v2879, %v2970
    %v3000 = vmul.f32 %v2880, %v2970
    %v3001 = vmul.f32 %v2881, %v2970
    %v3002 = vmul.f32 %v2882, %v2970
    %v3003 = vld [vmem:[%s5] sm:$0x1]
    %v3005 = vlaneseq
    %v3006 = vshrl.u32 %v3005, 7
    %v3007 = vsub.s32 0, %v3006
    %v3008 = vrot.slane %v3003, %v3007
    %v3010 = vmul.f32 %v2971, %v3008
    %v3011 = vmul.f32 %v2972, %v3008
    %v3012 = vmul.f32 %v2973, %v3008
    %v3013 = vmul.f32 %v2974, %v3008
    %v3014 = vmul.f32 %v2975, %v3008
    %v3015 = vmul.f32 %v2976, %v3008
    %v3016 = vmul.f32 %v2977, %v3008
    %v3017 = vmul.f32 %v2978, %v3008
    %v3018 = vmul.f32 %v2979, %v3008
    %v3019 = vmul.f32 %v2980, %v3008
    %v3020 = vmul.f32 %v2981, %v3008
    %v3021 = vmul.f32 %v2982, %v3008
    %v3022 = vmul.f32 %v2983, %v3008
    %v3023 = vmul.f32 %v2984, %v3008
    %v3024 = vmul.f32 %v2985, %v3008
    %v3025 = vmul.f32 %v2986, %v3008
    %v3026 = vmul.f32 %v2987, %v3008
    %v3027 = vmul.f32 %v2988, %v3008
    %v3028 = vmul.f32 %v2989, %v3008
    %v3029 = vmul.f32 %v2990, %v3008
    %v3030 = vmul.f32 %v2991, %v3008
    %v3031 = vmul.f32 %v2992, %v3008
    %v3032 = vmul.f32 %v2993, %v3008
    %v3033 = vmul.f32 %v2994, %v3008
    %v3034 = vmul.f32 %v2995, %v3008
    %v3035 = vmul.f32 %v2996, %v3008
    %v3036 = vmul.f32 %v2997, %v3008
    %v3037 = vmul.f32 %v2998, %v3008
    %v3038 = vmul.f32 %v2999, %v3008
    %v3039 = vmul.f32 %v3000, %v3008
    %v3040 = vmul.f32 %v3001, %v3008
    %v3041 = vmul.f32 %v3002, %v3008
    %v3042 = vld [vmem:[%s6] sm:$0x1]
    %v3044 = vlaneseq
    %v3045 = vshrl.u32 %v3044, 7
    %v3046 = vsub.s32 0, %v3045
    %v3047 = vrot.slane %v3042, %v3046
    %v3049 = vadd.f32 %v3010, %v3047
    %v3050 = vadd.f32 %v3011, %v3047
    %v3051 = vadd.f32 %v3012, %v3047
    %v3052 = vadd.f32 %v3013, %v3047
    %v3053 = vadd.f32 %v3014, %v3047
    %v3054 = vadd.f32 %v3015, %v3047
    %v3055 = vadd.f32 %v3016, %v3047
    %v3056 = vadd.f32 %v3017, %v3047
    %v3057 = vadd.f32 %v3018, %v3047
    %v3058 = vadd.f32 %v3019, %v3047
    %v3059 = vadd.f32 %v3020, %v3047
    %v3060 = vadd.f32 %v3021, %v3047
    %v3061 = vadd.f32 %v3022, %v3047
    %v3062 = vadd.f32 %v3023, %v3047
    %v3063 = vadd.f32 %v3024, %v3047
    %v3064 = vadd.f32 %v3025, %v3047
    %v3065 = vadd.f32 %v3026, %v3047
    %v3066 = vadd.f32 %v3027, %v3047
    %v3067 = vadd.f32 %v3028, %v3047
    %v3068 = vadd.f32 %v3029, %v3047
    %v3069 = vadd.f32 %v3030, %v3047
    %v3070 = vadd.f32 %v3031, %v3047
    %v3071 = vadd.f32 %v3032, %v3047
    %v3072 = vadd.f32 %v3033, %v3047
    %v3073 = vadd.f32 %v3034, %v3047
    %v3074 = vadd.f32 %v3035, %v3047
    %v3075 = vadd.f32 %v3036, %v3047
    %v3076 = vadd.f32 %v3037, %v3047
    %v3077 = vadd.f32 %v3038, %v3047
    %v3078 = vadd.f32 %v3039, %v3047
    %v3079 = vadd.f32 %v3040, %v3047
    %v3080 = vadd.f32 %v3041, %v3047
    %v3081 = vadd.f32 %v3049, %v68
    %v3082 = vadd.f32 %v3050, %v69
    %v3083 = vadd.f32 %v3051, %v70
    %v3084 = vadd.f32 %v3052, %v71
    %v3085 = vadd.f32 %v3053, %v72
    %v3086 = vadd.f32 %v3054, %v73
    %v3087 = vadd.f32 %v3055, %v74
    %v3088 = vadd.f32 %v3056, %v75
    %v3089 = vadd.f32 %v3057, %v76
    %v3090 = vadd.f32 %v3058, %v77
    %v3091 = vadd.f32 %v3059, %v78
    %v3092 = vadd.f32 %v3060, %v79
    %v3093 = vadd.f32 %v3061, %v80
    %v3094 = vadd.f32 %v3062, %v81
    %v3095 = vadd.f32 %v3063, %v82
    %v3096 = vadd.f32 %v3064, %v83
    %v3097 = vadd.f32 %v3065, %v84
    %v3098 = vadd.f32 %v3066, %v85
    %v3099 = vadd.f32 %v3067, %v86
    %v3100 = vadd.f32 %v3068, %v87
    %v3101 = vadd.f32 %v3069, %v88
    %v3102 = vadd.f32 %v3070, %v89
    %v3103 = vadd.f32 %v3071, %v90
    %v3104 = vadd.f32 %v3072, %v91
    %v3105 = vadd.f32 %v3073, %v92
    %v3106 = vadd.f32 %v3074, %v93
    %v3107 = vadd.f32 %v3075, %v94
    %v3108 = vadd.f32 %v3076, %v95
    %v3109 = vadd.f32 %v3077, %v96
    %v3110 = vadd.f32 %v3078, %v97
    %v3111 = vadd.f32 %v3079, %v98
    %v3112 = vadd.f32 %v3080, %v99
    %v3113 = vmax.f32 %v3081, 0.0
    %v3114 = vmax.f32 %v3082, 0.0
    %v3115 = vmax.f32 %v3083, 0.0
    %v3116 = vmax.f32 %v3084, 0.0
    %v3117 = vmax.f32 %v3085, 0.0
    %v3118 = vmax.f32 %v3086, 0.0
    %v3119 = vmax.f32 %v3087, 0.0
    %v3120 = vmax.f32 %v3088, 0.0
    %v3121 = vmax.f32 %v3089, 0.0
    %v3122 = vmax.f32 %v3090, 0.0
    %v3123 = vmax.f32 %v3091, 0.0
    %v3124 = vmax.f32 %v3092, 0.0
    %v3125 = vmax.f32 %v3093, 0.0
    %v3126 = vmax.f32 %v3094, 0.0
    %v3127 = vmax.f32 %v3095, 0.0
    %v3128 = vmax.f32 %v3096, 0.0
    %v3129 = vmax.f32 %v3097, 0.0
    %v3130 = vmax.f32 %v3098, 0.0
    %v3131 = vmax.f32 %v3099, 0.0
    %v3132 = vmax.f32 %v3100, 0.0
    %v3133 = vmax.f32 %v3101, 0.0
    %v3134 = vmax.f32 %v3102, 0.0
    %v3135 = vmax.f32 %v3103, 0.0
    %v3136 = vmax.f32 %v3104, 0.0
    %v3137 = vmax.f32 %v3105, 0.0
    %v3138 = vmax.f32 %v3106, 0.0
    %v3139 = vmax.f32 %v3107, 0.0
    %v3140 = vmax.f32 %v3108, 0.0
    %v3141 = vmax.f32 %v3109, 0.0
    %v3142 = vmax.f32 %v3110, 0.0
    %v3143 = vmax.f32 %v3111, 0.0
    %v3144 = vmax.f32 %v3112, 0.0
    %3145 = vst [vmem:[#allocation8] sm:$0xff] %v3113
    %3146 = vst [vmem:[#allocation8 + $0x8] sm:$0xff] %v3114
    %3147 = vst [vmem:[#allocation8 + $0x10] sm:$0xff] %v3115
    %3148 = vst [vmem:[#allocation8 + $0x18] sm:$0xff] %v3116
    %3149 = vst [vmem:[#allocation8 + $0x20] sm:$0xff] %v3117
    %3150 = vst [vmem:[#allocation8 + $0x28] sm:$0xff] %v3118
    %3151 = vst [vmem:[#allocation8 + $0x30] sm:$0xff] %v3119
    %3152 = vst [vmem:[#allocation8 + $0x38] sm:$0xff] %v3120
    %3153 = vst [vmem:[#allocation8 + $0x40] sm:$0xff] %v3121
    %3154 = vst [vmem:[#allocation8 + $0x48] sm:$0xff] %v3122
    %3155 = vst [vmem:[#allocation8 + $0x50] sm:$0xff] %v3123
    %3156 = vst [vmem:[#allocation8 + $0x58] sm:$0xff] %v3124
    %3157 = vst [vmem:[#allocation8 + $0x60] sm:$0xff] %v3125
    %3158 = vst [vmem:[#allocation8 + $0x68] sm:$0xff] %v3126
    %3159 = vst [vmem:[#allocation8 + $0x70] sm:$0xff] %v3127
    %3160 = vst [vmem:[#allocation8 + $0x78] sm:$0xff] %v3128
    %3161 = vst [vmem:[#allocation8 + $0x80] sm:$0xff] %v3129
    %3162 = vst [vmem:[#allocation8 + $0x88] sm:$0xff] %v3130
    %3163 = vst [vmem:[#allocation8 + $0x90] sm:$0xff] %v3131
    %3164 = vst [vmem:[#allocation8 + $0x98] sm:$0xff] %v3132
    %3165 = vst [vmem:[#allocation8 + $0xa0] sm:$0xff] %v3133
    %3166 = vst [vmem:[#allocation8 + $0xa8] sm:$0xff] %v3134
    %3167 = vst [vmem:[#allocation8 + $0xb0] sm:$0xff] %v3135
    %3168 = vst [vmem:[#allocation8 + $0xb8] sm:$0xff] %v3136
    %3169 = vst [vmem:[#allocation8 + $0xc0] sm:$0xff] %v3137
    %3170 = vst [vmem:[#allocation8 + $0xc8] sm:$0xff] %v3138
    %3171 = vst [vmem:[#allocation8 + $0xd0] sm:$0xff] %v3139
    %3172 = vst [vmem:[#allocation8 + $0xd8] sm:$0xff] %v3140
    %3173 = vst [vmem:[#allocation8 + $0xe0] sm:$0xff] %v3141
    %3174 = vst [vmem:[#allocation8 + $0xe8] sm:$0xff] %v3142
    %3175 = vst [vmem:[#allocation8 + $0xf0] sm:$0xff] %v3143
    %3176 = vst [vmem:[#allocation8 + $0xf8] sm:$0xff] %v3144
    // Predicated region
    $region42: #{tpu_custom_call.1} parent=1 // pred_check
      _
    $region43: #{tpu_custom_call.1} parent=1 // pred_check_branch
      %3178 = sbr.rel (0) target = $region45
    $region44: #{tpu_custom_call.1} parent=1 // pred_region
      %s3180 = ssub.s32 4096, 4096
      %3181 = vsyncadd [#allocation4], %s3180
      %s3182 = sshll.u32 [#allocation8], 4
      %s3183 = int_to_ptr.vmem [resolvable:$true] %s3182
      %3188 = dma.vmem_to_hbm [thread:$0]  %s3183, 4096, %s7, [#allocation4], 128, 128, 8
    $region45: #{tpu_custom_call.1} parent=1 // pred_fallthru
      _
    // Predicated region
    $region46: #{tpu_custom_call.1} parent=1 // pred_check
      _
    $region47: #{tpu_custom_call.1} parent=1 // pred_check_branch
      %3190 = sbr.rel (0) target = $region49
    $region48: #{tpu_custom_call.1} parent=1 // pred_region
      %3191 = dma.done [#allocation4], 4096
    $region49: #{tpu_custom_call.1} parent=1 // pred_fallthru
      _
    %3192 = vsyncpa [#allocation3], 1
    %3193 = vsyncpa [#allocation6], 1
    %3194 = vsyncpa [#allocation4], 1

</llo_original>
